<compile_context>
chip_gen: v7x
topology: tpu7x:2x2x1
jax: 0.10.0
libtpu: 0.0.40
codegen_flags: <defaults>
</compile_context>

<pallas_src>
import functools

import jax
import jax.numpy as jnp
from jax import lax
from jax.experimental import pallas as pl
from jax.experimental.pallas import tpu as pltpu


def _round_up(v, m):
    return ((v + m - 1) // m) * m


# --------------------------------------------------------------------------------------
# Kernel 1: RoI max pooling (torchvision RoIPool semantics), channel-last, separable.
# --------------------------------------------------------------------------------------
def _roi_pool_kernel(idx_ref, hs_ref, he_ref, ws_ref, we_ref, x_ref, out_ref, *, roi_size):
    # idx_ref            : SMEM (R,)            int32  (used only by the index_map)
    # hs/he/ws/we refs   : SMEM (R*roi_size,)   int32  precomputed, clipped bin boundaries
    # x_ref              : VMEM (1, H, W, C)    f32    feature map of this RoI's image
    # out_ref            : VMEM (1, roi_size, roi_size, C)   bf16
    del idx_ref
    r = pl.program_id(0)
    base = r * roi_size

    x = x_ref[0]                                            # (H, W, C); C on lanes
    feat_h, feat_w = x.shape[0], x.shape[1]
    neg_inf = jnp.float32(-jnp.inf)

    w_iota = lax.broadcasted_iota(jnp.int32, (feat_h, feat_w, 1), 1)
    h_iota = lax.broadcasted_iota(jnp.int32, (1, feat_h, 1), 1)

    # Stage 1: pool over W into roi_size column bins -> (roi_size_pw, H, C)
    col_bins = []
    for pw in range(roi_size):
        ws = ws_ref[base + pw]
        we = we_ref[base + pw]
        m = (w_iota >= ws) & (w_iota < we)                  # (H, W, 1)
        col_bins.append(jnp.max(jnp.where(m, x, neg_inf), axis=1))      # (H, C)
    cols = jnp.stack(col_bins, axis=0)                      # (roi_size, H, C)

    # Stage 2: pool over H into roi_size row bins -> (roi_size_ph, roi_size_pw, C)
    rows = []
    for ph in range(roi_size):
        hs = hs_ref[base + ph]
        he = he_ref[base + ph]
        m = (h_iota >= hs) & (h_iota < he)                  # (1, H, 1)
        rows.append(jnp.max(jnp.where(m, cols, neg_inf), axis=1))       # (roi_size, C)
    out = jnp.stack(rows, axis=0)                           # (roi_size, roi_size, C)

    # Empty (fully clipped) bins -> 0, matching torchvision.  Finite inputs never hit -inf.
    out = jnp.where(out == neg_inf, jnp.float32(0.0), out)
    out_ref[0] = out.astype(out_ref.dtype)


def roi_pool_features(x, rois, roi_idx, *, roi_size, spatial_scale):
    """x: (N, C, H, W) f32; rois: (R, 4) in (y1, x1, y2, x2); returns (R, rs, rs, C) bf16."""
    n, c, h, w = x.shape
    r = rois.shape[0]

    # Column shuffle from the PyTorch module: torchvision wants (x1, y1, x2, y2).
    x1, y1, x2, y2 = rois[:, 1], rois[:, 0], rois[:, 3], rois[:, 2]

    scale = jnp.float32(spatial_scale)
    half = jnp.float32(0.5)
    # round-half-away-from-zero for non-negative coords (== torchvision's std::round).
    sw = jnp.floor(x1 * scale + half).astype(jnp.int32)
    sh = jnp.floor(y1 * scale + half).astype(jnp.int32)
    ew = jnp.floor(x2 * scale + half).astype(jnp.int32)
    eh = jnp.floor(y2 * scale + half).astype(jnp.int32)
    roi_w = jnp.maximum(ew - sw + 1, 1)
    roi_h = jnp.maximum(eh - sh + 1, 1)

    p = jnp.arange(roi_size, dtype=jnp.int32)[None, :]                  # (1, rs)
    hs = jnp.clip((p * roi_h[:, None]) // roi_size + sh[:, None], 0, h)
    he = jnp.clip(((p + 1) * roi_h[:, None] + roi_size - 1) // roi_size + sh[:, None], 0, h)
    ws = jnp.clip((p * roi_w[:, None]) // roi_size + sw[:, None], 0, w)
    we = jnp.clip(((p + 1) * roi_w[:, None] + roi_size - 1) // roi_size + sw[:, None], 0, w)

    idx = roi_idx.astype(jnp.int32)
    # Sort by image index so consecutive grid steps reuse the same feature-map DMA.
    order = jnp.argsort(idx)
    inv = jnp.argsort(order)
    idx_s = idx[order]
    hs_s = hs[order].reshape(-1).astype(jnp.int32)
    he_s = he[order].reshape(-1).astype(jnp.int32)
    ws_s = ws[order].reshape(-1).astype(jnp.int32)
    we_s = we[order].reshape(-1).astype(jnp.int32)

    x_nhwc = jnp.transpose(x, (0, 2, 3, 1))                 # channel-last: C on lanes

    kern = functools.partial(_roi_pool_kernel, roi_size=roi_size)
    pool_sorted = pl.pallas_call(
        kern,
        out_shape=jax.ShapeDtypeStruct((r, roi_size, roi_size, c), jnp.bfloat16),
        grid_spec=pltpu.PrefetchScalarGridSpec(
            num_scalar_prefetch=5,
            grid=(r,),
            in_specs=[pl.BlockSpec(
                (1, h, w, c),
                lambda i, idx_ref, hs_ref, he_ref, ws_ref, we_ref: (idx_ref[i], 0, 0, 0))],
            out_specs=pl.BlockSpec(
                (1, roi_size, roi_size, c),
                lambda i, idx_ref, hs_ref, he_ref, ws_ref, we_ref: (i, 0, 0, 0)),
        ),
        compiler_params=pltpu.CompilerParams(dimension_semantics=("arbitrary",)),
    )(idx_s, hs_s, he_s, ws_s, we_s, x_nhwc)
    return pool_sorted[inv]                                 # original RoI order


# --------------------------------------------------------------------------------------
# Kernel 2: tiled bf16 matmul + bias (+ ReLU), f32 accumulation.
#   * K-tiled path: f32 VMEM accumulator, init/finalize via pl.when.
#   * single-K fast path: no accumulator scratch, no K grid axis (used by the head matmuls).
# --------------------------------------------------------------------------------------
def _mm_kernel_ktiled(x_ref, w_ref, b_ref, o_ref, acc_ref, *, relu):
    @pl.when(pl.program_id(2) == 0)
    def _init():
        acc_ref[...] = jnp.zeros_like(acc_ref)

    acc_ref[...] += jnp.dot(x_ref[...], w_ref[...], preferred_element_type=jnp.float32)

    @pl.when(pl.program_id(2) == pl.num_programs(2) - 1)
    def _finalize():
        y = acc_ref[...] + b_ref[...]
        if relu:
            y = jnp.maximum(y, 0.0)
        o_ref[...] = y.astype(o_ref.dtype)


def _mm_kernel_single_k(x_ref, w_ref, b_ref, o_ref, *, relu):
    y = jnp.dot(x_ref[...], w_ref[...], preferred_element_type=jnp.float32) + b_ref[...]
    if relu:
        y = jnp.maximum(y, 0.0)
    o_ref[...] = y.astype(o_ref.dtype)


def _matmul_bias_act(x, w, b, *, relu, out_dtype):
    """y = act(x @ w + b) with bf16 operands, f32 accumulation, tiled for the MXU."""
    m, k = x.shape
    _, n = w.shape
    tm = 128 if m >= 128 else _round_up(m, 8)
    tn = 512 if (n >= 512 and n % 512 == 0) else 128
    tk = 512 if k >= 512 else 128
    mp, np_, kp = _round_up(m, tm), _round_up(n, tn), _round_up(k, tk)

    xp = jnp.pad(x.astype(jnp.bfloat16), ((0, mp - m), (0, kp - k)))
    wp = jnp.pad(w.astype(jnp.bfloat16), ((0, kp - k), (0, np_ - n)))
    bp = jnp.pad(b.astype(jnp.float32).reshape(1, n), ((0, 0), (0, np_ - n)))

    if kp == tk:
        # Whole K fits one tile: skip the accumulator scratch and the K grid axis.
        out = pl.pallas_call(
            functools.partial(_mm_kernel_single_k, relu=relu),
            out_shape=jax.ShapeDtypeStruct((mp, np_), out_dtype),
            grid_spec=pltpu.PrefetchScalarGridSpec(
                num_scalar_prefetch=0,
                grid=(mp // tm, np_ // tn),
                in_specs=[pl.BlockSpec((tm, kp), lambda i, j: (i, 0)),
                          pl.BlockSpec((kp, tn), lambda i, j: (0, j)),
                          pl.BlockSpec((1, tn), lambda i, j: (0, j))],
                out_specs=pl.BlockSpec((tm, tn), lambda i, j: (i, j))),
            compiler_params=pltpu.CompilerParams(
                dimension_semantics=("parallel", "parallel")),
        )(xp, wp, bp)
    else:
        out = pl.pallas_call(
            functools.partial(_mm_kernel_ktiled, relu=relu),
            out_shape=jax.ShapeDtypeStruct((mp, np_), out_dtype),
            grid_spec=pltpu.PrefetchScalarGridSpec(
                num_scalar_prefetch=0,
                grid=(mp // tm, np_ // tn, kp // tk),
                in_specs=[pl.BlockSpec((tm, tk), lambda i, j, kk: (i, kk)),
                          pl.BlockSpec((tk, tn), lambda i, j, kk: (kk, j)),
                          pl.BlockSpec((1, tn), lambda i, j, kk: (0, j))],
                out_specs=pl.BlockSpec((tm, tn), lambda i, j, kk: (i, j)),
                scratch_shapes=[pltpu.VMEM((tm, tn), jnp.float32)]),
            compiler_params=pltpu.CompilerParams(
                dimension_semantics=("parallel", "parallel", "arbitrary")),
        )(xp, wp, bp)
    return out[:m, :n]


# --------------------------------------------------------------------------------------
# Full forward (mirrors Vgg16RoiHead.forward).
# --------------------------------------------------------------------------------------
def vgg16_roi_head_forward(params, x, rois, roi_idx, *, roi_size, spatial_scale):
    n, c, h, w = x.shape
    p = roi_size * roi_size
    hidden = params["w1"].shape[1]
    n_loc = params["wl"].shape[1]
    n_cls = params["ws"].shape[1]

    pool4 = roi_pool_features(x, rois, roi_idx, roi_size=roi_size,
                              spatial_scale=spatial_scale)          # (R, rs, rs, C) bf16
    r = pool4.shape[0]
    pool = pool4.reshape(r, p * c)                                   # p-major / c-minor

    # Permute w1 rows from PyTorch's c-major flatten (c*P + p) to the kernel's p-major
    # flatten (p*C + c).  One-time layout plumbing; in deployment pre-permute the weights.
    w1p = params["w1"].reshape(c, p, hidden).transpose(1, 0, 2).reshape(p * c, hidden)

    # Pad the RoI dim once so the MXU M dimension is sublane-aligned through the whole chain.
    mp = _round_up(r, 16)
    poolp = jnp.pad(pool, ((0, mp - r), (0, 0)))

    h1 = _matmul_bias_act(poolp, w1p, params["b1"], relu=True, out_dtype=jnp.bfloat16)
    h2 = _matmul_bias_act(h1, params["w2"], params["b2"], relu=True, out_dtype=jnp.bfloat16)

    # Fuse the two tiny heads into one lane-dense matmul; slice outside the kernel.
    w_head = jnp.concatenate([params["wl"], params["ws"]], axis=1)
    b_head = jnp.concatenate([params["bl"], params["bs"]])
    head = _matmul_bias_act(h2, w_head, b_head, relu=False, out_dtype=jnp.float32)

    roi_cls_locs = head[:r, :n_loc]
    roi_scores = head[:r, n_loc:n_loc + n_cls]
    return roi_cls_locs, roi_scores


if __name__ == "__main__":
    key = jax.random.PRNGKey(0)
    N, C, H, W = 2, 4, 16, 16
    R = 6
    roi_size = 7
    spatial_scale = 0.5
    n_classes = 5
    hidden = 128                      # scaled-down stand-in for VGG16's 4096
    P = roi_size * roi_size
    d_in = C * P

    keys = jax.random.split(key, 10)
    x = jax.random.normal(keys[0], (N, C, H, W), jnp.float32)
    y1 = jax.random.uniform(keys[1], (R,), minval=0.0, maxval=18.0)
    x1 = jax.random.uniform(keys[2], (R,), minval=0.0, maxval=18.0)
    hgt = jax.random.uniform(keys[3], (R,), minval=3.0, maxval=13.0)
    wid = jax.random.uniform(keys[4], (R,), minval=3.0, maxval=13.0)
    y2 = jnp.minimum(y1 + hgt, 31.0)
    x2 = jnp.minimum(x1 + wid, 31.0)
    rois = jnp.stack([y1, x1, y2, x2], axis=1).astype(jnp.float32)   # (y1, x1, y2, x2)
    roi_idx = jax.random.randint(keys[5], (R,), 0, N).astype(jnp.int32)

    params = dict(
        w1=jax.random.normal(keys[6], (d_in, hidden), jnp.float32) * 0.05,
        b1=jnp.zeros((hidden,), jnp.float32),
        w2=jax.random.normal(keys[7], (hidden, hidden), jnp.float32) * 0.05,
        b2=jnp.zeros((hidden,), jnp.float32),
        wl=jax.random.normal(keys[8], (hidden, n_classes * 4), jnp.float32) * 0.001,
        bl=jnp.zeros((n_classes * 4,), jnp.float32),
        ws=jax.random.normal(keys[9], (hidden, n_classes), jnp.float32) * 0.01,
        bs=jnp.zeros((n_classes,), jnp.float32),
    )

    locs, scores = vgg16_roi_head_forward(params, x, rois, roi_idx,
                                          roi_size=roi_size, spatial_scale=spatial_scale)
    pool4 = roi_pool_features(x, rois, roi_idx, roi_size=roi_size,
                              spatial_scale=spatial_scale)
    jax.block_until_ready((locs, scores, pool4))
    assert locs.shape == (R, n_classes * 4) and scores.shape == (R, n_classes)

    # ------------------------------------------------------------------ reference check
    import numpy as np

    def q_bf16(a):  # round-to-nearest-even bf16 quantization, back to f32
        return np.asarray(jnp.asarray(np.asarray(a, np.float32),
                                      dtype=jnp.bfloat16).astype(jnp.float32))

    f32 = np.float32
    xn, roisn, idxn = np.asarray(x), np.asarray(rois), np.asarray(roi_idx)
    pool_ref = np.zeros((R, C, roi_size, roi_size), np.float32)
    for ri in range(R):
        by1, bx1, by2, bx2 = roisn[ri]
        sw = int(np.floor(f32(bx1) * f32(spatial_scale) + f32(0.5)))
        sh = int(np.floor(f32(by1) * f32(spatial_scale) + f32(0.5)))
        ew = int(np.floor(f32(bx2) * f32(spatial_scale) + f32(0.5)))
        eh = int(np.floor(f32(by2) * f32(spatial_scale) + f32(0.5)))
        roi_w = max(ew - sw + 1, 1)
        roi_h = max(eh - sh + 1, 1)
        fm = xn[idxn[ri]]
        for ph in range(roi_size):
            hs = min(max((ph * roi_h) // roi_size + sh, 0), H)
            he = min(max(((ph + 1) * roi_h + roi_size - 1) // roi_size + sh, 0), H)
            for pw in range(roi_size):
                ws_ = min(max((pw * roi_w) // roi_size + sw, 0), W)
                we_ = min(max(((pw + 1) * roi_w + roi_size - 1) // roi_size + sw, 0), W)
                if he <= hs or we_ <= ws_:
                    pool_ref[ri, :, ph, pw] = 0.0
                else:
                    pool_ref[ri, :, ph, pw] = fm[:, hs:he, ws_:we_].max(axis=(1, 2))

    # Pool check (bit-exact up to the bf16 output cast, mirrored in the reference).
    pool_dev = np.asarray(pool4.astype(jnp.float32))
    np.testing.assert_allclose(pool_dev, q_bf16(pool_ref.transpose(0, 2, 3, 1)),
                               rtol=0.0, atol=1e-6)

    # FC check against a reference that mirrors the bf16-operand / f32-accumulate pipeline.
    pool_flat_ref = pool_ref.reshape(R, -1)                 # PyTorch's c-major flatten
    w1n, w2n = np.asarray(params["w1"]), np.asarray(params["w2"])
    whn = np.concatenate([np.asarray(params["wl"]), np.asarray(params["ws"])], axis=1)
    b1n = np.asarray(params["b1"], np.float64)
    b2n = np.asarray(params["b2"], np.float64)
    bhn = np.concatenate([np.asarray(params["bl"]), np.asarray(params["bs"])]).astype(np.float64)

    h1r = np.maximum(q_bf16(pool_flat_ref).astype(np.float64)
                     @ q_bf16(w1n).astype(np.float64) + b1n, 0.0)
    h1r = q_bf16(h1r).astype(np.float64)
    h2r = np.maximum(h1r @ q_bf16(w2n).astype(np.float64) + b2n, 0.0)
    h2r = q_bf16(h2r).astype(np.float64)
    headr = h2r @ q_bf16(whn).astype(np.float64) + bhn
    locs_ref = headr[:, :n_classes * 4]
    scores_ref = headr[:, n_classes * 4:]

    np.testing.assert_allclose(np.asarray(locs), locs_ref, rtol=5e-2, atol=1e-3)
    np.testing.assert_allclose(np.asarray(scores), scores_ref, rtol=5e-2, atol=5e-3)

    print("KERNEL_OK")
</pallas_src>

<mosaic_0001>
module attributes {stable_mosaic.version = 11 : i64} {
  func.func @_roi_pool_kernel(%arg0: i32, %arg1: memref<6xi32, #tpu.memory_space<smem>>, %arg2: memref<42xi32, #tpu.memory_space<smem>>, %arg3: memref<42xi32, #tpu.memory_space<smem>>, %arg4: memref<42xi32, #tpu.memory_space<smem>>, %arg5: memref<42xi32, #tpu.memory_space<smem>>, %arg6: memref<1x16x16x4xf32, #tpu.memory_space<vmem>>, %arg7: memref<1x7x7x4xbf16, #tpu.memory_space<vmem>>) attributes {dimension_semantics = [#tpu.dimension_semantics<arbitrary>], iteration_bounds = array<i64: 6>, scalar_prefetch = 5 : i64, scratch_operands = 0 : i64, tpu.core_type = #tpu.core_type<tc>, window_params = [{transform_indices = @transform_0, window_bounds = array<i64: 1, 16, 16, 4>}, {transform_indices = @transform_1, window_bounds = array<i64: 1, 7, 7, 4>}]} {
    %c7_i32 = arith.constant 7 : i32
    %0 = arith.muli %arg0, %c7_i32 : i32
    %c0 = arith.constant 0 : index
    %c0_0 = arith.constant 0 : index
    %c0_1 = arith.constant 0 : index
    %c0_2 = arith.constant 0 : index
    %1 = vector.load %arg6[%c0, %c0_0, %c0_1, %c0_2] : memref<1x16x16x4xf32, #tpu.memory_space<vmem>>, vector<1x16x16x4xf32>
    %2 = vector.shape_cast %1 : vector<1x16x16x4xf32> to vector<16x16x4xf32>
    %3 = tpu.iota {dimensions = array<i32: 1>} : vector<16x16x1xi32>
    %4 = tpu.iota {dimensions = array<i32: 1>} : vector<1x16x1xi32>
    %c0_i32 = arith.constant 0 : i32
    %5 = arith.addi %0, %c0_i32 : i32
    %6 = arith.index_cast %5 : i32 to index
    %7 = memref.load %arg4[%6] : memref<42xi32, #tpu.memory_space<smem>>
    %c0_i32_3 = arith.constant 0 : i32
    %8 = arith.addi %0, %c0_i32_3 : i32
    %9 = arith.index_cast %8 : i32 to index
    %10 = memref.load %arg5[%9] : memref<42xi32, #tpu.memory_space<smem>>
    %11 = vector.broadcast %7 : i32 to vector<16x16x1xi32>
    %12 = arith.cmpi sge, %3, %11 : vector<16x16x1xi32>
    %13 = vector.broadcast %10 : i32 to vector<16x16x1xi32>
    %14 = arith.cmpi slt, %3, %13 : vector<16x16x1xi32>
    %15 = arith.andi %12, %14 : vector<16x16x1xi1>
    %cst = arith.constant 0xFF800000 : f32
    %16 = vector.shape_cast %15 : vector<16x16x1xi1> to vector<16x16x1xi1>
    %17 = vector.broadcast %16 : vector<16x16x1xi1> to vector<16x16x4xi1>
    %18 = vector.broadcast %cst : f32 to vector<16x16x4xf32>
    %19 = arith.select %17, %2, %18 : vector<16x16x4xi1>, vector<16x16x4xf32>
    %cst_4 = arith.constant dense<0xFF800000> : vector<16x4xf32>
    %20 = vector.multi_reduction <maximumf>, %19, %cst_4 [1] : vector<16x16x4xf32> to vector<16x4xf32>
    %c1_i32 = arith.constant 1 : i32
    %21 = arith.addi %0, %c1_i32 : i32
    %22 = arith.index_cast %21 : i32 to index
    %23 = memref.load %arg4[%22] : memref<42xi32, #tpu.memory_space<smem>>
    %c1_i32_5 = arith.constant 1 : i32
    %24 = arith.addi %0, %c1_i32_5 : i32
    %25 = arith.index_cast %24 : i32 to index
    %26 = memref.load %arg5[%25] : memref<42xi32, #tpu.memory_space<smem>>
    %27 = vector.broadcast %23 : i32 to vector<16x16x1xi32>
    %28 = arith.cmpi sge, %3, %27 : vector<16x16x1xi32>
    %29 = vector.broadcast %26 : i32 to vector<16x16x1xi32>
    %30 = arith.cmpi slt, %3, %29 : vector<16x16x1xi32>
    %31 = arith.andi %28, %30 : vector<16x16x1xi1>
    %cst_6 = arith.constant 0xFF800000 : f32
    %32 = vector.shape_cast %31 : vector<16x16x1xi1> to vector<16x16x1xi1>
    %33 = vector.broadcast %32 : vector<16x16x1xi1> to vector<16x16x4xi1>
    %34 = vector.broadcast %cst_6 : f32 to vector<16x16x4xf32>
    %35 = arith.select %33, %2, %34 : vector<16x16x4xi1>, vector<16x16x4xf32>
    %cst_7 = arith.constant dense<0xFF800000> : vector<16x4xf32>
    %36 = vector.multi_reduction <maximumf>, %35, %cst_7 [1] : vector<16x16x4xf32> to vector<16x4xf32>
    %c2_i32 = arith.constant 2 : i32
    %37 = arith.addi %0, %c2_i32 : i32
    %38 = arith.index_cast %37 : i32 to index
    %39 = memref.load %arg4[%38] : memref<42xi32, #tpu.memory_space<smem>>
    %c2_i32_8 = arith.constant 2 : i32
    %40 = arith.addi %0, %c2_i32_8 : i32
    %41 = arith.index_cast %40 : i32 to index
    %42 = memref.load %arg5[%41] : memref<42xi32, #tpu.memory_space<smem>>
    %43 = vector.broadcast %39 : i32 to vector<16x16x1xi32>
    %44 = arith.cmpi sge, %3, %43 : vector<16x16x1xi32>
    %45 = vector.broadcast %42 : i32 to vector<16x16x1xi32>
    %46 = arith.cmpi slt, %3, %45 : vector<16x16x1xi32>
    %47 = arith.andi %44, %46 : vector<16x16x1xi1>
    %cst_9 = arith.constant 0xFF800000 : f32
    %48 = vector.shape_cast %47 : vector<16x16x1xi1> to vector<16x16x1xi1>
    %49 = vector.broadcast %48 : vector<16x16x1xi1> to vector<16x16x4xi1>
    %50 = vector.broadcast %cst_9 : f32 to vector<16x16x4xf32>
    %51 = arith.select %49, %2, %50 : vector<16x16x4xi1>, vector<16x16x4xf32>
    %cst_10 = arith.constant dense<0xFF800000> : vector<16x4xf32>
    %52 = vector.multi_reduction <maximumf>, %51, %cst_10 [1] : vector<16x16x4xf32> to vector<16x4xf32>
    %c3_i32 = arith.constant 3 : i32
    %53 = arith.addi %0, %c3_i32 : i32
    %54 = arith.index_cast %53 : i32 to index
    %55 = memref.load %arg4[%54] : memref<42xi32, #tpu.memory_space<smem>>
    %c3_i32_11 = arith.constant 3 : i32
    %56 = arith.addi %0, %c3_i32_11 : i32
    %57 = arith.index_cast %56 : i32 to index
    %58 = memref.load %arg5[%57] : memref<42xi32, #tpu.memory_space<smem>>
    %59 = vector.broadcast %55 : i32 to vector<16x16x1xi32>
    %60 = arith.cmpi sge, %3, %59 : vector<16x16x1xi32>
    %61 = vector.broadcast %58 : i32 to vector<16x16x1xi32>
    %62 = arith.cmpi slt, %3, %61 : vector<16x16x1xi32>
    %63 = arith.andi %60, %62 : vector<16x16x1xi1>
    %cst_12 = arith.constant 0xFF800000 : f32
    %64 = vector.shape_cast %63 : vector<16x16x1xi1> to vector<16x16x1xi1>
    %65 = vector.broadcast %64 : vector<16x16x1xi1> to vector<16x16x4xi1>
    %66 = vector.broadcast %cst_12 : f32 to vector<16x16x4xf32>
    %67 = arith.select %65, %2, %66 : vector<16x16x4xi1>, vector<16x16x4xf32>
    %cst_13 = arith.constant dense<0xFF800000> : vector<16x4xf32>
    %68 = vector.multi_reduction <maximumf>, %67, %cst_13 [1] : vector<16x16x4xf32> to vector<16x4xf32>
    %c4_i32 = arith.constant 4 : i32
    %69 = arith.addi %0, %c4_i32 : i32
    %70 = arith.index_cast %69 : i32 to index
    %71 = memref.load %arg4[%70] : memref<42xi32, #tpu.memory_space<smem>>
    %c4_i32_14 = arith.constant 4 : i32
    %72 = arith.addi %0, %c4_i32_14 : i32
    %73 = arith.index_cast %72 : i32 to index
    %74 = memref.load %arg5[%73] : memref<42xi32, #tpu.memory_space<smem>>
    %75 = vector.broadcast %71 : i32 to vector<16x16x1xi32>
    %76 = arith.cmpi sge, %3, %75 : vector<16x16x1xi32>
    %77 = vector.broadcast %74 : i32 to vector<16x16x1xi32>
    %78 = arith.cmpi slt, %3, %77 : vector<16x16x1xi32>
    %79 = arith.andi %76, %78 : vector<16x16x1xi1>
    %cst_15 = arith.constant 0xFF800000 : f32
    %80 = vector.shape_cast %79 : vector<16x16x1xi1> to vector<16x16x1xi1>
    %81 = vector.broadcast %80 : vector<16x16x1xi1> to vector<16x16x4xi1>
    %82 = vector.broadcast %cst_15 : f32 to vector<16x16x4xf32>
    %83 = arith.select %81, %2, %82 : vector<16x16x4xi1>, vector<16x16x4xf32>
    %cst_16 = arith.constant dense<0xFF800000> : vector<16x4xf32>
    %84 = vector.multi_reduction <maximumf>, %83, %cst_16 [1] : vector<16x16x4xf32> to vector<16x4xf32>
    %c5_i32 = arith.constant 5 : i32
    %85 = arith.addi %0, %c5_i32 : i32
    %86 = arith.index_cast %85 : i32 to index
    %87 = memref.load %arg4[%86] : memref<42xi32, #tpu.memory_space<smem>>
    %c5_i32_17 = arith.constant 5 : i32
    %88 = arith.addi %0, %c5_i32_17 : i32
    %89 = arith.index_cast %88 : i32 to index
    %90 = memref.load %arg5[%89] : memref<42xi32, #tpu.memory_space<smem>>
    %91 = vector.broadcast %87 : i32 to vector<16x16x1xi32>
    %92 = arith.cmpi sge, %3, %91 : vector<16x16x1xi32>
    %93 = vector.broadcast %90 : i32 to vector<16x16x1xi32>
    %94 = arith.cmpi slt, %3, %93 : vector<16x16x1xi32>
    %95 = arith.andi %92, %94 : vector<16x16x1xi1>
    %cst_18 = arith.constant 0xFF800000 : f32
    %96 = vector.shape_cast %95 : vector<16x16x1xi1> to vector<16x16x1xi1>
    %97 = vector.broadcast %96 : vector<16x16x1xi1> to vector<16x16x4xi1>
    %98 = vector.broadcast %cst_18 : f32 to vector<16x16x4xf32>
    %99 = arith.select %97, %2, %98 : vector<16x16x4xi1>, vector<16x16x4xf32>
    %cst_19 = arith.constant dense<0xFF800000> : vector<16x4xf32>
    %100 = vector.multi_reduction <maximumf>, %99, %cst_19 [1] : vector<16x16x4xf32> to vector<16x4xf32>
    %c6_i32 = arith.constant 6 : i32
    %101 = arith.addi %0, %c6_i32 : i32
    %102 = arith.index_cast %101 : i32 to index
    %103 = memref.load %arg4[%102] : memref<42xi32, #tpu.memory_space<smem>>
    %c6_i32_20 = arith.constant 6 : i32
    %104 = arith.addi %0, %c6_i32_20 : i32
    %105 = arith.index_cast %104 : i32 to index
    %106 = memref.load %arg5[%105] : memref<42xi32, #tpu.memory_space<smem>>
    %107 = vector.broadcast %103 : i32 to vector<16x16x1xi32>
    %108 = arith.cmpi sge, %3, %107 : vector<16x16x1xi32>
    %109 = vector.broadcast %106 : i32 to vector<16x16x1xi32>
    %110 = arith.cmpi slt, %3, %109 : vector<16x16x1xi32>
    %111 = arith.andi %108, %110 : vector<16x16x1xi1>
    %cst_21 = arith.constant 0xFF800000 : f32
    %112 = vector.shape_cast %111 : vector<16x16x1xi1> to vector<16x16x1xi1>
    %113 = vector.broadcast %112 : vector<16x16x1xi1> to vector<16x16x4xi1>
    %114 = vector.broadcast %cst_21 : f32 to vector<16x16x4xf32>
    %115 = arith.select %113, %2, %114 : vector<16x16x4xi1>, vector<16x16x4xf32>
    %cst_22 = arith.constant dense<0xFF800000> : vector<16x4xf32>
    %116 = vector.multi_reduction <maximumf>, %115, %cst_22 [1] : vector<16x16x4xf32> to vector<16x4xf32>
    %117 = vector.shape_cast %20 : vector<16x4xf32> to vector<1x16x4xf32>
    %118 = vector.shape_cast %36 : vector<16x4xf32> to vector<1x16x4xf32>
    %119 = vector.shape_cast %52 : vector<16x4xf32> to vector<1x16x4xf32>
    %120 = vector.shape_cast %68 : vector<16x4xf32> to vector<1x16x4xf32>
    %121 = vector.shape_cast %84 : vector<16x4xf32> to vector<1x16x4xf32>
    %122 = vector.shape_cast %100 : vector<16x4xf32> to vector<1x16x4xf32>
    %123 = vector.shape_cast %116 : vector<16x4xf32> to vector<1x16x4xf32>
    %124 = tpu.concatenate %117, %118, %119, %120, %121, %122, %123 in 0 : vector<1x16x4xf32>, vector<1x16x4xf32>, vector<1x16x4xf32>, vector<1x16x4xf32>, vector<1x16x4xf32>, vector<1x16x4xf32>, vector<1x16x4xf32> -> vector<7x16x4xf32>
    %c0_i32_23 = arith.constant 0 : i32
    %125 = arith.addi %0, %c0_i32_23 : i32
    %126 = arith.index_cast %125 : i32 to index
    %127 = memref.load %arg2[%126] : memref<42xi32, #tpu.memory_space<smem>>
    %c0_i32_24 = arith.constant 0 : i32
    %128 = arith.addi %0, %c0_i32_24 : i32
    %129 = arith.index_cast %128 : i32 to index
    %130 = memref.load %arg3[%129] : memref<42xi32, #tpu.memory_space<smem>>
    %131 = vector.broadcast %127 : i32 to vector<1x16x1xi32>
    %132 = arith.cmpi sge, %4, %131 : vector<1x16x1xi32>
    %133 = vector.broadcast %130 : i32 to vector<1x16x1xi32>
    %134 = arith.cmpi slt, %4, %133 : vector<1x16x1xi32>
    %135 = arith.andi %132, %134 : vector<1x16x1xi1>
    %cst_25 = arith.constant 0xFF800000 : f32
    %136 = vector.shape_cast %135 : vector<1x16x1xi1> to vector<1x16x1xi1>
    %137 = vector.broadcast %136 : vector<1x16x1xi1> to vector<7x16x4xi1>
    %138 = vector.broadcast %cst_25 : f32 to vector<7x16x4xf32>
    %139 = arith.select %137, %124, %138 : vector<7x16x4xi1>, vector<7x16x4xf32>
    %cst_26 = arith.constant dense<0xFF800000> : vector<7x4xf32>
    %140 = vector.multi_reduction <maximumf>, %139, %cst_26 [1] : vector<7x16x4xf32> to vector<7x4xf32>
    %c1_i32_27 = arith.constant 1 : i32
    %141 = arith.addi %0, %c1_i32_27 : i32
    %142 = arith.index_cast %141 : i32 to index
    %143 = memref.load %arg2[%142] : memref<42xi32, #tpu.memory_space<smem>>
    %c1_i32_28 = arith.constant 1 : i32
    %144 = arith.addi %0, %c1_i32_28 : i32
    %145 = arith.index_cast %144 : i32 to index
    %146 = memref.load %arg3[%145] : memref<42xi32, #tpu.memory_space<smem>>
    %147 = vector.broadcast %143 : i32 to vector<1x16x1xi32>
    %148 = arith.cmpi sge, %4, %147 : vector<1x16x1xi32>
    %149 = vector.broadcast %146 : i32 to vector<1x16x1xi32>
    %150 = arith.cmpi slt, %4, %149 : vector<1x16x1xi32>
    %151 = arith.andi %148, %150 : vector<1x16x1xi1>
    %cst_29 = arith.constant 0xFF800000 : f32
    %152 = vector.shape_cast %151 : vector<1x16x1xi1> to vector<1x16x1xi1>
    %153 = vector.broadcast %152 : vector<1x16x1xi1> to vector<7x16x4xi1>
    %154 = vector.broadcast %cst_29 : f32 to vector<7x16x4xf32>
    %155 = arith.select %153, %124, %154 : vector<7x16x4xi1>, vector<7x16x4xf32>
    %cst_30 = arith.constant dense<0xFF800000> : vector<7x4xf32>
    %156 = vector.multi_reduction <maximumf>, %155, %cst_30 [1] : vector<7x16x4xf32> to vector<7x4xf32>
    %c2_i32_31 = arith.constant 2 : i32
    %157 = arith.addi %0, %c2_i32_31 : i32
    %158 = arith.index_cast %157 : i32 to index
    %159 = memref.load %arg2[%158] : memref<42xi32, #tpu.memory_space<smem>>
    %c2_i32_32 = arith.constant 2 : i32
    %160 = arith.addi %0, %c2_i32_32 : i32
    %161 = arith.index_cast %160 : i32 to index
    %162 = memref.load %arg3[%161] : memref<42xi32, #tpu.memory_space<smem>>
    %163 = vector.broadcast %159 : i32 to vector<1x16x1xi32>
    %164 = arith.cmpi sge, %4, %163 : vector<1x16x1xi32>
    %165 = vector.broadcast %162 : i32 to vector<1x16x1xi32>
    %166 = arith.cmpi slt, %4, %165 : vector<1x16x1xi32>
    %167 = arith.andi %164, %166 : vector<1x16x1xi1>
    %cst_33 = arith.constant 0xFF800000 : f32
    %168 = vector.shape_cast %167 : vector<1x16x1xi1> to vector<1x16x1xi1>
    %169 = vector.broadcast %168 : vector<1x16x1xi1> to vector<7x16x4xi1>
    %170 = vector.broadcast %cst_33 : f32 to vector<7x16x4xf32>
    %171 = arith.select %169, %124, %170 : vector<7x16x4xi1>, vector<7x16x4xf32>
    %cst_34 = arith.constant dense<0xFF800000> : vector<7x4xf32>
    %172 = vector.multi_reduction <maximumf>, %171, %cst_34 [1] : vector<7x16x4xf32> to vector<7x4xf32>
    %c3_i32_35 = arith.constant 3 : i32
    %173 = arith.addi %0, %c3_i32_35 : i32
    %174 = arith.index_cast %173 : i32 to index
    %175 = memref.load %arg2[%174] : memref<42xi32, #tpu.memory_space<smem>>
    %c3_i32_36 = arith.constant 3 : i32
    %176 = arith.addi %0, %c3_i32_36 : i32
    %177 = arith.index_cast %176 : i32 to index
    %178 = memref.load %arg3[%177] : memref<42xi32, #tpu.memory_space<smem>>
    %179 = vector.broadcast %175 : i32 to vector<1x16x1xi32>
    %180 = arith.cmpi sge, %4, %179 : vector<1x16x1xi32>
    %181 = vector.broadcast %178 : i32 to vector<1x16x1xi32>
    %182 = arith.cmpi slt, %4, %181 : vector<1x16x1xi32>
    %183 = arith.andi %180, %182 : vector<1x16x1xi1>
    %cst_37 = arith.constant 0xFF800000 : f32
    %184 = vector.shape_cast %183 : vector<1x16x1xi1> to vector<1x16x1xi1>
    %185 = vector.broadcast %184 : vector<1x16x1xi1> to vector<7x16x4xi1>
    %186 = vector.broadcast %cst_37 : f32 to vector<7x16x4xf32>
    %187 = arith.select %185, %124, %186 : vector<7x16x4xi1>, vector<7x16x4xf32>
    %cst_38 = arith.constant dense<0xFF800000> : vector<7x4xf32>
    %188 = vector.multi_reduction <maximumf>, %187, %cst_38 [1] : vector<7x16x4xf32> to vector<7x4xf32>
    %c4_i32_39 = arith.constant 4 : i32
    %189 = arith.addi %0, %c4_i32_39 : i32
    %190 = arith.index_cast %189 : i32 to index
    %191 = memref.load %arg2[%190] : memref<42xi32, #tpu.memory_space<smem>>
    %c4_i32_40 = arith.constant 4 : i32
    %192 = arith.addi %0, %c4_i32_40 : i32
    %193 = arith.index_cast %192 : i32 to index
    %194 = memref.load %arg3[%193] : memref<42xi32, #tpu.memory_space<smem>>
    %195 = vector.broadcast %191 : i32 to vector<1x16x1xi32>
    %196 = arith.cmpi sge, %4, %195 : vector<1x16x1xi32>
    %197 = vector.broadcast %194 : i32 to vector<1x16x1xi32>
    %198 = arith.cmpi slt, %4, %197 : vector<1x16x1xi32>
    %199 = arith.andi %196, %198 : vector<1x16x1xi1>
    %cst_41 = arith.constant 0xFF800000 : f32
    %200 = vector.shape_cast %199 : vector<1x16x1xi1> to vector<1x16x1xi1>
    %201 = vector.broadcast %200 : vector<1x16x1xi1> to vector<7x16x4xi1>
    %202 = vector.broadcast %cst_41 : f32 to vector<7x16x4xf32>
    %203 = arith.select %201, %124, %202 : vector<7x16x4xi1>, vector<7x16x4xf32>
    %cst_42 = arith.constant dense<0xFF800000> : vector<7x4xf32>
    %204 = vector.multi_reduction <maximumf>, %203, %cst_42 [1] : vector<7x16x4xf32> to vector<7x4xf32>
    %c5_i32_43 = arith.constant 5 : i32
    %205 = arith.addi %0, %c5_i32_43 : i32
    %206 = arith.index_cast %205 : i32 to index
    %207 = memref.load %arg2[%206] : memref<42xi32, #tpu.memory_space<smem>>
    %c5_i32_44 = arith.constant 5 : i32
    %208 = arith.addi %0, %c5_i32_44 : i32
    %209 = arith.index_cast %208 : i32 to index
    %210 = memref.load %arg3[%209] : memref<42xi32, #tpu.memory_space<smem>>
    %211 = vector.broadcast %207 : i32 to vector<1x16x1xi32>
    %212 = arith.cmpi sge, %4, %211 : vector<1x16x1xi32>
    %213 = vector.broadcast %210 : i32 to vector<1x16x1xi32>
    %214 = arith.cmpi slt, %4, %213 : vector<1x16x1xi32>
    %215 = arith.andi %212, %214 : vector<1x16x1xi1>
    %cst_45 = arith.constant 0xFF800000 : f32
    %216 = vector.shape_cast %215 : vector<1x16x1xi1> to vector<1x16x1xi1>
    %217 = vector.broadcast %216 : vector<1x16x1xi1> to vector<7x16x4xi1>
    %218 = vector.broadcast %cst_45 : f32 to vector<7x16x4xf32>
    %219 = arith.select %217, %124, %218 : vector<7x16x4xi1>, vector<7x16x4xf32>
    %cst_46 = arith.constant dense<0xFF800000> : vector<7x4xf32>
    %220 = vector.multi_reduction <maximumf>, %219, %cst_46 [1] : vector<7x16x4xf32> to vector<7x4xf32>
    %c6_i32_47 = arith.constant 6 : i32
    %221 = arith.addi %0, %c6_i32_47 : i32
    %222 = arith.index_cast %221 : i32 to index
    %223 = memref.load %arg2[%222] : memref<42xi32, #tpu.memory_space<smem>>
    %c6_i32_48 = arith.constant 6 : i32
    %224 = arith.addi %0, %c6_i32_48 : i32
    %225 = arith.index_cast %224 : i32 to index
    %226 = memref.load %arg3[%225] : memref<42xi32, #tpu.memory_space<smem>>
    %227 = vector.broadcast %223 : i32 to vector<1x16x1xi32>
    %228 = arith.cmpi sge, %4, %227 : vector<1x16x1xi32>
    %229 = vector.broadcast %226 : i32 to vector<1x16x1xi32>
    %230 = arith.cmpi slt, %4, %229 : vector<1x16x1xi32>
    %231 = arith.andi %228, %230 : vector<1x16x1xi1>
    %cst_49 = arith.constant 0xFF800000 : f32
    %232 = vector.shape_cast %231 : vector<1x16x1xi1> to vector<1x16x1xi1>
    %233 = vector.broadcast %232 : vector<1x16x1xi1> to vector<7x16x4xi1>
    %234 = vector.broadcast %cst_49 : f32 to vector<7x16x4xf32>
    %235 = arith.select %233, %124, %234 : vector<7x16x4xi1>, vector<7x16x4xf32>
    %cst_50 = arith.constant dense<0xFF800000> : vector<7x4xf32>
    %236 = vector.multi_reduction <maximumf>, %235, %cst_50 [1] : vector<7x16x4xf32> to vector<7x4xf32>
    %237 = vector.shape_cast %140 : vector<7x4xf32> to vector<1x7x4xf32>
    %238 = vector.shape_cast %156 : vector<7x4xf32> to vector<1x7x4xf32>
    %239 = vector.shape_cast %172 : vector<7x4xf32> to vector<1x7x4xf32>
    %240 = vector.shape_cast %188 : vector<7x4xf32> to vector<1x7x4xf32>
    %241 = vector.shape_cast %204 : vector<7x4xf32> to vector<1x7x4xf32>
    %242 = vector.shape_cast %220 : vector<7x4xf32> to vector<1x7x4xf32>
    %243 = vector.shape_cast %236 : vector<7x4xf32> to vector<1x7x4xf32>
    %244 = tpu.concatenate %237, %238, %239, %240, %241, %242, %243 in 0 : vector<1x7x4xf32>, vector<1x7x4xf32>, vector<1x7x4xf32>, vector<1x7x4xf32>, vector<1x7x4xf32>, vector<1x7x4xf32>, vector<1x7x4xf32> -> vector<7x7x4xf32>
    %cst_51 = arith.constant 0xFF800000 : f32
    %245 = vector.broadcast %cst_51 : f32 to vector<7x7x4xf32>
    %246 = arith.cmpf oeq, %244, %245 : vector<7x7x4xf32>
    %cst_52 = arith.constant 0.000000e+00 : f32
    %247 = vector.broadcast %cst_52 : f32 to vector<7x7x4xf32>
    %248 = arith.select %246, %247, %244 : vector<7x7x4xi1>, vector<7x7x4xf32>
    %249 = arith.truncf %248 : vector<7x7x4xf32> to vector<7x7x4xbf16>
    %c0_53 = arith.constant 0 : index
    %c0_54 = arith.constant 0 : index
    %c0_55 = arith.constant 0 : index
    %c0_56 = arith.constant 0 : index
    %250 = vector.load %arg7[%c0_53, %c0_54, %c0_55, %c0_56] : memref<1x7x7x4xbf16, #tpu.memory_space<vmem>>, vector<1x7x7x4xbf16>
    %251 = vector.shape_cast %250 : vector<1x7x7x4xbf16> to vector<7x7x4xbf16>
    %252 = vector.shape_cast %249 : vector<7x7x4xbf16> to vector<1x7x7x4xbf16>
    tpu.vector_store %arg7[%c0_53, %c0_54, %c0_55, %c0_56], %252 {strides = array<i32>} : memref<1x7x7x4xbf16, #tpu.memory_space<vmem>>, vector<1x7x7x4xbf16>,
    return
  }
  func.func @transform_0(%arg0: i32, %arg1: memref<6xi32, #tpu.memory_space<smem>>, %arg2: memref<42xi32, #tpu.memory_space<smem>>, %arg3: memref<42xi32, #tpu.memory_space<smem>>, %arg4: memref<42xi32, #tpu.memory_space<smem>>, %arg5: memref<42xi32, #tpu.memory_space<smem>>) -> (i32, i32, i32, i32) {
    %0 = arith.index_cast %arg0 : i32 to index
    %1 = memref.load %arg1[%0] : memref<6xi32, #tpu.memory_space<smem>>
    %c0_i32 = arith.constant 0 : i32
    %c0_i32_0 = arith.constant 0 : i32
    %c0_i32_1 = arith.constant 0 : i32
    %c0_i32_2 = arith.constant 0 : i32
    return %1, %c0_i32, %c0_i32_0, %c0_i32_1 : i32, i32, i32, i32
  }
  func.func @transform_1(%arg0: i32, %arg1: memref<6xi32, #tpu.memory_space<smem>>, %arg2: memref<42xi32, #tpu.memory_space<smem>>, %arg3: memref<42xi32, #tpu.memory_space<smem>>, %arg4: memref<42xi32, #tpu.memory_space<smem>>, %arg5: memref<42xi32, #tpu.memory_space<smem>>) -> (i32, i32, i32, i32) {
    %c0_i32 = arith.constant 0 : i32
    %c0_i32_0 = arith.constant 0 : i32
    %c0_i32_1 = arith.constant 0 : i32
    %c0_i32_2 = arith.constant 0 : i32
    return %arg0, %c0_i32, %c0_i32_0, %c0_i32_1 : i32, i32, i32, i32
  }
}

</mosaic_0001>

<llo_original>
// kernel: tpu_custom_call.1
$region0: #{tpu_custom_call.1}
  #allocation0 [shape = 'u32[]', space=smem, size = 0x4, offset = 0x4, fixed_abs, tag = 'smem constant byte address 0x4 - core index']
  #allocation1 [shape = 'u32[144,128]{1,0:T(1,128)}', space=vmem, size = 0x12000, scoped, tag = 'internal scratch']
  #allocation2 [shape = 's32[1]{0}', space=sflag, size = 0x4, scoped, tag = 'scoped memory for tpu_custom_call.1']
  #allocation3 [shape = 'u8[512]{0}', space=smem, size = 0x200, scoped, tag = 'prefetched SMEM operand 0']
  #allocation4 [shape = 'u8[512]{0}', space=smem, size = 0x200, scoped, tag = 'prefetched SMEM operand 1']
  #allocation5 [shape = 'u8[512]{0}', space=smem, size = 0x200, scoped, tag = 'prefetched SMEM operand 2']
  #allocation6 [shape = 'u8[512]{0}', space=smem, size = 0x200, scoped, tag = 'prefetched SMEM operand 3']
  #allocation7 [shape = 'u8[512]{0}', space=smem, size = 0x200, scoped, tag = 'prefetched SMEM operand 4']
  %s0 = inlined_call_operand.vmem [shape: s32[6], index: 0, kind: input, shape index: {}]
  %s1 = inlined_call_operand.vmem [shape: s32[42], index: 1, kind: input, shape index: {}]
  %s2 = inlined_call_operand.vmem [shape: s32[42], index: 2, kind: input, shape index: {}]
  %s3 = inlined_call_operand.vmem [shape: s32[42], index: 3, kind: input, shape index: {}]
  %s4 = inlined_call_operand.vmem [shape: s32[42], index: 4, kind: input, shape index: {}]
  %s5 = inlined_call_operand.vmem [shape: f32[2,16,16,4], index: 5, kind: input, shape index: {}]
  %s6 = inlined_call_operand.vmem [shape: bf16[6,7,7,4], index: 6, kind: output, shape index: {}]
  %s7 = sld [smem:[#allocation0]]
  $region37: #{tpu_custom_call.1} parent=0
    _
  %s9 = ssub.s32 1, %s7
  %s10 = scalar_select 0, %s9, %s7
  %s11 = sshll.u32 %s0, 4
  %s12 = int_to_ptr.vmem [resolvable:$true] %s11
  %14 = dma.vmem_to_smem %s12, 16, [#allocation3], [#allocation2]
  %s15 = sshll.u32 %s1, 4
  %s16 = int_to_ptr.vmem [resolvable:$true] %s15
  %18 = dma.vmem_to_smem %s16, 16, [#allocation4], [#allocation2]
  %s19 = sshll.u32 %s2, 4
  %s20 = int_to_ptr.vmem [resolvable:$true] %s19
  %22 = dma.vmem_to_smem %s20, 16, [#allocation5], [#allocation2]
  %s23 = sshll.u32 %s3, 4
  %s24 = int_to_ptr.vmem [resolvable:$true] %s23
  %26 = dma.vmem_to_smem %s24, 16, [#allocation6], [#allocation2]
  %s27 = sshll.u32 %s4, 4
  %s28 = int_to_ptr.vmem [resolvable:$true] %s27
  %30 = dma.vmem_to_smem %s28, 16, [#allocation7], [#allocation2]
  %31 = dma.done [#allocation2], 80
  %32 = sfence
  loop: start=0, step=1, limit=8
  $region2: #{tpu_custom_call.1} parent=0 // loop_pre_header
    _
  $region3: #{tpu_custom_call.1} parent=0 // loop_header
    %s34 = sphi 0, %s38
    %p35 = scmp.ge.s32.totalorder %s34, 8
    %s46 = sphi 0, %s48
    %s49 = sphi 0, %s46
    %s50 = sphi 0, %s49
    %s66 = sphi 0, %s50
    %s72 = sphi 0, %s74
    %s75 = sphi 0, %s72
    %s76 = sphi 0, %s75
    %s92 = sphi 0, %s76
  $region4: #{tpu_custom_call.1} parent=0 // loop_header_branch
    %37 = sbr.rel (%p35) target = $region8
  $region5: #{tpu_custom_call.1} parent=0 // loop_body
    %s39 = ssub.s32 %s34, 1
    %s40 = ssub.s32 %s34, 2
    %s41 = sadd.s32 %s34, 1
    %s42 = sld [smem:[#allocation3 + %s34]]
    %s43 = sld [smem:[#allocation3 + %s41]]
    %s44 = ssub.s32 %s42, %s43
    %p45 = scmp.eq.s32.totalorder %s44, 0
    %s47 = sadd.s32 %s46, 1
    %s48 = scalar_select %p45, %s46, %s47
    %p51 = pneg %p45
    %p52 = scmp.eq.s32.totalorder %s34, 5
    %p53 = por %p51, %p52
    %p54 = scmp.ne.s32.totalorder %s46, %s49
    %p55 = scmp.eq.s32.totalorder %s34, 0
    %p56 = por %p54, %p55
    %p57 = scmp.ne.s32.totalorder %s46, %s49
    %p58 = scmp.eq.s32.totalorder %s39, 5
    %p59 = por %p57, %p58
    %p60 = scmp.ne.s32.totalorder %s49, %s50
    %p61 = scmp.eq.s32.totalorder %s39, 0
    %p62 = por %p60, %p61
    %p63 = scmp.ne.s32.totalorder %s49, %s50
    %p64 = scmp.eq.s32.totalorder %s40, 5
    %p65 = por %p63, %p64
    %p67 = scmp.ne.s32.totalorder %s50, %s66
    %p68 = scmp.eq.s32.totalorder %s40, 0
    %p69 = por %p67, %p68
    %s70 = ssub.s32 %s34, %s41
    %p71 = scmp.eq.s32.totalorder %s70, 0
    %s73 = sadd.s32 %s72, 1
    %s74 = scalar_select %p71, %s72, %s73
    %p77 = pneg %p71
    %p78 = scmp.eq.s32.totalorder %s34, 5
    %p79 = por %p77, %p78
    %p80 = scmp.ne.s32.totalorder %s72, %s75
    %p81 = scmp.eq.s32.totalorder %s34, 0
    %p82 = por %p80, %p81
    %p83 = scmp.ne.s32.totalorder %s72, %s75
    %p84 = scmp.eq.s32.totalorder %s39, 5
    %p85 = por %p83, %p84
    %p86 = scmp.ne.s32.totalorder %s75, %s76
    %p87 = scmp.eq.s32.totalorder %s39, 0
    %p88 = por %p86, %p87
    %p89 = scmp.ne.s32.totalorder %s75, %s76
    %p90 = scmp.eq.s32.totalorder %s40, 5
    %p91 = por %p89, %p90
    %p93 = scmp.ne.s32.totalorder %s76, %s92
    %p94 = scmp.eq.s32.totalorder %s40, 0
    %p95 = por %p93, %p94
    %p96 = scmp.le.s32.totalorder 1, %s34
    %p97 = scmp.lt.s32.totalorder %s34, 7
    %p98 = pnand %p96, %p97
    %p99 = pneg %p98
    // Predicated region
    $region9: #{tpu_custom_call.1} parent=5 // pred_check
      _
    $region10: #{tpu_custom_call.1} parent=5 // pred_check_branch
      %101 = sbr.rel (%p98) target = $region12
    $region11: #{tpu_custom_call.1} parent=5 // pred_region
      %s102 = ssub.s32 %s34, 1
    $region12: #{tpu_custom_call.1} parent=5 // pred_fallthru
      _
    %p103 = scmp.lt.s32.totalorder %s34, 6
    // Predicated region
    $region13: #{tpu_custom_call.1} parent=5 // pred_check
      %p104 = pneg %p103
    $region14: #{tpu_custom_call.1} parent=5 // pred_check_branch
      %106 = sbr.rel (%p104) target = $region16
    $region15: #{tpu_custom_call.1} parent=5 // pred_region
      // Predicated region
      $region17: #{tpu_custom_call.1} parent=15 // pred_check
        %p107 = pneg %p56
      $region18: #{tpu_custom_call.1} parent=15 // pred_check_branch
        %109 = sbr.rel (%p107) target = $region20
      $region19: #{tpu_custom_call.1} parent=15 // pred_region
        %s110 = sld [smem:[#allocation3 + %s34]]
        %p111 = scmp.lt.s32.totalorder %s110, 1
        %s112 = scalar_select %p111, %s110, 1
        %s113 = smul.addr %s112, 32
        %s114 = smul.addr %s113, 8
        %s115 = scalar_lea.vmem %s5, %s114
        %s116 = sld [smem:[#allocation3 + %s34]]
      $region20: #{tpu_custom_call.1} parent=15 // pred_fallthru
        _
    $region16: #{tpu_custom_call.1} parent=5 // pred_fallthru
      _
    %p117 = scmp.le.s32.totalorder 1, %s34
    %p118 = scmp.lt.s32.totalorder %s34, 7
    %p119 = pnand %p117, %p118
    %p120 = pneg %p119
    // Predicated region
    $region21: #{tpu_custom_call.1} parent=5 // pred_check
      _
    $region22: #{tpu_custom_call.1} parent=5 // pred_check_branch
      %122 = sbr.rel (%p119) target = $region24
    $region23: #{tpu_custom_call.1} parent=5 // pred_region
      %s123 = ssub.s32 %s34, 1
      %s124 = sld [smem:[#allocation3 + %s39]]
      %p125 = scmp.lt.s32.totalorder %s124, 1
      %s126 = scalar_select %p125, %s124, 1
      %s127 = smul.addr %s126, 32
      %s128 = smul.addr %s127, 8
      %s129 = scalar_lea.vmem %s5, %s128
      %p130 = pneg %p62
      %p131 = pneg %p59
      %p132 = pneg %p88
      %p133 = pneg %p85
      %p134 = scmp.lt.s32.totalorder %s39, 5
      %s135 = scalar_select %p134, %s39, 5
      %s136 = smul.addr %s135, 7
      %s137 = smul.addr %s136, 4
      %s138 = scalar_lea.vmem %s6, %s137
      %s139 = sld [smem:[#allocation3 + %s39]]
      %p140 = scmp.lt.s32.totalorder %s139, 1
      %s141 = scalar_select %p140, %s139, 1
      %s142 = smul.addr %s141, 32
      %s143 = smul.addr %s142, 8
      %s144 = scalar_lea.vmem %s5, %s143
      %s145 = sld [smem:[#allocation3 + %s39]]
      %p146 = scmp.lt.s32.totalorder %s39, 5
      %s147 = scalar_select %p146, %s39, 5
      %s148 = smul.addr %s147, 7
      %s149 = smul.addr %s148, 4
      %s150 = scalar_lea.vmem %s6, %s149
      %s151 = smul.u32 %s39, 7
      %v152 = vld [vmem:[%s144] sm:$0xff]
      %v153 = vld [vmem:[%s144 + $0x8] sm:$0xff]
      %v154 = vld [vmem:[%s144 + $0x10] sm:$0xff]
      %v155 = vld [vmem:[%s144 + $0x18] sm:$0xff]
      %v156 = vld [vmem:[%s144 + $0x20] sm:$0xff]
      %v157 = vld [vmem:[%s144 + $0x28] sm:$0xff]
      %v158 = vld [vmem:[%s144 + $0x30] sm:$0xff]
      %v159 = vld [vmem:[%s144 + $0x38] sm:$0xff]
      %v160 = vld [vmem:[%s144 + $0x40] sm:$0xff]
      %v161 = vld [vmem:[%s144 + $0x48] sm:$0xff]
      %v162 = vld [vmem:[%s144 + $0x50] sm:$0xff]
      %v163 = vld [vmem:[%s144 + $0x58] sm:$0xff]
      %v164 = vld [vmem:[%s144 + $0x60] sm:$0xff]
      %v165 = vld [vmem:[%s144 + $0x68] sm:$0xff]
      %v166 = vld [vmem:[%s144 + $0x70] sm:$0xff]
      %v167 = vld [vmem:[%s144 + $0x78] sm:$0xff]
      %v168 = vld [vmem:[%s144 + $0x80] sm:$0xff]
      %v169 = vld [vmem:[%s144 + $0x88] sm:$0xff]
      %v170 = vld [vmem:[%s144 + $0x90] sm:$0xff]
      %v171 = vld [vmem:[%s144 + $0x98] sm:$0xff]
      %v172 = vld [vmem:[%s144 + $0xa0] sm:$0xff]
      %v173 = vld [vmem:[%s144 + $0xa8] sm:$0xff]
      %v174 = vld [vmem:[%s144 + $0xb0] sm:$0xff]
      %v175 = vld [vmem:[%s144 + $0xb8] sm:$0xff]
      %v176 = vld [vmem:[%s144 + $0xc0] sm:$0xff]
      %v177 = vld [vmem:[%s144 + $0xc8] sm:$0xff]
      %v178 = vld [vmem:[%s144 + $0xd0] sm:$0xff]
      %v179 = vld [vmem:[%s144 + $0xd8] sm:$0xff]
      %v180 = vld [vmem:[%s144 + $0xe0] sm:$0xff]
      %v181 = vld [vmem:[%s144 + $0xe8] sm:$0xff]
      %v182 = vld [vmem:[%s144 + $0xf0] sm:$0xff]
      %v183 = vld [vmem:[%s144 + $0xf8] sm:$0xff]
      %v184 = vlaneseq
      %v185 = vshrl.u32 %v184, 7
      %v186 = vadd.s32 %v185, 8
      %s187 = sld [smem:[#allocation6 + %s151]]
      %s188 = sld [smem:[#allocation7 + %s151]]
      %v189 = vstv %s187
      %vm190 = vcmp.ge.s32.totalorder %v185, %v189
      %vm191 = vcmp.ge.s32.totalorder %v186, %v189
      %v192 = vstv %s188
      %vm193 = vcmp.lt.s32.totalorder %v185, %v192
      %vm194 = vcmp.lt.s32.totalorder %v186, %v192
      %vm195 = vmand %vm190, %vm193
      %vm196 = vmand %vm191, %vm194
      %v197 = vsel %vm195, 1, 0
      %v198 = vsel %vm196, 1, 0
      %vm199 = vcmp.eq.s32.totalorder %v197, 1
      %vm200 = vcmp.eq.s32.totalorder %v198, 1
      %v201 = vsel %vm199, %v152, -inf
      %v202 = vsel %vm200, %v153, -inf
      %v203 = vsel %vm199, %v154, -inf
      %v204 = vsel %vm200, %v155, -inf
      %v205 = vsel %vm199, %v156, -inf
      %v206 = vsel %vm200, %v157, -inf
      %v207 = vsel %vm199, %v158, -inf
      %v208 = vsel %vm200, %v159, -inf
      %v209 = vsel %vm199, %v160, -inf
      %v210 = vsel %vm200, %v161, -inf
      %v211 = vsel %vm199, %v162, -inf
      %v212 = vsel %vm200, %v163, -inf
      %v213 = vsel %vm199, %v164, -inf
      %v214 = vsel %vm200, %v165, -inf
      %v215 = vsel %vm199, %v166, -inf
      %v216 = vsel %vm200, %v167, -inf
      %v217 = vsel %vm199, %v168, -inf
      %v218 = vsel %vm200, %v169, -inf
      %v219 = vsel %vm199, %v170, -inf
      %v220 = vsel %vm200, %v171, -inf
      %v221 = vsel %vm199, %v172, -inf
      %v222 = vsel %vm200, %v173, -inf
      %v223 = vsel %vm199, %v174, -inf
      %v224 = vsel %vm200, %v175, -inf
      %v225 = vsel %vm199, %v176, -inf
      %v226 = vsel %vm200, %v177, -inf
      %v227 = vsel %vm199, %v178, -inf
      %v228 = vsel %vm200, %v179, -inf
      %v229 = vsel %vm199, %v180, -inf
      %v230 = vsel %vm200, %v181, -inf
      %v231 = vsel %vm199, %v182, -inf
      %v232 = vsel %vm200, %v183, -inf
      %vm233 = vcmask 31744
      %v234 = vsel %vm233, %v201, -inf
      %v235 = vsel %vm233, %v202, -inf
      %v236 = vmax.f32 %v234, %v235
      %v237 = vrot.slane %v236, 4
      %v238 = vmax.f32 %v236, %v237
      %v239 = vrot.slane %v238, 2
      %v240 = vmax.f32 %v238, %v239
      %v241 = vrot.slane %v240, 1
      %v242 = vmax.f32 %v240, %v241
      %v243 = vsel %vm233, %v203, -inf
      %v244 = vsel %vm233, %v204, -inf
      %v245 = vmax.f32 %v243, %v244
      %v246 = vrot.slane %v245, 4
      %v247 = vmax.f32 %v245, %v246
      %v248 = vrot.slane %v247, 2
      %v249 = vmax.f32 %v247, %v248
      %v250 = vrot.slane %v249, 1
      %v251 = vmax.f32 %v249, %v250
      %v252 = vsel %vm233, %v205, -inf
      %v253 = vsel %vm233, %v206, -inf
      %v254 = vmax.f32 %v252, %v253
      %v255 = vrot.slane %v254, 4
      %v256 = vmax.f32 %v254, %v255
      %v257 = vrot.slane %v256, 2
      %v258 = vmax.f32 %v256, %v257
      %v259 = vrot.slane %v258, 1
      %v260 = vmax.f32 %v258, %v259
      %v261 = vsel %vm233, %v207, -inf
      %v262 = vsel %vm233, %v208, -inf
      %v263 = vmax.f32 %v261, %v262
      %v264 = vrot.slane %v263, 4
      %v265 = vmax.f32 %v263, %v264
      %v266 = vrot.slane %v265, 2
      %v267 = vmax.f32 %v265, %v266
      %v268 = vrot.slane %v267, 1
      %v269 = vmax.f32 %v267, %v268
      %v270 = vsel %vm233, %v209, -inf
      %v271 = vsel %vm233, %v210, -inf
      %v272 = vmax.f32 %v270, %v271
      %v273 = vrot.slane %v272, 4
      %v274 = vmax.f32 %v272, %v273
      %v275 = vrot.slane %v274, 2
      %v276 = vmax.f32 %v274, %v275
      %v277 = vrot.slane %v276, 1
      %v278 = vmax.f32 %v276, %v277
      %v279 = vsel %vm233, %v211, -inf
      %v280 = vsel %vm233, %v212, -inf
      %v281 = vmax.f32 %v279, %v280
      %v282 = vrot.slane %v281, 4
      %v283 = vmax.f32 %v281, %v282
      %v284 = vrot.slane %v283, 2
      %v285 = vmax.f32 %v283, %v284
      %v286 = vrot.slane %v285, 1
      %v287 = vmax.f32 %v285, %v286
      %v288 = vsel %vm233, %v213, -inf
      %v289 = vsel %vm233, %v214, -inf
      %v290 = vmax.f32 %v288, %v289
      %v291 = vrot.slane %v290, 4
      %v292 = vmax.f32 %v290, %v291
      %v293 = vrot.slane %v292, 2
      %v294 = vmax.f32 %v292, %v293
      %v295 = vrot.slane %v294, 1
      %v296 = vmax.f32 %v294, %v295
      %v297 = vsel %vm233, %v215, -inf
      %v298 = vsel %vm233, %v216, -inf
      %v299 = vmax.f32 %v297, %v298
      %v300 = vrot.slane %v299, 4
      %v301 = vmax.f32 %v299, %v300
      %v302 = vrot.slane %v301, 2
      %v303 = vmax.f32 %v301, %v302
      %v304 = vrot.slane %v303, 1
      %v305 = vmax.f32 %v303, %v304
      %v306 = vsel %vm233, %v217, -inf
      %v307 = vsel %vm233, %v218, -inf
      %v308 = vmax.f32 %v306, %v307
      %v309 = vrot.slane %v308, 4
      %v310 = vmax.f32 %v308, %v309
      %v311 = vrot.slane %v310, 2
      %v312 = vmax.f32 %v310, %v311
      %v313 = vrot.slane %v312, 1
      %v314 = vmax.f32 %v312, %v313
      %v315 = vsel %vm233, %v219, -inf
      %v316 = vsel %vm233, %v220, -inf
      %v317 = vmax.f32 %v315, %v316
      %v318 = vrot.slane %v317, 4
      %v319 = vmax.f32 %v317, %v318
      %v320 = vrot.slane %v319, 2
      %v321 = vmax.f32 %v319, %v320
      %v322 = vrot.slane %v321, 1
      %v323 = vmax.f32 %v321, %v322
      %v324 = vsel %vm233, %v221, -inf
      %v325 = vsel %vm233, %v222, -inf
      %v326 = vmax.f32 %v324, %v325
      %v327 = vrot.slane %v326, 4
      %v328 = vmax.f32 %v326, %v327
      %v329 = vrot.slane %v328, 2
      %v330 = vmax.f32 %v328, %v329
      %v331 = vrot.slane %v330, 1
      %v332 = vmax.f32 %v330, %v331
      %v333 = vsel %vm233, %v223, -inf
      %v334 = vsel %vm233, %v224, -inf
      %v335 = vmax.f32 %v333, %v334
      %v336 = vrot.slane %v335, 4
      %v337 = vmax.f32 %v335, %v336
      %v338 = vrot.slane %v337, 2
      %v339 = vmax.f32 %v337, %v338
      %v340 = vrot.slane %v339, 1
      %v341 = vmax.f32 %v339, %v340
      %v342 = vsel %vm233, %v225, -inf
      %v343 = vsel %vm233, %v226, -inf
      %v344 = vmax.f32 %v342, %v343
      %v345 = vrot.slane %v344, 4
      %v346 = vmax.f32 %v344, %v345
      %v347 = vrot.slane %v346, 2
      %v348 = vmax.f32 %v346, %v347
      %v349 = vrot.slane %v348, 1
      %v350 = vmax.f32 %v348, %v349
      %v351 = vsel %vm233, %v227, -inf
      %v352 = vsel %vm233, %v228, -inf
      %v353 = vmax.f32 %v351, %v352
      %v354 = vrot.slane %v353, 4
      %v355 = vmax.f32 %v353, %v354
      %v356 = vrot.slane %v355, 2
      %v357 = vmax.f32 %v355, %v356
      %v358 = vrot.slane %v357, 1
      %v359 = vmax.f32 %v357, %v358
      %v360 = vsel %vm233, %v229, -inf
      %v361 = vsel %vm233, %v230, -inf
      %v362 = vmax.f32 %v360, %v361
      %v363 = vrot.slane %v362, 4
      %v364 = vmax.f32 %v362, %v363
      %v365 = vrot.slane %v364, 2
      %v366 = vmax.f32 %v364, %v365
      %v367 = vrot.slane %v366, 1
      %v368 = vmax.f32 %v366, %v367
      %v369 = vsel %vm233, %v231, -inf
      %v370 = vsel %vm233, %v232, -inf
      %v371 = vmax.f32 %v369, %v370
      %v372 = vrot.slane %v371, 4
      %v373 = vmax.f32 %v371, %v372
      %v374 = vrot.slane %v373, 2
      %v375 = vmax.f32 %v373, %v374
      %v376 = vrot.slane %v375, 1
      %v377 = vmax.f32 %v375, %v376
      %s378 = sadd.s32 %s151, 1
      %s379 = sld [smem:[#allocation6 + %s378]]
      %s380 = sld [smem:[#allocation7 + %s378]]
      %v381 = vstv %s379
      %vm382 = vcmp.ge.s32.totalorder %v185, %v381
      %vm383 = vcmp.ge.s32.totalorder %v186, %v381
      %v384 = vstv %s380
      %vm385 = vcmp.lt.s32.totalorder %v185, %v384
      %vm386 = vcmp.lt.s32.totalorder %v186, %v384
      %vm387 = vmand %vm382, %vm385
      %vm388 = vmand %vm383, %vm386
      %v389 = vsel %vm387, 1, 0
      %v390 = vsel %vm388, 1, 0
      %vm391 = vcmp.eq.s32.totalorder %v389, 1
      %vm392 = vcmp.eq.s32.totalorder %v390, 1
      %v393 = vsel %vm391, %v152, -inf
      %v394 = vsel %vm392, %v153, -inf
      %v395 = vsel %vm391, %v154, -inf
      %v396 = vsel %vm392, %v155, -inf
      %v397 = vsel %vm391, %v156, -inf
      %v398 = vsel %vm392, %v157, -inf
      %v399 = vsel %vm391, %v158, -inf
      %v400 = vsel %vm392, %v159, -inf
      %v401 = vsel %vm391, %v160, -inf
      %v402 = vsel %vm392, %v161, -inf
      %v403 = vsel %vm391, %v162, -inf
      %v404 = vsel %vm392, %v163, -inf
      %v405 = vsel %vm391, %v164, -inf
      %v406 = vsel %vm392, %v165, -inf
      %v407 = vsel %vm391, %v166, -inf
      %v408 = vsel %vm392, %v167, -inf
      %v409 = vsel %vm391, %v168, -inf
      %v410 = vsel %vm392, %v169, -inf
      %v411 = vsel %vm391, %v170, -inf
      %v412 = vsel %vm392, %v171, -inf
      %v413 = vsel %vm391, %v172, -inf
      %v414 = vsel %vm392, %v173, -inf
      %v415 = vsel %vm391, %v174, -inf
      %v416 = vsel %vm392, %v175, -inf
      %v417 = vsel %vm391, %v176, -inf
      %v418 = vsel %vm392, %v177, -inf
      %v419 = vsel %vm391, %v178, -inf
      %v420 = vsel %vm392, %v179, -inf
      %v421 = vsel %vm391, %v180, -inf
      %v422 = vsel %vm392, %v181, -inf
      %v423 = vsel %vm391, %v182, -inf
      %v424 = vsel %vm392, %v183, -inf
      %v425 = vsel %vm233, %v393, -inf
      %v426 = vsel %vm233, %v394, -inf
      %v427 = vmax.f32 %v425, %v426
      %v428 = vrot.slane %v427, 4
      %v429 = vmax.f32 %v427, %v428
      %v430 = vrot.slane %v429, 2
      %v431 = vmax.f32 %v429, %v430
      %v432 = vrot.slane %v431, 1
      %v433 = vmax.f32 %v431, %v432
      %v434 = vsel %vm233, %v395, -inf
      %v435 = vsel %vm233, %v396, -inf
      %v436 = vmax.f32 %v434, %v435
      %v437 = vrot.slane %v436, 4
      %v438 = vmax.f32 %v436, %v437
      %v439 = vrot.slane %v438, 2
      %v440 = vmax.f32 %v438, %v439
      %v441 = vrot.slane %v440, 1
      %v442 = vmax.f32 %v440, %v441
      %v443 = vsel %vm233, %v397, -inf
      %v444 = vsel %vm233, %v398, -inf
      %v445 = vmax.f32 %v443, %v444
      %v446 = vrot.slane %v445, 4
      %v447 = vmax.f32 %v445, %v446
      %v448 = vrot.slane %v447, 2
      %v449 = vmax.f32 %v447, %v448
      %v450 = vrot.slane %v449, 1
      %v451 = vmax.f32 %v449, %v450
      %v452 = vsel %vm233, %v399, -inf
      %v453 = vsel %vm233, %v400, -inf
      %v454 = vmax.f32 %v452, %v453
      %v455 = vrot.slane %v454, 4
      %v456 = vmax.f32 %v454, %v455
      %v457 = vrot.slane %v456, 2
      %v458 = vmax.f32 %v456, %v457
      %v459 = vrot.slane %v458, 1
      %v460 = vmax.f32 %v458, %v459
      %v461 = vsel %vm233, %v401, -inf
      %v462 = vsel %vm233, %v402, -inf
      %v463 = vmax.f32 %v461, %v462
      %v464 = vrot.slane %v463, 4
      %v465 = vmax.f32 %v463, %v464
      %v466 = vrot.slane %v465, 2
      %v467 = vmax.f32 %v465, %v466
      %v468 = vrot.slane %v467, 1
      %v469 = vmax.f32 %v467, %v468
      %v470 = vsel %vm233, %v403, -inf
      %v471 = vsel %vm233, %v404, -inf
      %v472 = vmax.f32 %v470, %v471
      %v473 = vrot.slane %v472, 4
      %v474 = vmax.f32 %v472, %v473
      %v475 = vrot.slane %v474, 2
      %v476 = vmax.f32 %v474, %v475
      %v477 = vrot.slane %v476, 1
      %v478 = vmax.f32 %v476, %v477
      %v479 = vsel %vm233, %v405, -inf
      %v480 = vsel %vm233, %v406, -inf
      %v481 = vmax.f32 %v479, %v480
      %v482 = vrot.slane %v481, 4
      %v483 = vmax.f32 %v481, %v482
      %v484 = vrot.slane %v483, 2
      %v485 = vmax.f32 %v483, %v484
      %v486 = vrot.slane %v485, 1
      %v487 = vmax.f32 %v485, %v486
      %v488 = vsel %vm233, %v407, -inf
      %v489 = vsel %vm233, %v408, -inf
      %v490 = vmax.f32 %v488, %v489
      %v491 = vrot.slane %v490, 4
      %v492 = vmax.f32 %v490, %v491
      %v493 = vrot.slane %v492, 2
      %v494 = vmax.f32 %v492, %v493
      %v495 = vrot.slane %v494, 1
      %v496 = vmax.f32 %v494, %v495
      %v497 = vsel %vm233, %v409, -inf
      %v498 = vsel %vm233, %v410, -inf
      %v499 = vmax.f32 %v497, %v498
      %v500 = vrot.slane %v499, 4
      %v501 = vmax.f32 %v499, %v500
      %v502 = vrot.slane %v501, 2
      %v503 = vmax.f32 %v501, %v502
      %v504 = vrot.slane %v503, 1
      %v505 = vmax.f32 %v503, %v504
      %v506 = vsel %vm233, %v411, -inf
      %v507 = vsel %vm233, %v412, -inf
      %v508 = vmax.f32 %v506, %v507
      %v509 = vrot.slane %v508, 4
      %v510 = vmax.f32 %v508, %v509
      %v511 = vrot.slane %v510, 2
      %v512 = vmax.f32 %v510, %v511
      %v513 = vrot.slane %v512, 1
      %v514 = vmax.f32 %v512, %v513
      %v515 = vsel %vm233, %v413, -inf
      %v516 = vsel %vm233, %v414, -inf
      %v517 = vmax.f32 %v515, %v516
      %v518 = vrot.slane %v517, 4
      %v519 = vmax.f32 %v517, %v518
      %v520 = vrot.slane %v519, 2
      %v521 = vmax.f32 %v519, %v520
      %v522 = vrot.slane %v521, 1
      %v523 = vmax.f32 %v521, %v522
      %v524 = vsel %vm233, %v415, -inf
      %v525 = vsel %vm233, %v416, -inf
      %v526 = vmax.f32 %v524, %v525
      %v527 = vrot.slane %v526, 4
      %v528 = vmax.f32 %v526, %v527
      %v529 = vrot.slane %v528, 2
      %v530 = vmax.f32 %v528, %v529
      %v531 = vrot.slane %v530, 1
      %v532 = vmax.f32 %v530, %v531
      %v533 = vsel %vm233, %v417, -inf
      %v534 = vsel %vm233, %v418, -inf
      %v535 = vmax.f32 %v533, %v534
      %v536 = vrot.slane %v535, 4
      %v537 = vmax.f32 %v535, %v536
      %v538 = vrot.slane %v537, 2
      %v539 = vmax.f32 %v537, %v538
      %v540 = vrot.slane %v539, 1
      %v541 = vmax.f32 %v539, %v540
      %v542 = vsel %vm233, %v419, -inf
      %v543 = vsel %vm233, %v420, -inf
      %v544 = vmax.f32 %v542, %v543
      %v545 = vrot.slane %v544, 4
      %v546 = vmax.f32 %v544, %v545
      %v547 = vrot.slane %v546, 2
      %v548 = vmax.f32 %v546, %v547
      %v549 = vrot.slane %v548, 1
      %v550 = vmax.f32 %v548, %v549
      %v551 = vsel %vm233, %v421, -inf
      %v552 = vsel %vm233, %v422, -inf
      %v553 = vmax.f32 %v551, %v552
      %v554 = vrot.slane %v553, 4
      %v555 = vmax.f32 %v553, %v554
      %v556 = vrot.slane %v555, 2
      %v557 = vmax.f32 %v555, %v556
      %v558 = vrot.slane %v557, 1
      %v559 = vmax.f32 %v557, %v558
      %v560 = vsel %vm233, %v423, -inf
      %v561 = vsel %vm233, %v424, -inf
      %v562 = vmax.f32 %v560, %v561
      %v563 = vrot.slane %v562, 4
      %v564 = vmax.f32 %v562, %v563
      %v565 = vrot.slane %v564, 2
      %v566 = vmax.f32 %v564, %v565
      %v567 = vrot.slane %v566, 1
      %v568 = vmax.f32 %v566, %v567
      %s569 = sadd.s32 %s151, 2
      %s570 = sld [smem:[#allocation6 + %s569]]
      %s571 = sld [smem:[#allocation7 + %s569]]
      %v572 = vstv %s570
      %vm573 = vcmp.ge.s32.totalorder %v185, %v572
      %vm574 = vcmp.ge.s32.totalorder %v186, %v572
      %v575 = vstv %s571
      %vm576 = vcmp.lt.s32.totalorder %v185, %v575
      %vm577 = vcmp.lt.s32.totalorder %v186, %v575
      %vm578 = vmand %vm573, %vm576
      %vm579 = vmand %vm574, %vm577
      %v580 = vsel %vm578, 1, 0
      %v581 = vsel %vm579, 1, 0
      %vm582 = vcmp.eq.s32.totalorder %v580, 1
      %vm583 = vcmp.eq.s32.totalorder %v581, 1
      %v584 = vsel %vm582, %v152, -inf
      %v585 = vsel %vm583, %v153, -inf
      %v586 = vsel %vm582, %v154, -inf
      %v587 = vsel %vm583, %v155, -inf
      %v588 = vsel %vm582, %v156, -inf
      %v589 = vsel %vm583, %v157, -inf
      %v590 = vsel %vm582, %v158, -inf
      %v591 = vsel %vm583, %v159, -inf
      %v592 = vsel %vm582, %v160, -inf
      %v593 = vsel %vm583, %v161, -inf
      %v594 = vsel %vm582, %v162, -inf
      %v595 = vsel %vm583, %v163, -inf
      %v596 = vsel %vm582, %v164, -inf
      %v597 = vsel %vm583, %v165, -inf
      %v598 = vsel %vm582, %v166, -inf
      %v599 = vsel %vm583, %v167, -inf
      %v600 = vsel %vm582, %v168, -inf
      %v601 = vsel %vm583, %v169, -inf
      %v602 = vsel %vm582, %v170, -inf
      %v603 = vsel %vm583, %v171, -inf
      %v604 = vsel %vm582, %v172, -inf
      %v605 = vsel %vm583, %v173, -inf
      %v606 = vsel %vm582, %v174, -inf
      %v607 = vsel %vm583, %v175, -inf
      %v608 = vsel %vm582, %v176, -inf
      %v609 = vsel %vm583, %v177, -inf
      %v610 = vsel %vm582, %v178, -inf
      %v611 = vsel %vm583, %v179, -inf
      %v612 = vsel %vm582, %v180, -inf
      %v613 = vsel %vm583, %v181, -inf
      %v614 = vsel %vm582, %v182, -inf
      %v615 = vsel %vm583, %v183, -inf
      %v616 = vsel %vm233, %v584, -inf
      %v617 = vsel %vm233, %v585, -inf
      %v618 = vmax.f32 %v616, %v617
      %v619 = vrot.slane %v618, 4
      %v620 = vmax.f32 %v618, %v619
      %v621 = vrot.slane %v620, 2
      %v622 = vmax.f32 %v620, %v621
      %v623 = vrot.slane %v622, 1
      %v624 = vmax.f32 %v622, %v623
      %v625 = vsel %vm233, %v586, -inf
      %v626 = vsel %vm233, %v587, -inf
      %v627 = vmax.f32 %v625, %v626
      %v628 = vrot.slane %v627, 4
      %v629 = vmax.f32 %v627, %v628
      %v630 = vrot.slane %v629, 2
      %v631 = vmax.f32 %v629, %v630
      %v632 = vrot.slane %v631, 1
      %v633 = vmax.f32 %v631, %v632
      %v634 = vsel %vm233, %v588, -inf
      %v635 = vsel %vm233, %v589, -inf
      %v636 = vmax.f32 %v634, %v635
      %v637 = vrot.slane %v636, 4
      %v638 = vmax.f32 %v636, %v637
      %v639 = vrot.slane %v638, 2
      %v640 = vmax.f32 %v638, %v639
      %v641 = vrot.slane %v640, 1
      %v642 = vmax.f32 %v640, %v641
      %v643 = vsel %vm233, %v590, -inf
      %v644 = vsel %vm233, %v591, -inf
      %v645 = vmax.f32 %v643, %v644
      %v646 = vrot.slane %v645, 4
      %v647 = vmax.f32 %v645, %v646
      %v648 = vrot.slane %v647, 2
      %v649 = vmax.f32 %v647, %v648
      %v650 = vrot.slane %v649, 1
      %v651 = vmax.f32 %v649, %v650
      %v652 = vsel %vm233, %v592, -inf
      %v653 = vsel %vm233, %v593, -inf
      %v654 = vmax.f32 %v652, %v653
      %v655 = vrot.slane %v654, 4
      %v656 = vmax.f32 %v654, %v655
      %v657 = vrot.slane %v656, 2
      %v658 = vmax.f32 %v656, %v657
      %v659 = vrot.slane %v658, 1
      %v660 = vmax.f32 %v658, %v659
      %v661 = vsel %vm233, %v594, -inf
      %v662 = vsel %vm233, %v595, -inf
      %v663 = vmax.f32 %v661, %v662
      %v664 = vrot.slane %v663, 4
      %v665 = vmax.f32 %v663, %v664
      %v666 = vrot.slane %v665, 2
      %v667 = vmax.f32 %v665, %v666
      %v668 = vrot.slane %v667, 1
      %v669 = vmax.f32 %v667, %v668
      %v670 = vsel %vm233, %v596, -inf
      %v671 = vsel %vm233, %v597, -inf
      %v672 = vmax.f32 %v670, %v671
      %v673 = vrot.slane %v672, 4
      %v674 = vmax.f32 %v672, %v673
      %v675 = vrot.slane %v674, 2
      %v676 = vmax.f32 %v674, %v675
      %v677 = vrot.slane %v676, 1
      %v678 = vmax.f32 %v676, %v677
      %v679 = vsel %vm233, %v598, -inf
      %v680 = vsel %vm233, %v599, -inf
      %v681 = vmax.f32 %v679, %v680
      %v682 = vrot.slane %v681, 4
      %v683 = vmax.f32 %v681, %v682
      %v684 = vrot.slane %v683, 2
      %v685 = vmax.f32 %v683, %v684
      %v686 = vrot.slane %v685, 1
      %v687 = vmax.f32 %v685, %v686
      %v688 = vsel %vm233, %v600, -inf
      %v689 = vsel %vm233, %v601, -inf
      %v690 = vmax.f32 %v688, %v689
      %v691 = vrot.slane %v690, 4
      %v692 = vmax.f32 %v690, %v691
      %v693 = vrot.slane %v692, 2
      %v694 = vmax.f32 %v692, %v693
      %v695 = vrot.slane %v694, 1
      %v696 = vmax.f32 %v694, %v695
      %v697 = vsel %vm233, %v602, -inf
      %v698 = vsel %vm233, %v603, -inf
      %v699 = vmax.f32 %v697, %v698
      %v700 = vrot.slane %v699, 4
      %v701 = vmax.f32 %v699, %v700
      %v702 = vrot.slane %v701, 2
      %v703 = vmax.f32 %v701, %v702
      %v704 = vrot.slane %v703, 1
      %v705 = vmax.f32 %v703, %v704
      %v706 = vsel %vm233, %v604, -inf
      %v707 = vsel %vm233, %v605, -inf
      %v708 = vmax.f32 %v706, %v707
      %v709 = vrot.slane %v708, 4
      %v710 = vmax.f32 %v708, %v709
      %v711 = vrot.slane %v710, 2
      %v712 = vmax.f32 %v710, %v711
      %v713 = vrot.slane %v712, 1
      %v714 = vmax.f32 %v712, %v713
      %v715 = vsel %vm233, %v606, -inf
      %v716 = vsel %vm233, %v607, -inf
      %v717 = vmax.f32 %v715, %v716
      %v718 = vrot.slane %v717, 4
      %v719 = vmax.f32 %v717, %v718
      %v720 = vrot.slane %v719, 2
      %v721 = vmax.f32 %v719, %v720
      %v722 = vrot.slane %v721, 1
      %v723 = vmax.f32 %v721, %v722
      %v724 = vsel %vm233, %v608, -inf
      %v725 = vsel %vm233, %v609, -inf
      %v726 = vmax.f32 %v724, %v725
      %v727 = vrot.slane %v726, 4
      %v728 = vmax.f32 %v726, %v727
      %v729 = vrot.slane %v728, 2
      %v730 = vmax.f32 %v728, %v729
      %v731 = vrot.slane %v730, 1
      %v732 = vmax.f32 %v730, %v731
      %v733 = vsel %vm233, %v610, -inf
      %v734 = vsel %vm233, %v611, -inf
      %v735 = vmax.f32 %v733, %v734
      %v736 = vrot.slane %v735, 4
      %v737 = vmax.f32 %v735, %v736
      %v738 = vrot.slane %v737, 2
      %v739 = vmax.f32 %v737, %v738
      %v740 = vrot.slane %v739, 1
      %v741 = vmax.f32 %v739, %v740
      %v742 = vsel %vm233, %v612, -inf
      %v743 = vsel %vm233, %v613, -inf
      %v744 = vmax.f32 %v742, %v743
      %v745 = vrot.slane %v744, 4
      %v746 = vmax.f32 %v744, %v745
      %v747 = vrot.slane %v746, 2
      %v748 = vmax.f32 %v746, %v747
      %v749 = vrot.slane %v748, 1
      %v750 = vmax.f32 %v748, %v749
      %v751 = vsel %vm233, %v614, -inf
      %v752 = vsel %vm233, %v615, -inf
      %v753 = vmax.f32 %v751, %v752
      %v754 = vrot.slane %v753, 4
      %v755 = vmax.f32 %v753, %v754
      %v756 = vrot.slane %v755, 2
      %v757 = vmax.f32 %v755, %v756
      %v758 = vrot.slane %v757, 1
      %v759 = vmax.f32 %v757, %v758
      %s760 = sadd.s32 %s151, 3
      %s761 = sld [smem:[#allocation6 + %s760]]
      %s762 = sld [smem:[#allocation7 + %s760]]
      %v763 = vstv %s761
      %vm764 = vcmp.ge.s32.totalorder %v185, %v763
      %vm765 = vcmp.ge.s32.totalorder %v186, %v763
      %v766 = vstv %s762
      %vm767 = vcmp.lt.s32.totalorder %v185, %v766
      %vm768 = vcmp.lt.s32.totalorder %v186, %v766
      %vm769 = vmand %vm764, %vm767
      %vm770 = vmand %vm765, %vm768
      %v771 = vsel %vm769, 1, 0
      %v772 = vsel %vm770, 1, 0
      %vm773 = vcmp.eq.s32.totalorder %v771, 1
      %vm774 = vcmp.eq.s32.totalorder %v772, 1
      %v775 = vsel %vm773, %v152, -inf
      %v776 = vsel %vm774, %v153, -inf
      %v777 = vsel %vm773, %v154, -inf
      %v778 = vsel %vm774, %v155, -inf
      %v779 = vsel %vm773, %v156, -inf
      %v780 = vsel %vm774, %v157, -inf
      %v781 = vsel %vm773, %v158, -inf
      %v782 = vsel %vm774, %v159, -inf
      %v783 = vsel %vm773, %v160, -inf
      %v784 = vsel %vm774, %v161, -inf
      %v785 = vsel %vm773, %v162, -inf
      %v786 = vsel %vm774, %v163, -inf
      %v787 = vsel %vm773, %v164, -inf
      %v788 = vsel %vm774, %v165, -inf
      %v789 = vsel %vm773, %v166, -inf
      %v790 = vsel %vm774, %v167, -inf
      %v791 = vsel %vm773, %v168, -inf
      %v792 = vsel %vm774, %v169, -inf
      %v793 = vsel %vm773, %v170, -inf
      %v794 = vsel %vm774, %v171, -inf
      %v795 = vsel %vm773, %v172, -inf
      %v796 = vsel %vm774, %v173, -inf
      %v797 = vsel %vm773, %v174, -inf
      %v798 = vsel %vm774, %v175, -inf
      %v799 = vsel %vm773, %v176, -inf
      %v800 = vsel %vm774, %v177, -inf
      %v801 = vsel %vm773, %v178, -inf
      %v802 = vsel %vm774, %v179, -inf
      %v803 = vsel %vm773, %v180, -inf
      %v804 = vsel %vm774, %v181, -inf
      %v805 = vsel %vm773, %v182, -inf
      %v806 = vsel %vm774, %v183, -inf
      %v807 = vsel %vm233, %v775, -inf
      %v808 = vsel %vm233, %v776, -inf
      %v809 = vmax.f32 %v807, %v808
      %v810 = vrot.slane %v809, 4
      %v811 = vmax.f32 %v809, %v810
      %v812 = vrot.slane %v811, 2
      %v813 = vmax.f32 %v811, %v812
      %v814 = vrot.slane %v813, 1
      %v815 = vmax.f32 %v813, %v814
      %v816 = vsel %vm233, %v777, -inf
      %v817 = vsel %vm233, %v778, -inf
      %v818 = vmax.f32 %v816, %v817
      %v819 = vrot.slane %v818, 4
      %v820 = vmax.f32 %v818, %v819
      %v821 = vrot.slane %v820, 2
      %v822 = vmax.f32 %v820, %v821
      %v823 = vrot.slane %v822, 1
      %v824 = vmax.f32 %v822, %v823
      %v825 = vsel %vm233, %v779, -inf
      %v826 = vsel %vm233, %v780, -inf
      %v827 = vmax.f32 %v825, %v826
      %v828 = vrot.slane %v827, 4
      %v829 = vmax.f32 %v827, %v828
      %v830 = vrot.slane %v829, 2
      %v831 = vmax.f32 %v829, %v830
      %v832 = vrot.slane %v831, 1
      %v833 = vmax.f32 %v831, %v832
      %v834 = vsel %vm233, %v781, -inf
      %v835 = vsel %vm233, %v782, -inf
      %v836 = vmax.f32 %v834, %v835
      %v837 = vrot.slane %v836, 4
      %v838 = vmax.f32 %v836, %v837
      %v839 = vrot.slane %v838, 2
      %v840 = vmax.f32 %v838, %v839
      %v841 = vrot.slane %v840, 1
      %v842 = vmax.f32 %v840, %v841
      %v843 = vsel %vm233, %v783, -inf
      %v844 = vsel %vm233, %v784, -inf
      %v845 = vmax.f32 %v843, %v844
      %v846 = vrot.slane %v845, 4
      %v847 = vmax.f32 %v845, %v846
      %v848 = vrot.slane %v847, 2
      %v849 = vmax.f32 %v847, %v848
      %v850 = vrot.slane %v849, 1
      %v851 = vmax.f32 %v849, %v850
      %v852 = vsel %vm233, %v785, -inf
      %v853 = vsel %vm233, %v786, -inf
      %v854 = vmax.f32 %v852, %v853
      %v855 = vrot.slane %v854, 4
      %v856 = vmax.f32 %v854, %v855
      %v857 = vrot.slane %v856, 2
      %v858 = vmax.f32 %v856, %v857
      %v859 = vrot.slane %v858, 1
      %v860 = vmax.f32 %v858, %v859
      %v861 = vsel %vm233, %v787, -inf
      %v862 = vsel %vm233, %v788, -inf
      %v863 = vmax.f32 %v861, %v862
      %v864 = vrot.slane %v863, 4
      %v865 = vmax.f32 %v863, %v864
      %v866 = vrot.slane %v865, 2
      %v867 = vmax.f32 %v865, %v866
      %v868 = vrot.slane %v867, 1
      %v869 = vmax.f32 %v867, %v868
      %v870 = vsel %vm233, %v789, -inf
      %v871 = vsel %vm233, %v790, -inf
      %v872 = vmax.f32 %v870, %v871
      %v873 = vrot.slane %v872, 4
      %v874 = vmax.f32 %v872, %v873
      %v875 = vrot.slane %v874, 2
      %v876 = vmax.f32 %v874, %v875
      %v877 = vrot.slane %v876, 1
      %v878 = vmax.f32 %v876, %v877
      %v879 = vsel %vm233, %v791, -inf
      %v880 = vsel %vm233, %v792, -inf
      %v881 = vmax.f32 %v879, %v880
      %v882 = vrot.slane %v881, 4
      %v883 = vmax.f32 %v881, %v882
      %v884 = vrot.slane %v883, 2
      %v885 = vmax.f32 %v883, %v884
      %v886 = vrot.slane %v885, 1
      %v887 = vmax.f32 %v885, %v886
      %v888 = vsel %vm233, %v793, -inf
      %v889 = vsel %vm233, %v794, -inf
      %v890 = vmax.f32 %v888, %v889
      %v891 = vrot.slane %v890, 4
      %v892 = vmax.f32 %v890, %v891
      %v893 = vrot.slane %v892, 2
      %v894 = vmax.f32 %v892, %v893
      %v895 = vrot.slane %v894, 1
      %v896 = vmax.f32 %v894, %v895
      %v897 = vsel %vm233, %v795, -inf
      %v898 = vsel %vm233, %v796, -inf
      %v899 = vmax.f32 %v897, %v898
      %v900 = vrot.slane %v899, 4
      %v901 = vmax.f32 %v899, %v900
      %v902 = vrot.slane %v901, 2
      %v903 = vmax.f32 %v901, %v902
      %v904 = vrot.slane %v903, 1
      %v905 = vmax.f32 %v903, %v904
      %v906 = vsel %vm233, %v797, -inf
      %v907 = vsel %vm233, %v798, -inf
      %v908 = vmax.f32 %v906, %v907
      %v909 = vrot.slane %v908, 4
      %v910 = vmax.f32 %v908, %v909
      %v911 = vrot.slane %v910, 2
      %v912 = vmax.f32 %v910, %v911
      %v913 = vrot.slane %v912, 1
      %v914 = vmax.f32 %v912, %v913
      %v915 = vsel %vm233, %v799, -inf
      %v916 = vsel %vm233, %v800, -inf
      %v917 = vmax.f32 %v915, %v916
      %v918 = vrot.slane %v917, 4
      %v919 = vmax.f32 %v917, %v918
      %v920 = vrot.slane %v919, 2
      %v921 = vmax.f32 %v919, %v920
      %v922 = vrot.slane %v921, 1
      %v923 = vmax.f32 %v921, %v922
      %v924 = vsel %vm233, %v801, -inf
      %v925 = vsel %vm233, %v802, -inf
      %v926 = vmax.f32 %v924, %v925
      %v927 = vrot.slane %v926, 4
      %v928 = vmax.f32 %v926, %v927
      %v929 = vrot.slane %v928, 2
      %v930 = vmax.f32 %v928, %v929
      %v931 = vrot.slane %v930, 1
      %v932 = vmax.f32 %v930, %v931
      %v933 = vsel %vm233, %v803, -inf
      %v934 = vsel %vm233, %v804, -inf
      %v935 = vmax.f32 %v933, %v934
      %v936 = vrot.slane %v935, 4
      %v937 = vmax.f32 %v935, %v936
      %v938 = vrot.slane %v937, 2
      %v939 = vmax.f32 %v937, %v938
      %v940 = vrot.slane %v939, 1
      %v941 = vmax.f32 %v939, %v940
      %v942 = vsel %vm233, %v805, -inf
      %v943 = vsel %vm233, %v806, -inf
      %v944 = vmax.f32 %v942, %v943
      %v945 = vrot.slane %v944, 4
      %v946 = vmax.f32 %v944, %v945
      %v947 = vrot.slane %v946, 2
      %v948 = vmax.f32 %v946, %v947
      %v949 = vrot.slane %v948, 1
      %v950 = vmax.f32 %v948, %v949
      %s951 = sadd.s32 %s151, 4
      %s952 = sld [smem:[#allocation6 + %s951]]
      %s953 = sld [smem:[#allocation7 + %s951]]
      %v954 = vstv %s952
      %vm955 = vcmp.ge.s32.totalorder %v185, %v954
      %vm956 = vcmp.ge.s32.totalorder %v186, %v954
      %v957 = vstv %s953
      %vm958 = vcmp.lt.s32.totalorder %v185, %v957
      %vm959 = vcmp.lt.s32.totalorder %v186, %v957
      %vm960 = vmand %vm955, %vm958
      %vm961 = vmand %vm956, %vm959
      %v962 = vsel %vm960, 1, 0
      %v963 = vsel %vm961, 1, 0
      %vm964 = vcmp.eq.s32.totalorder %v962, 1
      %vm965 = vcmp.eq.s32.totalorder %v963, 1
      %v966 = vsel %vm964, %v152, -inf
      %v967 = vsel %vm965, %v153, -inf
      %v968 = vsel %vm964, %v154, -inf
      %v969 = vsel %vm965, %v155, -inf
      %v970 = vsel %vm964, %v156, -inf
      %v971 = vsel %vm965, %v157, -inf
      %v972 = vsel %vm964, %v158, -inf
      %v973 = vsel %vm965, %v159, -inf
      %v974 = vsel %vm964, %v160, -inf
      %v975 = vsel %vm965, %v161, -inf
      %v976 = vsel %vm964, %v162, -inf
      %v977 = vsel %vm965, %v163, -inf
      %v978 = vsel %vm964, %v164, -inf
      %v979 = vsel %vm965, %v165, -inf
      %v980 = vsel %vm964, %v166, -inf
      %v981 = vsel %vm965, %v167, -inf
      %v982 = vsel %vm964, %v168, -inf
      %v983 = vsel %vm965, %v169, -inf
      %v984 = vsel %vm964, %v170, -inf
      %v985 = vsel %vm965, %v171, -inf
      %v986 = vsel %vm964, %v172, -inf
      %v987 = vsel %vm965, %v173, -inf
      %v988 = vsel %vm964, %v174, -inf
      %v989 = vsel %vm965, %v175, -inf
      %v990 = vsel %vm964, %v176, -inf
      %v991 = vsel %vm965, %v177, -inf
      %v992 = vsel %vm964, %v178, -inf
      %v993 = vsel %vm965, %v179, -inf
      %v994 = vsel %vm964, %v180, -inf
      %v995 = vsel %vm965, %v181, -inf
      %v996 = vsel %vm964, %v182, -inf
      %v997 = vsel %vm965, %v183, -inf
      %v998 = vsel %vm233, %v966, -inf
      %v999 = vsel %vm233, %v967, -inf
      %v1000 = vmax.f32 %v998, %v999
      %v1001 = vrot.slane %v1000, 4
      %v1002 = vmax.f32 %v1000, %v1001
      %v1003 = vrot.slane %v1002, 2
      %v1004 = vmax.f32 %v1002, %v1003
      %v1005 = vrot.slane %v1004, 1
      %v1006 = vmax.f32 %v1004, %v1005
      %v1007 = vsel %vm233, %v968, -inf
      %v1008 = vsel %vm233, %v969, -inf
      %v1009 = vmax.f32 %v1007, %v1008
      %v1010 = vrot.slane %v1009, 4
      %v1011 = vmax.f32 %v1009, %v1010
      %v1012 = vrot.slane %v1011, 2
      %v1013 = vmax.f32 %v1011, %v1012
      %v1014 = vrot.slane %v1013, 1
      %v1015 = vmax.f32 %v1013, %v1014
      %v1016 = vsel %vm233, %v970, -inf
      %v1017 = vsel %vm233, %v971, -inf
      %v1018 = vmax.f32 %v1016, %v1017
      %v1019 = vrot.slane %v1018, 4
      %v1020 = vmax.f32 %v1018, %v1019
      %v1021 = vrot.slane %v1020, 2
      %v1022 = vmax.f32 %v1020, %v1021
      %v1023 = vrot.slane %v1022, 1
      %v1024 = vmax.f32 %v1022, %v1023
      %v1025 = vsel %vm233, %v972, -inf
      %v1026 = vsel %vm233, %v973, -inf
      %v1027 = vmax.f32 %v1025, %v1026
      %v1028 = vrot.slane %v1027, 4
      %v1029 = vmax.f32 %v1027, %v1028
      %v1030 = vrot.slane %v1029, 2
      %v1031 = vmax.f32 %v1029, %v1030
      %v1032 = vrot.slane %v1031, 1
      %v1033 = vmax.f32 %v1031, %v1032
      %v1034 = vsel %vm233, %v974, -inf
      %v1035 = vsel %vm233, %v975, -inf
      %v1036 = vmax.f32 %v1034, %v1035
      %v1037 = vrot.slane %v1036, 4
      %v1038 = vmax.f32 %v1036, %v1037
      %v1039 = vrot.slane %v1038, 2
      %v1040 = vmax.f32 %v1038, %v1039
      %v1041 = vrot.slane %v1040, 1
      %v1042 = vmax.f32 %v1040, %v1041
      %v1043 = vsel %vm233, %v976, -inf
      %v1044 = vsel %vm233, %v977, -inf
      %v1045 = vmax.f32 %v1043, %v1044
      %v1046 = vrot.slane %v1045, 4
      %v1047 = vmax.f32 %v1045, %v1046
      %v1048 = vrot.slane %v1047, 2
      %v1049 = vmax.f32 %v1047, %v1048
      %v1050 = vrot.slane %v1049, 1
      %v1051 = vmax.f32 %v1049, %v1050
      %v1052 = vsel %vm233, %v978, -inf
      %v1053 = vsel %vm233, %v979, -inf
      %v1054 = vmax.f32 %v1052, %v1053
      %v1055 = vrot.slane %v1054, 4
      %v1056 = vmax.f32 %v1054, %v1055
      %v1057 = vrot.slane %v1056, 2
      %v1058 = vmax.f32 %v1056, %v1057
      %v1059 = vrot.slane %v1058, 1
      %v1060 = vmax.f32 %v1058, %v1059
      %v1061 = vsel %vm233, %v980, -inf
      %v1062 = vsel %vm233, %v981, -inf
      %v1063 = vmax.f32 %v1061, %v1062
      %v1064 = vrot.slane %v1063, 4
      %v1065 = vmax.f32 %v1063, %v1064
      %v1066 = vrot.slane %v1065, 2
      %v1067 = vmax.f32 %v1065, %v1066
      %v1068 = vrot.slane %v1067, 1
      %v1069 = vmax.f32 %v1067, %v1068
      %v1070 = vsel %vm233, %v982, -inf
      %v1071 = vsel %vm233, %v983, -inf
      %v1072 = vmax.f32 %v1070, %v1071
      %v1073 = vrot.slane %v1072, 4
      %v1074 = vmax.f32 %v1072, %v1073
      %v1075 = vrot.slane %v1074, 2
      %v1076 = vmax.f32 %v1074, %v1075
      %v1077 = vrot.slane %v1076, 1
      %v1078 = vmax.f32 %v1076, %v1077
      %v1079 = vsel %vm233, %v984, -inf
      %v1080 = vsel %vm233, %v985, -inf
      %v1081 = vmax.f32 %v1079, %v1080
      %v1082 = vrot.slane %v1081, 4
      %v1083 = vmax.f32 %v1081, %v1082
      %v1084 = vrot.slane %v1083, 2
      %v1085 = vmax.f32 %v1083, %v1084
      %v1086 = vrot.slane %v1085, 1
      %v1087 = vmax.f32 %v1085, %v1086
      %v1088 = vsel %vm233, %v986, -inf
      %v1089 = vsel %vm233, %v987, -inf
      %v1090 = vmax.f32 %v1088, %v1089
      %v1091 = vrot.slane %v1090, 4
      %v1092 = vmax.f32 %v1090, %v1091
      %v1093 = vrot.slane %v1092, 2
      %v1094 = vmax.f32 %v1092, %v1093
      %v1095 = vrot.slane %v1094, 1
      %v1096 = vmax.f32 %v1094, %v1095
      %v1097 = vsel %vm233, %v988, -inf
      %v1098 = vsel %vm233, %v989, -inf
      %v1099 = vmax.f32 %v1097, %v1098
      %v1100 = vrot.slane %v1099, 4
      %v1101 = vmax.f32 %v1099, %v1100
      %v1102 = vrot.slane %v1101, 2
      %v1103 = vmax.f32 %v1101, %v1102
      %v1104 = vrot.slane %v1103, 1
      %v1105 = vmax.f32 %v1103, %v1104
      %v1106 = vsel %vm233, %v990, -inf
      %v1107 = vsel %vm233, %v991, -inf
      %v1108 = vmax.f32 %v1106, %v1107
      %v1109 = vrot.slane %v1108, 4
      %v1110 = vmax.f32 %v1108, %v1109
      %v1111 = vrot.slane %v1110, 2
      %v1112 = vmax.f32 %v1110, %v1111
      %v1113 = vrot.slane %v1112, 1
      %v1114 = vmax.f32 %v1112, %v1113
      %v1115 = vsel %vm233, %v992, -inf
      %v1116 = vsel %vm233, %v993, -inf
      %v1117 = vmax.f32 %v1115, %v1116
      %v1118 = vrot.slane %v1117, 4
      %v1119 = vmax.f32 %v1117, %v1118
      %v1120 = vrot.slane %v1119, 2
      %v1121 = vmax.f32 %v1119, %v1120
      %v1122 = vrot.slane %v1121, 1
      %v1123 = vmax.f32 %v1121, %v1122
      %v1124 = vsel %vm233, %v994, -inf
      %v1125 = vsel %vm233, %v995, -inf
      %v1126 = vmax.f32 %v1124, %v1125
      %v1127 = vrot.slane %v1126, 4
      %v1128 = vmax.f32 %v1126, %v1127
      %v1129 = vrot.slane %v1128, 2
      %v1130 = vmax.f32 %v1128, %v1129
      %v1131 = vrot.slane %v1130, 1
      %v1132 = vmax.f32 %v1130, %v1131
      %v1133 = vsel %vm233, %v996, -inf
      %v1134 = vsel %vm233, %v997, -inf
      %v1135 = vmax.f32 %v1133, %v1134
      %v1136 = vrot.slane %v1135, 4
      %v1137 = vmax.f32 %v1135, %v1136
      %v1138 = vrot.slane %v1137, 2
      %v1139 = vmax.f32 %v1137, %v1138
      %v1140 = vrot.slane %v1139, 1
      %v1141 = vmax.f32 %v1139, %v1140
      %s1142 = sadd.s32 %s151, 5
      %s1143 = sld [smem:[#allocation6 + %s1142]]
      %s1144 = sld [smem:[#allocation7 + %s1142]]
      %v1145 = vstv %s1143
      %vm1146 = vcmp.ge.s32.totalorder %v185, %v1145
      %vm1147 = vcmp.ge.s32.totalorder %v186, %v1145
      %v1148 = vstv %s1144
      %vm1149 = vcmp.lt.s32.totalorder %v185, %v1148
      %vm1150 = vcmp.lt.s32.totalorder %v186, %v1148
      %vm1151 = vmand %vm1146, %vm1149
      %vm1152 = vmand %vm1147, %vm1150
      %v1153 = vsel %vm1151, 1, 0
      %v1154 = vsel %vm1152, 1, 0
      %vm1155 = vcmp.eq.s32.totalorder %v1153, 1
      %vm1156 = vcmp.eq.s32.totalorder %v1154, 1
      %v1157 = vsel %vm1155, %v152, -inf
      %v1158 = vsel %vm1156, %v153, -inf
      %v1159 = vsel %vm1155, %v154, -inf
      %v1160 = vsel %vm1156, %v155, -inf
      %v1161 = vsel %vm1155, %v156, -inf
      %v1162 = vsel %vm1156, %v157, -inf
      %v1163 = vsel %vm1155, %v158, -inf
      %v1164 = vsel %vm1156, %v159, -inf
      %v1165 = vsel %vm1155, %v160, -inf
      %v1166 = vsel %vm1156, %v161, -inf
      %v1167 = vsel %vm1155, %v162, -inf
      %v1168 = vsel %vm1156, %v163, -inf
      %v1169 = vsel %vm1155, %v164, -inf
      %v1170 = vsel %vm1156, %v165, -inf
      %v1171 = vsel %vm1155, %v166, -inf
      %v1172 = vsel %vm1156, %v167, -inf
      %v1173 = vsel %vm1155, %v168, -inf
      %v1174 = vsel %vm1156, %v169, -inf
      %v1175 = vsel %vm1155, %v170, -inf
      %v1176 = vsel %vm1156, %v171, -inf
      %v1177 = vsel %vm1155, %v172, -inf
      %v1178 = vsel %vm1156, %v173, -inf
      %v1179 = vsel %vm1155, %v174, -inf
      %v1180 = vsel %vm1156, %v175, -inf
      %v1181 = vsel %vm1155, %v176, -inf
      %v1182 = vsel %vm1156, %v177, -inf
      %v1183 = vsel %vm1155, %v178, -inf
      %v1184 = vsel %vm1156, %v179, -inf
      %v1185 = vsel %vm1155, %v180, -inf
      %v1186 = vsel %vm1156, %v181, -inf
      %v1187 = vsel %vm1155, %v182, -inf
      %v1188 = vsel %vm1156, %v183, -inf
      %v1189 = vsel %vm233, %v1157, -inf
      %v1190 = vsel %vm233, %v1158, -inf
      %v1191 = vmax.f32 %v1189, %v1190
      %v1192 = vrot.slane %v1191, 4
      %v1193 = vmax.f32 %v1191, %v1192
      %v1194 = vrot.slane %v1193, 2
      %v1195 = vmax.f32 %v1193, %v1194
      %v1196 = vrot.slane %v1195, 1
      %v1197 = vmax.f32 %v1195, %v1196
      %v1198 = vsel %vm233, %v1159, -inf
      %v1199 = vsel %vm233, %v1160, -inf
      %v1200 = vmax.f32 %v1198, %v1199
      %v1201 = vrot.slane %v1200, 4
      %v1202 = vmax.f32 %v1200, %v1201
      %v1203 = vrot.slane %v1202, 2
      %v1204 = vmax.f32 %v1202, %v1203
      %v1205 = vrot.slane %v1204, 1
      %v1206 = vmax.f32 %v1204, %v1205
      %v1207 = vsel %vm233, %v1161, -inf
      %v1208 = vsel %vm233, %v1162, -inf
      %v1209 = vmax.f32 %v1207, %v1208
      %v1210 = vrot.slane %v1209, 4
      %v1211 = vmax.f32 %v1209, %v1210
      %v1212 = vrot.slane %v1211, 2
      %v1213 = vmax.f32 %v1211, %v1212
      %v1214 = vrot.slane %v1213, 1
      %v1215 = vmax.f32 %v1213, %v1214
      %v1216 = vsel %vm233, %v1163, -inf
      %v1217 = vsel %vm233, %v1164, -inf
      %v1218 = vmax.f32 %v1216, %v1217
      %v1219 = vrot.slane %v1218, 4
      %v1220 = vmax.f32 %v1218, %v1219
      %v1221 = vrot.slane %v1220, 2
      %v1222 = vmax.f32 %v1220, %v1221
      %v1223 = vrot.slane %v1222, 1
      %v1224 = vmax.f32 %v1222, %v1223
      %v1225 = vsel %vm233, %v1165, -inf
      %v1226 = vsel %vm233, %v1166, -inf
      %v1227 = vmax.f32 %v1225, %v1226
      %v1228 = vrot.slane %v1227, 4
      %v1229 = vmax.f32 %v1227, %v1228
      %v1230 = vrot.slane %v1229, 2
      %v1231 = vmax.f32 %v1229, %v1230
      %v1232 = vrot.slane %v1231, 1
      %v1233 = vmax.f32 %v1231, %v1232
      %v1234 = vsel %vm233, %v1167, -inf
      %v1235 = vsel %vm233, %v1168, -inf
      %v1236 = vmax.f32 %v1234, %v1235
      %v1237 = vrot.slane %v1236, 4
      %v1238 = vmax.f32 %v1236, %v1237
      %v1239 = vrot.slane %v1238, 2
      %v1240 = vmax.f32 %v1238, %v1239
      %v1241 = vrot.slane %v1240, 1
      %v1242 = vmax.f32 %v1240, %v1241
      %v1243 = vsel %vm233, %v1169, -inf
      %v1244 = vsel %vm233, %v1170, -inf
      %v1245 = vmax.f32 %v1243, %v1244
      %v1246 = vrot.slane %v1245, 4
      %v1247 = vmax.f32 %v1245, %v1246
      %v1248 = vrot.slane %v1247, 2
      %v1249 = vmax.f32 %v1247, %v1248
      %v1250 = vrot.slane %v1249, 1
      %v1251 = vmax.f32 %v1249, %v1250
      %v1252 = vsel %vm233, %v1171, -inf
      %v1253 = vsel %vm233, %v1172, -inf
      %v1254 = vmax.f32 %v1252, %v1253
      %v1255 = vrot.slane %v1254, 4
      %v1256 = vmax.f32 %v1254, %v1255
      %v1257 = vrot.slane %v1256, 2
      %v1258 = vmax.f32 %v1256, %v1257
      %v1259 = vrot.slane %v1258, 1
      %v1260 = vmax.f32 %v1258, %v1259
      %v1261 = vsel %vm233, %v1173, -inf
      %v1262 = vsel %vm233, %v1174, -inf
      %v1263 = vmax.f32 %v1261, %v1262
      %v1264 = vrot.slane %v1263, 4
      %v1265 = vmax.f32 %v1263, %v1264
      %v1266 = vrot.slane %v1265, 2
      %v1267 = vmax.f32 %v1265, %v1266
      %v1268 = vrot.slane %v1267, 1
      %v1269 = vmax.f32 %v1267, %v1268
      %v1270 = vsel %vm233, %v1175, -inf
      %v1271 = vsel %vm233, %v1176, -inf
      %v1272 = vmax.f32 %v1270, %v1271
      %v1273 = vrot.slane %v1272, 4
      %v1274 = vmax.f32 %v1272, %v1273
      %v1275 = vrot.slane %v1274, 2
      %v1276 = vmax.f32 %v1274, %v1275
      %v1277 = vrot.slane %v1276, 1
      %v1278 = vmax.f32 %v1276, %v1277
      %v1279 = vsel %vm233, %v1177, -inf
      %v1280 = vsel %vm233, %v1178, -inf
      %v1281 = vmax.f32 %v1279, %v1280
      %v1282 = vrot.slane %v1281, 4
      %v1283 = vmax.f32 %v1281, %v1282
      %v1284 = vrot.slane %v1283, 2
      %v1285 = vmax.f32 %v1283, %v1284
      %v1286 = vrot.slane %v1285, 1
      %v1287 = vmax.f32 %v1285, %v1286
      %v1288 = vsel %vm233, %v1179, -inf
      %v1289 = vsel %vm233, %v1180, -inf
      %v1290 = vmax.f32 %v1288, %v1289
      %v1291 = vrot.slane %v1290, 4
      %v1292 = vmax.f32 %v1290, %v1291
      %v1293 = vrot.slane %v1292, 2
      %v1294 = vmax.f32 %v1292, %v1293
      %v1295 = vrot.slane %v1294, 1
      %v1296 = vmax.f32 %v1294, %v1295
      %v1297 = vsel %vm233, %v1181, -inf
      %v1298 = vsel %vm233, %v1182, -inf
      %v1299 = vmax.f32 %v1297, %v1298
      %v1300 = vrot.slane %v1299, 4
      %v1301 = vmax.f32 %v1299, %v1300
      %v1302 = vrot.slane %v1301, 2
      %v1303 = vmax.f32 %v1301, %v1302
      %v1304 = vrot.slane %v1303, 1
      %v1305 = vmax.f32 %v1303, %v1304
      %v1306 = vsel %vm233, %v1183, -inf
      %v1307 = vsel %vm233, %v1184, -inf
      %v1308 = vmax.f32 %v1306, %v1307
      %v1309 = vrot.slane %v1308, 4
      %v1310 = vmax.f32 %v1308, %v1309
      %v1311 = vrot.slane %v1310, 2
      %v1312 = vmax.f32 %v1310, %v1311
      %v1313 = vrot.slane %v1312, 1
      %v1314 = vmax.f32 %v1312, %v1313
      %v1315 = vsel %vm233, %v1185, -inf
      %v1316 = vsel %vm233, %v1186, -inf
      %v1317 = vmax.f32 %v1315, %v1316
      %v1318 = vrot.slane %v1317, 4
      %v1319 = vmax.f32 %v1317, %v1318
      %v1320 = vrot.slane %v1319, 2
      %v1321 = vmax.f32 %v1319, %v1320
      %v1322 = vrot.slane %v1321, 1
      %v1323 = vmax.f32 %v1321, %v1322
      %v1324 = vsel %vm233, %v1187, -inf
      %v1325 = vsel %vm233, %v1188, -inf
      %v1326 = vmax.f32 %v1324, %v1325
      %v1327 = vrot.slane %v1326, 4
      %v1328 = vmax.f32 %v1326, %v1327
      %v1329 = vrot.slane %v1328, 2
      %v1330 = vmax.f32 %v1328, %v1329
      %v1331 = vrot.slane %v1330, 1
      %v1332 = vmax.f32 %v1330, %v1331
      %s1333 = sadd.s32 %s151, 6
      %s1334 = sld [smem:[#allocation6 + %s1333]]
      %s1335 = sld [smem:[#allocation7 + %s1333]]
      %v1336 = vstv %s1334
      %vm1337 = vcmp.ge.s32.totalorder %v185, %v1336
      %vm1338 = vcmp.ge.s32.totalorder %v186, %v1336
      %v1339 = vstv %s1335
      %vm1340 = vcmp.lt.s32.totalorder %v185, %v1339
      %vm1341 = vcmp.lt.s32.totalorder %v186, %v1339
      %vm1342 = vmand %vm1337, %vm1340
      %vm1343 = vmand %vm1338, %vm1341
      %v1344 = vsel %vm1342, 1, 0
      %v1345 = vsel %vm1343, 1, 0
      %vm1346 = vcmp.eq.s32.totalorder %v1344, 1
      %vm1347 = vcmp.eq.s32.totalorder %v1345, 1
      %v1348 = vsel %vm1346, %v152, -inf
      %v1349 = vsel %vm1347, %v153, -inf
      %v1350 = vsel %vm1346, %v154, -inf
      %v1351 = vsel %vm1347, %v155, -inf
      %v1352 = vsel %vm1346, %v156, -inf
      %v1353 = vsel %vm1347, %v157, -inf
      %v1354 = vsel %vm1346, %v158, -inf
      %v1355 = vsel %vm1347, %v159, -inf
      %v1356 = vsel %vm1346, %v160, -inf
      %v1357 = vsel %vm1347, %v161, -inf
      %v1358 = vsel %vm1346, %v162, -inf
      %v1359 = vsel %vm1347, %v163, -inf
      %v1360 = vsel %vm1346, %v164, -inf
      %v1361 = vsel %vm1347, %v165, -inf
      %v1362 = vsel %vm1346, %v166, -inf
      %v1363 = vsel %vm1347, %v167, -inf
      %v1364 = vsel %vm1346, %v168, -inf
      %v1365 = vsel %vm1347, %v169, -inf
      %v1366 = vsel %vm1346, %v170, -inf
      %v1367 = vsel %vm1347, %v171, -inf
      %v1368 = vsel %vm1346, %v172, -inf
      %v1369 = vsel %vm1347, %v173, -inf
      %v1370 = vsel %vm1346, %v174, -inf
      %v1371 = vsel %vm1347, %v175, -inf
      %v1372 = vsel %vm1346, %v176, -inf
      %v1373 = vsel %vm1347, %v177, -inf
      %v1374 = vsel %vm1346, %v178, -inf
      %v1375 = vsel %vm1347, %v179, -inf
      %v1376 = vsel %vm1346, %v180, -inf
      %v1377 = vsel %vm1347, %v181, -inf
      %v1378 = vsel %vm1346, %v182, -inf
      %v1379 = vsel %vm1347, %v183, -inf
      %v1380 = vsel %vm233, %v1348, -inf
      %v1381 = vsel %vm233, %v1349, -inf
      %v1382 = vmax.f32 %v1380, %v1381
      %v1383 = vrot.slane %v1382, 4
      %v1384 = vmax.f32 %v1382, %v1383
      %v1385 = vrot.slane %v1384, 2
      %v1386 = vmax.f32 %v1384, %v1385
      %v1387 = vrot.slane %v1386, 1
      %v1388 = vmax.f32 %v1386, %v1387
      %v1389 = vsel %vm233, %v1350, -inf
      %v1390 = vsel %vm233, %v1351, -inf
      %v1391 = vmax.f32 %v1389, %v1390
      %v1392 = vrot.slane %v1391, 4
      %v1393 = vmax.f32 %v1391, %v1392
      %v1394 = vrot.slane %v1393, 2
      %v1395 = vmax.f32 %v1393, %v1394
      %v1396 = vrot.slane %v1395, 1
      %v1397 = vmax.f32 %v1395, %v1396
      %v1398 = vsel %vm233, %v1352, -inf
      %v1399 = vsel %vm233, %v1353, -inf
      %v1400 = vmax.f32 %v1398, %v1399
      %v1401 = vrot.slane %v1400, 4
      %v1402 = vmax.f32 %v1400, %v1401
      %v1403 = vrot.slane %v1402, 2
      %v1404 = vmax.f32 %v1402, %v1403
      %v1405 = vrot.slane %v1404, 1
      %v1406 = vmax.f32 %v1404, %v1405
      %v1407 = vsel %vm233, %v1354, -inf
      %v1408 = vsel %vm233, %v1355, -inf
      %v1409 = vmax.f32 %v1407, %v1408
      %v1410 = vrot.slane %v1409, 4
      %v1411 = vmax.f32 %v1409, %v1410
      %v1412 = vrot.slane %v1411, 2
      %v1413 = vmax.f32 %v1411, %v1412
      %v1414 = vrot.slane %v1413, 1
      %v1415 = vmax.f32 %v1413, %v1414
      %v1416 = vsel %vm233, %v1356, -inf
      %v1417 = vsel %vm233, %v1357, -inf
      %v1418 = vmax.f32 %v1416, %v1417
      %v1419 = vrot.slane %v1418, 4
      %v1420 = vmax.f32 %v1418, %v1419
      %v1421 = vrot.slane %v1420, 2
      %v1422 = vmax.f32 %v1420, %v1421
      %v1423 = vrot.slane %v1422, 1
      %v1424 = vmax.f32 %v1422, %v1423
      %v1425 = vsel %vm233, %v1358, -inf
      %v1426 = vsel %vm233, %v1359, -inf
      %v1427 = vmax.f32 %v1425, %v1426
      %v1428 = vrot.slane %v1427, 4
      %v1429 = vmax.f32 %v1427, %v1428
      %v1430 = vrot.slane %v1429, 2
      %v1431 = vmax.f32 %v1429, %v1430
      %v1432 = vrot.slane %v1431, 1
      %v1433 = vmax.f32 %v1431, %v1432
      %v1434 = vsel %vm233, %v1360, -inf
      %v1435 = vsel %vm233, %v1361, -inf
      %v1436 = vmax.f32 %v1434, %v1435
      %v1437 = vrot.slane %v1436, 4
      %v1438 = vmax.f32 %v1436, %v1437
      %v1439 = vrot.slane %v1438, 2
      %v1440 = vmax.f32 %v1438, %v1439
      %v1441 = vrot.slane %v1440, 1
      %v1442 = vmax.f32 %v1440, %v1441
      %v1443 = vsel %vm233, %v1362, -inf
      %v1444 = vsel %vm233, %v1363, -inf
      %v1445 = vmax.f32 %v1443, %v1444
      %v1446 = vrot.slane %v1445, 4
      %v1447 = vmax.f32 %v1445, %v1446
      %v1448 = vrot.slane %v1447, 2
      %v1449 = vmax.f32 %v1447, %v1448
      %v1450 = vrot.slane %v1449, 1
      %v1451 = vmax.f32 %v1449, %v1450
      %v1452 = vsel %vm233, %v1364, -inf
      %v1453 = vsel %vm233, %v1365, -inf
      %v1454 = vmax.f32 %v1452, %v1453
      %v1455 = vrot.slane %v1454, 4
      %v1456 = vmax.f32 %v1454, %v1455
      %v1457 = vrot.slane %v1456, 2
      %v1458 = vmax.f32 %v1456, %v1457
      %v1459 = vrot.slane %v1458, 1
      %v1460 = vmax.f32 %v1458, %v1459
      %v1461 = vsel %vm233, %v1366, -inf
      %v1462 = vsel %vm233, %v1367, -inf
      %v1463 = vmax.f32 %v1461, %v1462
      %v1464 = vrot.slane %v1463, 4
      %v1465 = vmax.f32 %v1463, %v1464
      %v1466 = vrot.slane %v1465, 2
      %v1467 = vmax.f32 %v1465, %v1466
      %v1468 = vrot.slane %v1467, 1
      %v1469 = vmax.f32 %v1467, %v1468
      %v1470 = vsel %vm233, %v1368, -inf
      %v1471 = vsel %vm233, %v1369, -inf
      %v1472 = vmax.f32 %v1470, %v1471
      %v1473 = vrot.slane %v1472, 4
      %v1474 = vmax.f32 %v1472, %v1473
      %v1475 = vrot.slane %v1474, 2
      %v1476 = vmax.f32 %v1474, %v1475
      %v1477 = vrot.slane %v1476, 1
      %v1478 = vmax.f32 %v1476, %v1477
      %v1479 = vsel %vm233, %v1370, -inf
      %v1480 = vsel %vm233, %v1371, -inf
      %v1481 = vmax.f32 %v1479, %v1480
      %v1482 = vrot.slane %v1481, 4
      %v1483 = vmax.f32 %v1481, %v1482
      %v1484 = vrot.slane %v1483, 2
      %v1485 = vmax.f32 %v1483, %v1484
      %v1486 = vrot.slane %v1485, 1
      %v1487 = vmax.f32 %v1485, %v1486
      %v1488 = vsel %vm233, %v1372, -inf
      %v1489 = vsel %vm233, %v1373, -inf
      %v1490 = vmax.f32 %v1488, %v1489
      %v1491 = vrot.slane %v1490, 4
      %v1492 = vmax.f32 %v1490, %v1491
      %v1493 = vrot.slane %v1492, 2
      %v1494 = vmax.f32 %v1492, %v1493
      %v1495 = vrot.slane %v1494, 1
      %v1496 = vmax.f32 %v1494, %v1495
      %v1497 = vsel %vm233, %v1374, -inf
      %v1498 = vsel %vm233, %v1375, -inf
      %v1499 = vmax.f32 %v1497, %v1498
      %v1500 = vrot.slane %v1499, 4
      %v1501 = vmax.f32 %v1499, %v1500
      %v1502 = vrot.slane %v1501, 2
      %v1503 = vmax.f32 %v1501, %v1502
      %v1504 = vrot.slane %v1503, 1
      %v1505 = vmax.f32 %v1503, %v1504
      %v1506 = vsel %vm233, %v1376, -inf
      %v1507 = vsel %vm233, %v1377, -inf
      %v1508 = vmax.f32 %v1506, %v1507
      %v1509 = vrot.slane %v1508, 4
      %v1510 = vmax.f32 %v1508, %v1509
      %v1511 = vrot.slane %v1510, 2
      %v1512 = vmax.f32 %v1510, %v1511
      %v1513 = vrot.slane %v1512, 1
      %v1514 = vmax.f32 %v1512, %v1513
      %v1515 = vsel %vm233, %v1378, -inf
      %v1516 = vsel %vm233, %v1379, -inf
      %v1517 = vmax.f32 %v1515, %v1516
      %v1518 = vrot.slane %v1517, 4
      %v1519 = vmax.f32 %v1517, %v1518
      %v1520 = vrot.slane %v1519, 2
      %v1521 = vmax.f32 %v1519, %v1520
      %v1522 = vrot.slane %v1521, 1
      %v1523 = vmax.f32 %v1521, %v1522
      %s1524 = sld [smem:[#allocation4 + %s151]]
      %s1525 = sld [smem:[#allocation5 + %s151]]
      %v1526 = vstv %s1524
      %vm1527 = vcmp.ge.s32.totalorder %v185, %v1526
      %vm1528 = vcmp.ge.s32.totalorder %v186, %v1526
      %v1529 = vstv %s1525
      %vm1530 = vcmp.lt.s32.totalorder %v185, %v1529
      %vm1531 = vcmp.lt.s32.totalorder %v186, %v1529
      %vm1532 = vmand %vm1527, %vm1530
      %vm1533 = vmand %vm1528, %vm1531
      %v1534 = vsel %vm1532, 1, 0
      %v1535 = vsel %vm1533, 1, 0
      %vm1536 = vcmp.eq.s32.totalorder %v1534, 1
      %vm1537 = vcmp.eq.s32.totalorder %v1535, 1
      %v1650 = vrot.slane %v251, 7
      %vm1651 = vcmask 1041409
      %v1652 = vsel %vm1651, %v1650, %v242
      %v1653 = vrot.slane %v260, 6
      %vm1654 = vcmask 1042434
      %v1655 = vsel %vm1654, %v1653, %v1652
      %v1656 = vrot.slane %v269, 5
      %vm1657 = vcmask 1043459
      %v1658 = vsel %vm1657, %v1656, %v1655
      %v1659 = vrot.slane %v278, 4
      %vm1660 = vcmask 1044484
      %v1661 = vsel %vm1660, %v1659, %v1658
      %v1662 = vrot.slane %v287, 3
      %vm1663 = vcmask 1045509
      %v1664 = vsel %vm1663, %v1662, %v1661
      %v1665 = vrot.slane %v296, 2
      %vm1666 = vcmask 1046534
      %v1667 = vsel %vm1666, %v1665, %v1664
      %v1668 = vrot.slane %v305, 1
      %vm1669 = vcmask 1047559
      %v1670 = vsel %vm1669, %v1668, %v1667
      %v1671 = vrot.slane %v323, 7
      %v1672 = vsel %vm1651, %v1671, %v314
      %v1673 = vrot.slane %v332, 6
      %v1674 = vsel %vm1654, %v1673, %v1672
      %v1675 = vrot.slane %v341, 5
      %v1676 = vsel %vm1657, %v1675, %v1674
      %v1677 = vrot.slane %v350, 4
      %v1678 = vsel %vm1660, %v1677, %v1676
      %v1679 = vrot.slane %v359, 3
      %v1680 = vsel %vm1663, %v1679, %v1678
      %v1681 = vrot.slane %v368, 2
      %v1682 = vsel %vm1666, %v1681, %v1680
      %v1683 = vrot.slane %v377, 1
      %v1684 = vsel %vm1669, %v1683, %v1682
      %v1685 = vrot.slane %v442, 7
      %v1686 = vsel %vm1651, %v1685, %v433
      %v1687 = vrot.slane %v451, 6
      %v1688 = vsel %vm1654, %v1687, %v1686
      %v1689 = vrot.slane %v460, 5
      %v1690 = vsel %vm1657, %v1689, %v1688
      %v1691 = vrot.slane %v469, 4
      %v1692 = vsel %vm1660, %v1691, %v1690
      %v1693 = vrot.slane %v478, 3
      %v1694 = vsel %vm1663, %v1693, %v1692
      %v1695 = vrot.slane %v487, 2
      %v1696 = vsel %vm1666, %v1695, %v1694
      %v1697 = vrot.slane %v496, 1
      %v1698 = vsel %vm1669, %v1697, %v1696
      %v1699 = vrot.slane %v514, 7
      %v1700 = vsel %vm1651, %v1699, %v505
      %v1701 = vrot.slane %v523, 6
      %v1702 = vsel %vm1654, %v1701, %v1700
      %v1703 = vrot.slane %v532, 5
      %v1704 = vsel %vm1657, %v1703, %v1702
      %v1705 = vrot.slane %v541, 4
      %v1706 = vsel %vm1660, %v1705, %v1704
      %v1707 = vrot.slane %v550, 3
      %v1708 = vsel %vm1663, %v1707, %v1706
      %v1709 = vrot.slane %v559, 2
      %v1710 = vsel %vm1666, %v1709, %v1708
      %v1711 = vrot.slane %v568, 1
      %v1712 = vsel %vm1669, %v1711, %v1710
      %v1713 = vrot.slane %v633, 7
      %v1714 = vsel %vm1651, %v1713, %v624
      %v1715 = vrot.slane %v642, 6
      %v1716 = vsel %vm1654, %v1715, %v1714
      %v1717 = vrot.slane %v651, 5
      %v1718 = vsel %vm1657, %v1717, %v1716
      %v1719 = vrot.slane %v660, 4
      %v1720 = vsel %vm1660, %v1719, %v1718
      %v1721 = vrot.slane %v669, 3
      %v1722 = vsel %vm1663, %v1721, %v1720
      %v1723 = vrot.slane %v678, 2
      %v1724 = vsel %vm1666, %v1723, %v1722
      %v1725 = vrot.slane %v687, 1
      %v1726 = vsel %vm1669, %v1725, %v1724
      %v1727 = vrot.slane %v705, 7
      %v1728 = vsel %vm1651, %v1727, %v696
      %v1729 = vrot.slane %v714, 6
      %v1730 = vsel %vm1654, %v1729, %v1728
      %v1731 = vrot.slane %v723, 5
      %v1732 = vsel %vm1657, %v1731, %v1730
      %v1733 = vrot.slane %v732, 4
      %v1734 = vsel %vm1660, %v1733, %v1732
      %v1735 = vrot.slane %v741, 3
      %v1736 = vsel %vm1663, %v1735, %v1734
      %v1737 = vrot.slane %v750, 2
      %v1738 = vsel %vm1666, %v1737, %v1736
      %v1739 = vrot.slane %v759, 1
      %v1740 = vsel %vm1669, %v1739, %v1738
      %v1741 = vrot.slane %v824, 7
      %v1742 = vsel %vm1651, %v1741, %v815
      %v1743 = vrot.slane %v833, 6
      %v1744 = vsel %vm1654, %v1743, %v1742
      %v1745 = vrot.slane %v842, 5
      %v1746 = vsel %vm1657, %v1745, %v1744
      %v1747 = vrot.slane %v851, 4
      %v1748 = vsel %vm1660, %v1747, %v1746
      %v1749 = vrot.slane %v860, 3
      %v1750 = vsel %vm1663, %v1749, %v1748
      %v1751 = vrot.slane %v869, 2
      %v1752 = vsel %vm1666, %v1751, %v1750
      %v1753 = vrot.slane %v878, 1
      %v1754 = vsel %vm1669, %v1753, %v1752
      %v1755 = vrot.slane %v896, 7
      %v1756 = vsel %vm1651, %v1755, %v887
      %v1757 = vrot.slane %v905, 6
      %v1758 = vsel %vm1654, %v1757, %v1756
      %v1759 = vrot.slane %v914, 5
      %v1760 = vsel %vm1657, %v1759, %v1758
      %v1761 = vrot.slane %v923, 4
      %v1762 = vsel %vm1660, %v1761, %v1760
      %v1763 = vrot.slane %v932, 3
      %v1764 = vsel %vm1663, %v1763, %v1762
      %v1765 = vrot.slane %v941, 2
      %v1766 = vsel %vm1666, %v1765, %v1764
      %v1767 = vrot.slane %v950, 1
      %v1768 = vsel %vm1669, %v1767, %v1766
      %v1769 = vrot.slane %v1015, 7
      %v1770 = vsel %vm1651, %v1769, %v1006
      %v1771 = vrot.slane %v1024, 6
      %v1772 = vsel %vm1654, %v1771, %v1770
      %v1773 = vrot.slane %v1033, 5
      %v1774 = vsel %vm1657, %v1773, %v1772
      %v1775 = vrot.slane %v1042, 4
      %v1776 = vsel %vm1660, %v1775, %v1774
      %v1777 = vrot.slane %v1051, 3
      %v1778 = vsel %vm1663, %v1777, %v1776
      %v1779 = vrot.slane %v1060, 2
      %v1780 = vsel %vm1666, %v1779, %v1778
      %v1781 = vrot.slane %v1069, 1
      %v1782 = vsel %vm1669, %v1781, %v1780
      %v1783 = vrot.slane %v1087, 7
      %v1784 = vsel %vm1651, %v1783, %v1078
      %v1785 = vrot.slane %v1096, 6
      %v1786 = vsel %vm1654, %v1785, %v1784
      %v1787 = vrot.slane %v1105, 5
      %v1788 = vsel %vm1657, %v1787, %v1786
      %v1789 = vrot.slane %v1114, 4
      %v1790 = vsel %vm1660, %v1789, %v1788
      %v1791 = vrot.slane %v1123, 3
      %v1792 = vsel %vm1663, %v1791, %v1790
      %v1793 = vrot.slane %v1132, 2
      %v1794 = vsel %vm1666, %v1793, %v1792
      %v1795 = vrot.slane %v1141, 1
      %v1796 = vsel %vm1669, %v1795, %v1794
      %v1797 = vrot.slane %v1206, 7
      %v1798 = vsel %vm1651, %v1797, %v1197
      %v1799 = vrot.slane %v1215, 6
      %v1800 = vsel %vm1654, %v1799, %v1798
      %v1801 = vrot.slane %v1224, 5
      %v1802 = vsel %vm1657, %v1801, %v1800
      %v1803 = vrot.slane %v1233, 4
      %v1804 = vsel %vm1660, %v1803, %v1802
      %v1805 = vrot.slane %v1242, 3
      %v1806 = vsel %vm1663, %v1805, %v1804
      %v1807 = vrot.slane %v1251, 2
      %v1808 = vsel %vm1666, %v1807, %v1806
      %v1809 = vrot.slane %v1260, 1
      %v1810 = vsel %vm1669, %v1809, %v1808
      %v1811 = vrot.slane %v1278, 7
      %v1812 = vsel %vm1651, %v1811, %v1269
      %v1813 = vrot.slane %v1287, 6
      %v1814 = vsel %vm1654, %v1813, %v1812
      %v1815 = vrot.slane %v1296, 5
      %v1816 = vsel %vm1657, %v1815, %v1814
      %v1817 = vrot.slane %v1305, 4
      %v1818 = vsel %vm1660, %v1817, %v1816
      %v1819 = vrot.slane %v1314, 3
      %v1820 = vsel %vm1663, %v1819, %v1818
      %v1821 = vrot.slane %v1323, 2
      %v1822 = vsel %vm1666, %v1821, %v1820
      %v1823 = vrot.slane %v1332, 1
      %v1824 = vsel %vm1669, %v1823, %v1822
      %v1825 = vrot.slane %v1397, 7
      %v1826 = vsel %vm1651, %v1825, %v1388
      %v1827 = vrot.slane %v1406, 6
      %v1828 = vsel %vm1654, %v1827, %v1826
      %v1829 = vrot.slane %v1415, 5
      %v1830 = vsel %vm1657, %v1829, %v1828
      %v1831 = vrot.slane %v1424, 4
      %v1832 = vsel %vm1660, %v1831, %v1830
      %v1833 = vrot.slane %v1433, 3
      %v1834 = vsel %vm1663, %v1833, %v1832
      %v1835 = vrot.slane %v1442, 2
      %v1836 = vsel %vm1666, %v1835, %v1834
      %v1837 = vrot.slane %v1451, 1
      %v1838 = vsel %vm1669, %v1837, %v1836
      %v1839 = vrot.slane %v1469, 7
      %v1840 = vsel %vm1651, %v1839, %v1460
      %v1841 = vrot.slane %v1478, 6
      %v1842 = vsel %vm1654, %v1841, %v1840
      %v1843 = vrot.slane %v1487, 5
      %v1844 = vsel %vm1657, %v1843, %v1842
      %v1845 = vrot.slane %v1496, 4
      %v1846 = vsel %vm1660, %v1845, %v1844
      %v1847 = vrot.slane %v1505, 3
      %v1848 = vsel %vm1663, %v1847, %v1846
      %v1849 = vrot.slane %v1514, 2
      %v1850 = vsel %vm1666, %v1849, %v1848
      %v1851 = vrot.slane %v1523, 1
      %v1852 = vsel %vm1669, %v1851, %v1850
      %v1867 = vsel %vm1536, %v1670, -inf
      %v1868 = vsel %vm1537, %v1684, -inf
      %v1869 = vsel %vm1536, %v1698, -inf
      %v1870 = vsel %vm1537, %v1712, -inf
      %v1871 = vsel %vm1536, %v1726, -inf
      %v1872 = vsel %vm1537, %v1740, -inf
      %v1873 = vsel %vm1536, %v1754, -inf
      %v1874 = vsel %vm1537, %v1768, -inf
      %v1875 = vsel %vm1536, %v1782, -inf
      %v1876 = vsel %vm1537, %v1796, -inf
      %v1877 = vsel %vm1536, %v1810, -inf
      %v1878 = vsel %vm1537, %v1824, -inf
      %v1879 = vsel %vm1536, %v1838, -inf
      %v1880 = vsel %vm1537, %v1852, -inf
      %v1881 = vsel %vm233, %v1867, -inf
      %v1882 = vsel %vm233, %v1868, -inf
      %v1883 = vmax.f32 %v1881, %v1882
      %v1884 = vrot.slane %v1883, 4
      %v1885 = vmax.f32 %v1883, %v1884
      %v1886 = vrot.slane %v1885, 2
      %v1887 = vmax.f32 %v1885, %v1886
      %v1888 = vrot.slane %v1887, 1
      %v1889 = vmax.f32 %v1887, %v1888
      %v1890 = vsel %vm233, %v1869, -inf
      %v1891 = vsel %vm233, %v1870, -inf
      %v1892 = vmax.f32 %v1890, %v1891
      %v1893 = vrot.slane %v1892, 4
      %v1894 = vmax.f32 %v1892, %v1893
      %v1895 = vrot.slane %v1894, 2
      %v1896 = vmax.f32 %v1894, %v1895
      %v1897 = vrot.slane %v1896, 1
      %v1898 = vmax.f32 %v1896, %v1897
      %v1899 = vsel %vm233, %v1871, -inf
      %v1900 = vsel %vm233, %v1872, -inf
      %v1901 = vmax.f32 %v1899, %v1900
      %v1902 = vrot.slane %v1901, 4
      %v1903 = vmax.f32 %v1901, %v1902
      %v1904 = vrot.slane %v1903, 2
      %v1905 = vmax.f32 %v1903, %v1904
      %v1906 = vrot.slane %v1905, 1
      %v1907 = vmax.f32 %v1905, %v1906
      %v1908 = vsel %vm233, %v1873, -inf
      %v1909 = vsel %vm233, %v1874, -inf
      %v1910 = vmax.f32 %v1908, %v1909
      %v1911 = vrot.slane %v1910, 4
      %v1912 = vmax.f32 %v1910, %v1911
      %v1913 = vrot.slane %v1912, 2
      %v1914 = vmax.f32 %v1912, %v1913
      %v1915 = vrot.slane %v1914, 1
      %v1916 = vmax.f32 %v1914, %v1915
      %v1917 = vsel %vm233, %v1875, -inf
      %v1918 = vsel %vm233, %v1876, -inf
      %v1919 = vmax.f32 %v1917, %v1918
      %v1920 = vrot.slane %v1919, 4
      %v1921 = vmax.f32 %v1919, %v1920
      %v1922 = vrot.slane %v1921, 2
      %v1923 = vmax.f32 %v1921, %v1922
      %v1924 = vrot.slane %v1923, 1
      %v1925 = vmax.f32 %v1923, %v1924
      %v1926 = vsel %vm233, %v1877, -inf
      %v1927 = vsel %vm233, %v1878, -inf
      %v1928 = vmax.f32 %v1926, %v1927
      %v1929 = vrot.slane %v1928, 4
      %v1930 = vmax.f32 %v1928, %v1929
      %v1931 = vrot.slane %v1930, 2
      %v1932 = vmax.f32 %v1930, %v1931
      %v1933 = vrot.slane %v1932, 1
      %v1934 = vmax.f32 %v1932, %v1933
      %v1935 = vsel %vm233, %v1879, -inf
      %v1936 = vsel %vm233, %v1880, -inf
      %v1937 = vmax.f32 %v1935, %v1936
      %v1938 = vrot.slane %v1937, 4
      %v1939 = vmax.f32 %v1937, %v1938
      %v1940 = vrot.slane %v1939, 2
      %v1941 = vmax.f32 %v1939, %v1940
      %v1942 = vrot.slane %v1941, 1
      %v1943 = vmax.f32 %v1941, %v1942
      %s1944 = sld [smem:[#allocation4 + %s378]]
      %s1945 = sld [smem:[#allocation5 + %s378]]
      %v1946 = vstv %s1944
      %vm1947 = vcmp.ge.s32.totalorder %v185, %v1946
      %vm1948 = vcmp.ge.s32.totalorder %v186, %v1946
      %v1949 = vstv %s1945
      %vm1950 = vcmp.lt.s32.totalorder %v185, %v1949
      %vm1951 = vcmp.lt.s32.totalorder %v186, %v1949
      %vm1952 = vmand %vm1947, %vm1950
      %vm1953 = vmand %vm1948, %vm1951
      %v1954 = vsel %vm1952, 1, 0
      %v1955 = vsel %vm1953, 1, 0
      %vm1956 = vcmp.eq.s32.totalorder %v1954, 1
      %vm1957 = vcmp.eq.s32.totalorder %v1955, 1
      %v1958 = vsel %vm1956, %v1670, -inf
      %v1959 = vsel %vm1957, %v1684, -inf
      %v1960 = vsel %vm1956, %v1698, -inf
      %v1961 = vsel %vm1957, %v1712, -inf
      %v1962 = vsel %vm1956, %v1726, -inf
      %v1963 = vsel %vm1957, %v1740, -inf
      %v1964 = vsel %vm1956, %v1754, -inf
      %v1965 = vsel %vm1957, %v1768, -inf
      %v1966 = vsel %vm1956, %v1782, -inf
      %v1967 = vsel %vm1957, %v1796, -inf
      %v1968 = vsel %vm1956, %v1810, -inf
      %v1969 = vsel %vm1957, %v1824, -inf
      %v1970 = vsel %vm1956, %v1838, -inf
      %v1971 = vsel %vm1957, %v1852, -inf
      %v1972 = vsel %vm233, %v1958, -inf
      %v1973 = vsel %vm233, %v1959, -inf
      %v1974 = vmax.f32 %v1972, %v1973
      %v1975 = vrot.slane %v1974, 4
      %v1976 = vmax.f32 %v1974, %v1975
      %v1977 = vrot.slane %v1976, 2
      %v1978 = vmax.f32 %v1976, %v1977
      %v1979 = vrot.slane %v1978, 1
      %v1980 = vmax.f32 %v1978, %v1979
      %v1981 = vsel %vm233, %v1960, -inf
      %v1982 = vsel %vm233, %v1961, -inf
      %v1983 = vmax.f32 %v1981, %v1982
      %v1984 = vrot.slane %v1983, 4
      %v1985 = vmax.f32 %v1983, %v1984
      %v1986 = vrot.slane %v1985, 2
      %v1987 = vmax.f32 %v1985, %v1986
      %v1988 = vrot.slane %v1987, 1
      %v1989 = vmax.f32 %v1987, %v1988
      %v1990 = vsel %vm233, %v1962, -inf
      %v1991 = vsel %vm233, %v1963, -inf
      %v1992 = vmax.f32 %v1990, %v1991
      %v1993 = vrot.slane %v1992, 4
      %v1994 = vmax.f32 %v1992, %v1993
      %v1995 = vrot.slane %v1994, 2
      %v1996 = vmax.f32 %v1994, %v1995
      %v1997 = vrot.slane %v1996, 1
      %v1998 = vmax.f32 %v1996, %v1997
      %v1999 = vsel %vm233, %v1964, -inf
      %v2000 = vsel %vm233, %v1965, -inf
      %v2001 = vmax.f32 %v1999, %v2000
      %v2002 = vrot.slane %v2001, 4
      %v2003 = vmax.f32 %v2001, %v2002
      %v2004 = vrot.slane %v2003, 2
      %v2005 = vmax.f32 %v2003, %v2004
      %v2006 = vrot.slane %v2005, 1
      %v2007 = vmax.f32 %v2005, %v2006
      %v2008 = vsel %vm233, %v1966, -inf
      %v2009 = vsel %vm233, %v1967, -inf
      %v2010 = vmax.f32 %v2008, %v2009
      %v2011 = vrot.slane %v2010, 4
      %v2012 = vmax.f32 %v2010, %v2011
      %v2013 = vrot.slane %v2012, 2
      %v2014 = vmax.f32 %v2012, %v2013
      %v2015 = vrot.slane %v2014, 1
      %v2016 = vmax.f32 %v2014, %v2015
      %v2017 = vsel %vm233, %v1968, -inf
      %v2018 = vsel %vm233, %v1969, -inf
      %v2019 = vmax.f32 %v2017, %v2018
      %v2020 = vrot.slane %v2019, 4
      %v2021 = vmax.f32 %v2019, %v2020
      %v2022 = vrot.slane %v2021, 2
      %v2023 = vmax.f32 %v2021, %v2022
      %v2024 = vrot.slane %v2023, 1
      %v2025 = vmax.f32 %v2023, %v2024
      %v2026 = vsel %vm233, %v1970, -inf
      %v2027 = vsel %vm233, %v1971, -inf
      %v2028 = vmax.f32 %v2026, %v2027
      %v2029 = vrot.slane %v2028, 4
      %v2030 = vmax.f32 %v2028, %v2029
      %v2031 = vrot.slane %v2030, 2
      %v2032 = vmax.f32 %v2030, %v2031
      %v2033 = vrot.slane %v2032, 1
      %v2034 = vmax.f32 %v2032, %v2033
      %s2035 = sld [smem:[#allocation4 + %s569]]
      %s2036 = sld [smem:[#allocation5 + %s569]]
      %v2037 = vstv %s2035
      %vm2038 = vcmp.ge.s32.totalorder %v185, %v2037
      %vm2039 = vcmp.ge.s32.totalorder %v186, %v2037
      %v2040 = vstv %s2036
      %vm2041 = vcmp.lt.s32.totalorder %v185, %v2040
      %vm2042 = vcmp.lt.s32.totalorder %v186, %v2040
      %vm2043 = vmand %vm2038, %vm2041
      %vm2044 = vmand %vm2039, %vm2042
      %v2045 = vsel %vm2043, 1, 0
      %v2046 = vsel %vm2044, 1, 0
      %vm2047 = vcmp.eq.s32.totalorder %v2045, 1
      %vm2048 = vcmp.eq.s32.totalorder %v2046, 1
      %v2049 = vsel %vm2047, %v1670, -inf
      %v2050 = vsel %vm2048, %v1684, -inf
      %v2051 = vsel %vm2047, %v1698, -inf
      %v2052 = vsel %vm2048, %v1712, -inf
      %v2053 = vsel %vm2047, %v1726, -inf
      %v2054 = vsel %vm2048, %v1740, -inf
      %v2055 = vsel %vm2047, %v1754, -inf
      %v2056 = vsel %vm2048, %v1768, -inf
      %v2057 = vsel %vm2047, %v1782, -inf
      %v2058 = vsel %vm2048, %v1796, -inf
      %v2059 = vsel %vm2047, %v1810, -inf
      %v2060 = vsel %vm2048, %v1824, -inf
      %v2061 = vsel %vm2047, %v1838, -inf
      %v2062 = vsel %vm2048, %v1852, -inf
      %v2063 = vsel %vm233, %v2049, -inf
      %v2064 = vsel %vm233, %v2050, -inf
      %v2065 = vmax.f32 %v2063, %v2064
      %v2066 = vrot.slane %v2065, 4
      %v2067 = vmax.f32 %v2065, %v2066
      %v2068 = vrot.slane %v2067, 2
      %v2069 = vmax.f32 %v2067, %v2068
      %v2070 = vrot.slane %v2069, 1
      %v2071 = vmax.f32 %v2069, %v2070
      %v2072 = vsel %vm233, %v2051, -inf
      %v2073 = vsel %vm233, %v2052, -inf
      %v2074 = vmax.f32 %v2072, %v2073
      %v2075 = vrot.slane %v2074, 4
      %v2076 = vmax.f32 %v2074, %v2075
      %v2077 = vrot.slane %v2076, 2
      %v2078 = vmax.f32 %v2076, %v2077
      %v2079 = vrot.slane %v2078, 1
      %v2080 = vmax.f32 %v2078, %v2079
      %v2081 = vsel %vm233, %v2053, -inf
      %v2082 = vsel %vm233, %v2054, -inf
      %v2083 = vmax.f32 %v2081, %v2082
      %v2084 = vrot.slane %v2083, 4
      %v2085 = vmax.f32 %v2083, %v2084
      %v2086 = vrot.slane %v2085, 2
      %v2087 = vmax.f32 %v2085, %v2086
      %v2088 = vrot.slane %v2087, 1
      %v2089 = vmax.f32 %v2087, %v2088
      %v2090 = vsel %vm233, %v2055, -inf
      %v2091 = vsel %vm233, %v2056, -inf
      %v2092 = vmax.f32 %v2090, %v2091
      %v2093 = vrot.slane %v2092, 4
      %v2094 = vmax.f32 %v2092, %v2093
      %v2095 = vrot.slane %v2094, 2
      %v2096 = vmax.f32 %v2094, %v2095
      %v2097 = vrot.slane %v2096, 1
      %v2098 = vmax.f32 %v2096, %v2097
      %v2099 = vsel %vm233, %v2057, -inf
      %v2100 = vsel %vm233, %v2058, -inf
      %v2101 = vmax.f32 %v2099, %v2100
      %v2102 = vrot.slane %v2101, 4
      %v2103 = vmax.f32 %v2101, %v2102
      %v2104 = vrot.slane %v2103, 2
      %v2105 = vmax.f32 %v2103, %v2104
      %v2106 = vrot.slane %v2105, 1
      %v2107 = vmax.f32 %v2105, %v2106
      %v2108 = vsel %vm233, %v2059, -inf
      %v2109 = vsel %vm233, %v2060, -inf
      %v2110 = vmax.f32 %v2108, %v2109
      %v2111 = vrot.slane %v2110, 4
      %v2112 = vmax.f32 %v2110, %v2111
      %v2113 = vrot.slane %v2112, 2
      %v2114 = vmax.f32 %v2112, %v2113
      %v2115 = vrot.slane %v2114, 1
      %v2116 = vmax.f32 %v2114, %v2115
      %v2117 = vsel %vm233, %v2061, -inf
      %v2118 = vsel %vm233, %v2062, -inf
      %v2119 = vmax.f32 %v2117, %v2118
      %v2120 = vrot.slane %v2119, 4
      %v2121 = vmax.f32 %v2119, %v2120
      %v2122 = vrot.slane %v2121, 2
      %v2123 = vmax.f32 %v2121, %v2122
      %v2124 = vrot.slane %v2123, 1
      %v2125 = vmax.f32 %v2123, %v2124
      %s2126 = sld [smem:[#allocation4 + %s760]]
      %s2127 = sld [smem:[#allocation5 + %s760]]
      %v2128 = vstv %s2126
      %vm2129 = vcmp.ge.s32.totalorder %v185, %v2128
      %vm2130 = vcmp.ge.s32.totalorder %v186, %v2128
      %v2131 = vstv %s2127
      %vm2132 = vcmp.lt.s32.totalorder %v185, %v2131
      %vm2133 = vcmp.lt.s32.totalorder %v186, %v2131
      %vm2134 = vmand %vm2129, %vm2132
      %vm2135 = vmand %vm2130, %vm2133
      %v2136 = vsel %vm2134, 1, 0
      %v2137 = vsel %vm2135, 1, 0
      %vm2138 = vcmp.eq.s32.totalorder %v2136, 1
      %vm2139 = vcmp.eq.s32.totalorder %v2137, 1
      %v2140 = vsel %vm2138, %v1670, -inf
      %v2141 = vsel %vm2139, %v1684, -inf
      %v2142 = vsel %vm2138, %v1698, -inf
      %v2143 = vsel %vm2139, %v1712, -inf
      %v2144 = vsel %vm2138, %v1726, -inf
      %v2145 = vsel %vm2139, %v1740, -inf
      %v2146 = vsel %vm2138, %v1754, -inf
      %v2147 = vsel %vm2139, %v1768, -inf
      %v2148 = vsel %vm2138, %v1782, -inf
      %v2149 = vsel %vm2139, %v1796, -inf
      %v2150 = vsel %vm2138, %v1810, -inf
      %v2151 = vsel %vm2139, %v1824, -inf
      %v2152 = vsel %vm2138, %v1838, -inf
      %v2153 = vsel %vm2139, %v1852, -inf
      %v2154 = vsel %vm233, %v2140, -inf
      %v2155 = vsel %vm233, %v2141, -inf
      %v2156 = vmax.f32 %v2154, %v2155
      %v2157 = vrot.slane %v2156, 4
      %v2158 = vmax.f32 %v2156, %v2157
      %v2159 = vrot.slane %v2158, 2
      %v2160 = vmax.f32 %v2158, %v2159
      %v2161 = vrot.slane %v2160, 1
      %v2162 = vmax.f32 %v2160, %v2161
      %v2163 = vsel %vm233, %v2142, -inf
      %v2164 = vsel %vm233, %v2143, -inf
      %v2165 = vmax.f32 %v2163, %v2164
      %v2166 = vrot.slane %v2165, 4
      %v2167 = vmax.f32 %v2165, %v2166
      %v2168 = vrot.slane %v2167, 2
      %v2169 = vmax.f32 %v2167, %v2168
      %v2170 = vrot.slane %v2169, 1
      %v2171 = vmax.f32 %v2169, %v2170
      %v2172 = vsel %vm233, %v2144, -inf
      %v2173 = vsel %vm233, %v2145, -inf
      %v2174 = vmax.f32 %v2172, %v2173
      %v2175 = vrot.slane %v2174, 4
      %v2176 = vmax.f32 %v2174, %v2175
      %v2177 = vrot.slane %v2176, 2
      %v2178 = vmax.f32 %v2176, %v2177
      %v2179 = vrot.slane %v2178, 1
      %v2180 = vmax.f32 %v2178, %v2179
      %v2181 = vsel %vm233, %v2146, -inf
      %v2182 = vsel %vm233, %v2147, -inf
      %v2183 = vmax.f32 %v2181, %v2182
      %v2184 = vrot.slane %v2183, 4
      %v2185 = vmax.f32 %v2183, %v2184
      %v2186 = vrot.slane %v2185, 2
      %v2187 = vmax.f32 %v2185, %v2186
      %v2188 = vrot.slane %v2187, 1
      %v2189 = vmax.f32 %v2187, %v2188
      %v2190 = vsel %vm233, %v2148, -inf
      %v2191 = vsel %vm233, %v2149, -inf
      %v2192 = vmax.f32 %v2190, %v2191
      %v2193 = vrot.slane %v2192, 4
      %v2194 = vmax.f32 %v2192, %v2193
      %v2195 = vrot.slane %v2194, 2
      %v2196 = vmax.f32 %v2194, %v2195
      %v2197 = vrot.slane %v2196, 1
      %v2198 = vmax.f32 %v2196, %v2197
      %v2199 = vsel %vm233, %v2150, -inf
      %v2200 = vsel %vm233, %v2151, -inf
      %v2201 = vmax.f32 %v2199, %v2200
      %v2202 = vrot.slane %v2201, 4
      %v2203 = vmax.f32 %v2201, %v2202
      %v2204 = vrot.slane %v2203, 2
      %v2205 = vmax.f32 %v2203, %v2204
      %v2206 = vrot.slane %v2205, 1
      %v2207 = vmax.f32 %v2205, %v2206
      %v2208 = vsel %vm233, %v2152, -inf
      %v2209 = vsel %vm233, %v2153, -inf
      %v2210 = vmax.f32 %v2208, %v2209
      %v2211 = vrot.slane %v2210, 4
      %v2212 = vmax.f32 %v2210, %v2211
      %v2213 = vrot.slane %v2212, 2
      %v2214 = vmax.f32 %v2212, %v2213
      %v2215 = vrot.slane %v2214, 1
      %v2216 = vmax.f32 %v2214, %v2215
      %s2217 = sld [smem:[#allocation4 + %s951]]
      %s2218 = sld [smem:[#allocation5 + %s951]]
      %v2219 = vstv %s2217
      %vm2220 = vcmp.ge.s32.totalorder %v185, %v2219
      %vm2221 = vcmp.ge.s32.totalorder %v186, %v2219
      %v2222 = vstv %s2218
      %vm2223 = vcmp.lt.s32.totalorder %v185, %v2222
      %vm2224 = vcmp.lt.s32.totalorder %v186, %v2222
      %vm2225 = vmand %vm2220, %vm2223
      %vm2226 = vmand %vm2221, %vm2224
      %v2227 = vsel %vm2225, 1, 0
      %v2228 = vsel %vm2226, 1, 0
      %vm2229 = vcmp.eq.s32.totalorder %v2227, 1
      %vm2230 = vcmp.eq.s32.totalorder %v2228, 1
      %v2231 = vsel %vm2229, %v1670, -inf
      %v2232 = vsel %vm2230, %v1684, -inf
      %v2233 = vsel %vm2229, %v1698, -inf
      %v2234 = vsel %vm2230, %v1712, -inf
      %v2235 = vsel %vm2229, %v1726, -inf
      %v2236 = vsel %vm2230, %v1740, -inf
      %v2237 = vsel %vm2229, %v1754, -inf
      %v2238 = vsel %vm2230, %v1768, -inf
      %v2239 = vsel %vm2229, %v1782, -inf
      %v2240 = vsel %vm2230, %v1796, -inf
      %v2241 = vsel %vm2229, %v1810, -inf
      %v2242 = vsel %vm2230, %v1824, -inf
      %v2243 = vsel %vm2229, %v1838, -inf
      %v2244 = vsel %vm2230, %v1852, -inf
      %v2245 = vsel %vm233, %v2231, -inf
      %v2246 = vsel %vm233, %v2232, -inf
      %v2247 = vmax.f32 %v2245, %v2246
      %v2248 = vrot.slane %v2247, 4
      %v2249 = vmax.f32 %v2247, %v2248
      %v2250 = vrot.slane %v2249, 2
      %v2251 = vmax.f32 %v2249, %v2250
      %v2252 = vrot.slane %v2251, 1
      %v2253 = vmax.f32 %v2251, %v2252
      %v2254 = vsel %vm233, %v2233, -inf
      %v2255 = vsel %vm233, %v2234, -inf
      %v2256 = vmax.f32 %v2254, %v2255
      %v2257 = vrot.slane %v2256, 4
      %v2258 = vmax.f32 %v2256, %v2257
      %v2259 = vrot.slane %v2258, 2
      %v2260 = vmax.f32 %v2258, %v2259
      %v2261 = vrot.slane %v2260, 1
      %v2262 = vmax.f32 %v2260, %v2261
      %v2263 = vsel %vm233, %v2235, -inf
      %v2264 = vsel %vm233, %v2236, -inf
      %v2265 = vmax.f32 %v2263, %v2264
      %v2266 = vrot.slane %v2265, 4
      %v2267 = vmax.f32 %v2265, %v2266
      %v2268 = vrot.slane %v2267, 2
      %v2269 = vmax.f32 %v2267, %v2268
      %v2270 = vrot.slane %v2269, 1
      %v2271 = vmax.f32 %v2269, %v2270
      %v2272 = vsel %vm233, %v2237, -inf
      %v2273 = vsel %vm233, %v2238, -inf
      %v2274 = vmax.f32 %v2272, %v2273
      %v2275 = vrot.slane %v2274, 4
      %v2276 = vmax.f32 %v2274, %v2275
      %v2277 = vrot.slane %v2276, 2
      %v2278 = vmax.f32 %v2276, %v2277
      %v2279 = vrot.slane %v2278, 1
      %v2280 = vmax.f32 %v2278, %v2279
      %v2281 = vsel %vm233, %v2239, -inf
      %v2282 = vsel %vm233, %v2240, -inf
      %v2283 = vmax.f32 %v2281, %v2282
      %v2284 = vrot.slane %v2283, 4
      %v2285 = vmax.f32 %v2283, %v2284
      %v2286 = vrot.slane %v2285, 2
      %v2287 = vmax.f32 %v2285, %v2286
      %v2288 = vrot.slane %v2287, 1
      %v2289 = vmax.f32 %v2287, %v2288
      %v2290 = vsel %vm233, %v2241, -inf
      %v2291 = vsel %vm233, %v2242, -inf
      %v2292 = vmax.f32 %v2290, %v2291
      %v2293 = vrot.slane %v2292, 4
      %v2294 = vmax.f32 %v2292, %v2293
      %v2295 = vrot.slane %v2294, 2
      %v2296 = vmax.f32 %v2294, %v2295
      %v2297 = vrot.slane %v2296, 1
      %v2298 = vmax.f32 %v2296, %v2297
      %v2299 = vsel %vm233, %v2243, -inf
      %v2300 = vsel %vm233, %v2244, -inf
      %v2301 = vmax.f32 %v2299, %v2300
      %v2302 = vrot.slane %v2301, 4
      %v2303 = vmax.f32 %v2301, %v2302
      %v2304 = vrot.slane %v2303, 2
      %v2305 = vmax.f32 %v2303, %v2304
      %v2306 = vrot.slane %v2305, 1
      %v2307 = vmax.f32 %v2305, %v2306
      %s2308 = sld [smem:[#allocation4 + %s1142]]
      %s2309 = sld [smem:[#allocation5 + %s1142]]
      %v2310 = vstv %s2308
      %vm2311 = vcmp.ge.s32.totalorder %v185, %v2310
      %vm2312 = vcmp.ge.s32.totalorder %v186, %v2310
      %v2313 = vstv %s2309
      %vm2314 = vcmp.lt.s32.totalorder %v185, %v2313
      %vm2315 = vcmp.lt.s32.totalorder %v186, %v2313
      %vm2316 = vmand %vm2311, %vm2314
      %vm2317 = vmand %vm2312, %vm2315
      %v2318 = vsel %vm2316, 1, 0
      %v2319 = vsel %vm2317, 1, 0
      %vm2320 = vcmp.eq.s32.totalorder %v2318, 1
      %vm2321 = vcmp.eq.s32.totalorder %v2319, 1
      %v2322 = vsel %vm2320, %v1670, -inf
      %v2323 = vsel %vm2321, %v1684, -inf
      %v2324 = vsel %vm2320, %v1698, -inf
      %v2325 = vsel %vm2321, %v1712, -inf
      %v2326 = vsel %vm2320, %v1726, -inf
      %v2327 = vsel %vm2321, %v1740, -inf
      %v2328 = vsel %vm2320, %v1754, -inf
      %v2329 = vsel %vm2321, %v1768, -inf
      %v2330 = vsel %vm2320, %v1782, -inf
      %v2331 = vsel %vm2321, %v1796, -inf
      %v2332 = vsel %vm2320, %v1810, -inf
      %v2333 = vsel %vm2321, %v1824, -inf
      %v2334 = vsel %vm2320, %v1838, -inf
      %v2335 = vsel %vm2321, %v1852, -inf
      %v2336 = vsel %vm233, %v2322, -inf
      %v2337 = vsel %vm233, %v2323, -inf
      %v2338 = vmax.f32 %v2336, %v2337
      %v2339 = vrot.slane %v2338, 4
      %v2340 = vmax.f32 %v2338, %v2339
      %v2341 = vrot.slane %v2340, 2
      %v2342 = vmax.f32 %v2340, %v2341
      %v2343 = vrot.slane %v2342, 1
      %v2344 = vmax.f32 %v2342, %v2343
      %v2345 = vsel %vm233, %v2324, -inf
      %v2346 = vsel %vm233, %v2325, -inf
      %v2347 = vmax.f32 %v2345, %v2346
      %v2348 = vrot.slane %v2347, 4
      %v2349 = vmax.f32 %v2347, %v2348
      %v2350 = vrot.slane %v2349, 2
      %v2351 = vmax.f32 %v2349, %v2350
      %v2352 = vrot.slane %v2351, 1
      %v2353 = vmax.f32 %v2351, %v2352
      %v2354 = vsel %vm233, %v2326, -inf
      %v2355 = vsel %vm233, %v2327, -inf
      %v2356 = vmax.f32 %v2354, %v2355
      %v2357 = vrot.slane %v2356, 4
      %v2358 = vmax.f32 %v2356, %v2357
      %v2359 = vrot.slane %v2358, 2
      %v2360 = vmax.f32 %v2358, %v2359
      %v2361 = vrot.slane %v2360, 1
      %v2362 = vmax.f32 %v2360, %v2361
      %v2363 = vsel %vm233, %v2328, -inf
      %v2364 = vsel %vm233, %v2329, -inf
      %v2365 = vmax.f32 %v2363, %v2364
      %v2366 = vrot.slane %v2365, 4
      %v2367 = vmax.f32 %v2365, %v2366
      %v2368 = vrot.slane %v2367, 2
      %v2369 = vmax.f32 %v2367, %v2368
      %v2370 = vrot.slane %v2369, 1
      %v2371 = vmax.f32 %v2369, %v2370
      %v2372 = vsel %vm233, %v2330, -inf
      %v2373 = vsel %vm233, %v2331, -inf
      %v2374 = vmax.f32 %v2372, %v2373
      %v2375 = vrot.slane %v2374, 4
      %v2376 = vmax.f32 %v2374, %v2375
      %v2377 = vrot.slane %v2376, 2
      %v2378 = vmax.f32 %v2376, %v2377
      %v2379 = vrot.slane %v2378, 1
      %v2380 = vmax.f32 %v2378, %v2379
      %v2381 = vsel %vm233, %v2332, -inf
      %v2382 = vsel %vm233, %v2333, -inf
      %v2383 = vmax.f32 %v2381, %v2382
      %v2384 = vrot.slane %v2383, 4
      %v2385 = vmax.f32 %v2383, %v2384
      %v2386 = vrot.slane %v2385, 2
      %v2387 = vmax.f32 %v2385, %v2386
      %v2388 = vrot.slane %v2387, 1
      %v2389 = vmax.f32 %v2387, %v2388
      %v2390 = vsel %vm233, %v2334, -inf
      %v2391 = vsel %vm233, %v2335, -inf
      %v2392 = vmax.f32 %v2390, %v2391
      %v2393 = vrot.slane %v2392, 4
      %v2394 = vmax.f32 %v2392, %v2393
      %v2395 = vrot.slane %v2394, 2
      %v2396 = vmax.f32 %v2394, %v2395
      %v2397 = vrot.slane %v2396, 1
      %v2398 = vmax.f32 %v2396, %v2397
      %s2399 = sld [smem:[#allocation4 + %s1333]]
      %s2400 = sld [smem:[#allocation5 + %s1333]]
      %v2401 = vstv %s2399
      %vm2402 = vcmp.ge.s32.totalorder %v185, %v2401
      %vm2403 = vcmp.ge.s32.totalorder %v186, %v2401
      %v2404 = vstv %s2400
      %vm2405 = vcmp.lt.s32.totalorder %v185, %v2404
      %vm2406 = vcmp.lt.s32.totalorder %v186, %v2404
      %vm2407 = vmand %vm2402, %vm2405
      %vm2408 = vmand %vm2403, %vm2406
      %v2409 = vsel %vm2407, 1, 0
      %v2410 = vsel %vm2408, 1, 0
      %vm2411 = vcmp.eq.s32.totalorder %v2409, 1
      %vm2412 = vcmp.eq.s32.totalorder %v2410, 1
      %v2413 = vsel %vm2411, %v1670, -inf
      %v2414 = vsel %vm2412, %v1684, -inf
      %v2415 = vsel %vm2411, %v1698, -inf
      %v2416 = vsel %vm2412, %v1712, -inf
      %v2417 = vsel %vm2411, %v1726, -inf
      %v2418 = vsel %vm2412, %v1740, -inf
      %v2419 = vsel %vm2411, %v1754, -inf
      %v2420 = vsel %vm2412, %v1768, -inf
      %v2421 = vsel %vm2411, %v1782, -inf
      %v2422 = vsel %vm2412, %v1796, -inf
      %v2423 = vsel %vm2411, %v1810, -inf
      %v2424 = vsel %vm2412, %v1824, -inf
      %v2425 = vsel %vm2411, %v1838, -inf
      %v2426 = vsel %vm2412, %v1852, -inf
      %v2427 = vsel %vm233, %v2413, -inf
      %v2428 = vsel %vm233, %v2414, -inf
      %v2429 = vmax.f32 %v2427, %v2428
      %v2430 = vrot.slane %v2429, 4
      %v2431 = vmax.f32 %v2429, %v2430
      %v2432 = vrot.slane %v2431, 2
      %v2433 = vmax.f32 %v2431, %v2432
      %v2434 = vrot.slane %v2433, 1
      %v2435 = vmax.f32 %v2433, %v2434
      %v2436 = vsel %vm233, %v2415, -inf
      %v2437 = vsel %vm233, %v2416, -inf
      %v2438 = vmax.f32 %v2436, %v2437
      %v2439 = vrot.slane %v2438, 4
      %v2440 = vmax.f32 %v2438, %v2439
      %v2441 = vrot.slane %v2440, 2
      %v2442 = vmax.f32 %v2440, %v2441
      %v2443 = vrot.slane %v2442, 1
      %v2444 = vmax.f32 %v2442, %v2443
      %v2445 = vsel %vm233, %v2417, -inf
      %v2446 = vsel %vm233, %v2418, -inf
      %v2447 = vmax.f32 %v2445, %v2446
      %v2448 = vrot.slane %v2447, 4
      %v2449 = vmax.f32 %v2447, %v2448
      %v2450 = vrot.slane %v2449, 2
      %v2451 = vmax.f32 %v2449, %v2450
      %v2452 = vrot.slane %v2451, 1
      %v2453 = vmax.f32 %v2451, %v2452
      %v2454 = vsel %vm233, %v2419, -inf
      %v2455 = vsel %vm233, %v2420, -inf
      %v2456 = vmax.f32 %v2454, %v2455
      %v2457 = vrot.slane %v2456, 4
      %v2458 = vmax.f32 %v2456, %v2457
      %v2459 = vrot.slane %v2458, 2
      %v2460 = vmax.f32 %v2458, %v2459
      %v2461 = vrot.slane %v2460, 1
      %v2462 = vmax.f32 %v2460, %v2461
      %v2463 = vsel %vm233, %v2421, -inf
      %v2464 = vsel %vm233, %v2422, -inf
      %v2465 = vmax.f32 %v2463, %v2464
      %v2466 = vrot.slane %v2465, 4
      %v2467 = vmax.f32 %v2465, %v2466
      %v2468 = vrot.slane %v2467, 2
      %v2469 = vmax.f32 %v2467, %v2468
      %v2470 = vrot.slane %v2469, 1
      %v2471 = vmax.f32 %v2469, %v2470
      %v2472 = vsel %vm233, %v2423, -inf
      %v2473 = vsel %vm233, %v2424, -inf
      %v2474 = vmax.f32 %v2472, %v2473
      %v2475 = vrot.slane %v2474, 4
      %v2476 = vmax.f32 %v2474, %v2475
      %v2477 = vrot.slane %v2476, 2
      %v2478 = vmax.f32 %v2476, %v2477
      %v2479 = vrot.slane %v2478, 1
      %v2480 = vmax.f32 %v2478, %v2479
      %v2481 = vsel %vm233, %v2425, -inf
      %v2482 = vsel %vm233, %v2426, -inf
      %v2483 = vmax.f32 %v2481, %v2482
      %v2484 = vrot.slane %v2483, 4
      %v2485 = vmax.f32 %v2483, %v2484
      %v2486 = vrot.slane %v2485, 2
      %v2487 = vmax.f32 %v2485, %v2486
      %v2488 = vrot.slane %v2487, 1
      %v2489 = vmax.f32 %v2487, %v2488
      %vm2490 = vcmp.eq.f32.partialorder %v1889, -inf
      %vm2491 = vcmp.eq.f32.partialorder %v1898, -inf
      %vm2492 = vcmp.eq.f32.partialorder %v1907, -inf
      %vm2493 = vcmp.eq.f32.partialorder %v1916, -inf
      %vm2494 = vcmp.eq.f32.partialorder %v1925, -inf
      %vm2495 = vcmp.eq.f32.partialorder %v1934, -inf
      %vm2496 = vcmp.eq.f32.partialorder %v1943, -inf
      %vm2497 = vcmp.eq.f32.partialorder %v1980, -inf
      %vm2498 = vcmp.eq.f32.partialorder %v1989, -inf
      %vm2499 = vcmp.eq.f32.partialorder %v1998, -inf
      %vm2500 = vcmp.eq.f32.partialorder %v2007, -inf
      %vm2501 = vcmp.eq.f32.partialorder %v2016, -inf
      %vm2502 = vcmp.eq.f32.partialorder %v2025, -inf
      %vm2503 = vcmp.eq.f32.partialorder %v2034, -inf
      %vm2504 = vcmp.eq.f32.partialorder %v2071, -inf
      %vm2505 = vcmp.eq.f32.partialorder %v2080, -inf
      %vm2506 = vcmp.eq.f32.partialorder %v2089, -inf
      %vm2507 = vcmp.eq.f32.partialorder %v2098, -inf
      %vm2508 = vcmp.eq.f32.partialorder %v2107, -inf
      %vm2509 = vcmp.eq.f32.partialorder %v2116, -inf
      %vm2510 = vcmp.eq.f32.partialorder %v2125, -inf
      %vm2511 = vcmp.eq.f32.partialorder %v2162, -inf
      %vm2512 = vcmp.eq.f32.partialorder %v2171, -inf
      %vm2513 = vcmp.eq.f32.partialorder %v2180, -inf
      %vm2514 = vcmp.eq.f32.partialorder %v2189, -inf
      %vm2515 = vcmp.eq.f32.partialorder %v2198, -inf
      %vm2516 = vcmp.eq.f32.partialorder %v2207, -inf
      %vm2517 = vcmp.eq.f32.partialorder %v2216, -inf
      %vm2518 = vcmp.eq.f32.partialorder %v2253, -inf
      %vm2519 = vcmp.eq.f32.partialorder %v2262, -inf
      %vm2520 = vcmp.eq.f32.partialorder %v2271, -inf
      %vm2521 = vcmp.eq.f32.partialorder %v2280, -inf
      %vm2522 = vcmp.eq.f32.partialorder %v2289, -inf
      %vm2523 = vcmp.eq.f32.partialorder %v2298, -inf
      %vm2524 = vcmp.eq.f32.partialorder %v2307, -inf
      %vm2525 = vcmp.eq.f32.partialorder %v2344, -inf
      %vm2526 = vcmp.eq.f32.partialorder %v2353, -inf
      %vm2527 = vcmp.eq.f32.partialorder %v2362, -inf
      %vm2528 = vcmp.eq.f32.partialorder %v2371, -inf
      %vm2529 = vcmp.eq.f32.partialorder %v2380, -inf
      %vm2530 = vcmp.eq.f32.partialorder %v2389, -inf
      %vm2531 = vcmp.eq.f32.partialorder %v2398, -inf
      %vm2532 = vcmp.eq.f32.partialorder %v2435, -inf
      %vm2533 = vcmp.eq.f32.partialorder %v2444, -inf
      %vm2534 = vcmp.eq.f32.partialorder %v2453, -inf
      %vm2535 = vcmp.eq.f32.partialorder %v2462, -inf
      %vm2536 = vcmp.eq.f32.partialorder %v2471, -inf
      %vm2537 = vcmp.eq.f32.partialorder %v2480, -inf
      %vm2538 = vcmp.eq.f32.partialorder %v2489, -inf
      %v2539 = vsel %vm2490, 0.0, %v1889
      %v2540 = vsel %vm2491, 0.0, %v1898
      %v2541 = vsel %vm2492, 0.0, %v1907
      %v2542 = vsel %vm2493, 0.0, %v1916
      %v2543 = vsel %vm2494, 0.0, %v1925
      %v2544 = vsel %vm2495, 0.0, %v1934
      %v2545 = vsel %vm2496, 0.0, %v1943
      %v2546 = vsel %vm2497, 0.0, %v1980
      %v2547 = vsel %vm2498, 0.0, %v1989
      %v2548 = vsel %vm2499, 0.0, %v1998
      %v2549 = vsel %vm2500, 0.0, %v2007
      %v2550 = vsel %vm2501, 0.0, %v2016
      %v2551 = vsel %vm2502, 0.0, %v2025
      %v2552 = vsel %vm2503, 0.0, %v2034
      %v2553 = vsel %vm2504, 0.0, %v2071
      %v2554 = vsel %vm2505, 0.0, %v2080
      %v2555 = vsel %vm2506, 0.0, %v2089
      %v2556 = vsel %vm2507, 0.0, %v2098
      %v2557 = vsel %vm2508, 0.0, %v2107
      %v2558 = vsel %vm2509, 0.0, %v2116
      %v2559 = vsel %vm2510, 0.0, %v2125
      %v2560 = vsel %vm2511, 0.0, %v2162
      %v2561 = vsel %vm2512, 0.0, %v2171
      %v2562 = vsel %vm2513, 0.0, %v2180
      %v2563 = vsel %vm2514, 0.0, %v2189
      %v2564 = vsel %vm2515, 0.0, %v2198
      %v2565 = vsel %vm2516, 0.0, %v2207
      %v2566 = vsel %vm2517, 0.0, %v2216
      %v2567 = vsel %vm2518, 0.0, %v2253
      %v2568 = vsel %vm2519, 0.0, %v2262
      %v2569 = vsel %vm2520, 0.0, %v2271
      %v2570 = vsel %vm2521, 0.0, %v2280
      %v2571 = vsel %vm2522, 0.0, %v2289
      %v2572 = vsel %vm2523, 0.0, %v2298
      %v2573 = vsel %vm2524, 0.0, %v2307
      %v2574 = vsel %vm2525, 0.0, %v2344
      %v2575 = vsel %vm2526, 0.0, %v2353
      %v2576 = vsel %vm2527, 0.0, %v2362
      %v2577 = vsel %vm2528, 0.0, %v2371
      %v2578 = vsel %vm2529, 0.0, %v2380
      %v2579 = vsel %vm2530, 0.0, %v2389
      %v2580 = vsel %vm2531, 0.0, %v2398
      %v2581 = vsel %vm2532, 0.0, %v2435
      %v2582 = vsel %vm2533, 0.0, %v2444
      %v2583 = vsel %vm2534, 0.0, %v2453
      %v2584 = vsel %vm2535, 0.0, %v2462
      %v2585 = vsel %vm2536, 0.0, %v2471
      %v2586 = vsel %vm2537, 0.0, %v2480
      %v2587 = vsel %vm2538, 0.0, %v2489
      %v2588 = vpack.c.bf16 %v2539, %v2539
      %v2589 = vpack.c.bf16 %v2540, %v2540
      %v2590 = vpack.c.bf16 %v2541, %v2541
      %v2591 = vpack.c.bf16 %v2542, %v2542
      %v2592 = vpack.c.bf16 %v2543, %v2543
      %v2593 = vpack.c.bf16 %v2544, %v2544
      %v2594 = vpack.c.bf16 %v2545, %v2545
      %v2595 = vpack.c.bf16 %v2546, %v2546
      %v2596 = vpack.c.bf16 %v2547, %v2547
      %v2597 = vpack.c.bf16 %v2548, %v2548
      %v2598 = vpack.c.bf16 %v2549, %v2549
      %v2599 = vpack.c.bf16 %v2550, %v2550
      %v2600 = vpack.c.bf16 %v2551, %v2551
      %v2601 = vpack.c.bf16 %v2552, %v2552
      %v2602 = vpack.c.bf16 %v2553, %v2553
      %v2603 = vpack.c.bf16 %v2554, %v2554
      %v2604 = vpack.c.bf16 %v2555, %v2555
      %v2605 = vpack.c.bf16 %v2556, %v2556
      %v2606 = vpack.c.bf16 %v2557, %v2557
      %v2607 = vpack.c.bf16 %v2558, %v2558
      %v2608 = vpack.c.bf16 %v2559, %v2559
      %v2609 = vpack.c.bf16 %v2560, %v2560
      %v2610 = vpack.c.bf16 %v2561, %v2561
      %v2611 = vpack.c.bf16 %v2562, %v2562
      %v2612 = vpack.c.bf16 %v2563, %v2563
      %v2613 = vpack.c.bf16 %v2564, %v2564
      %v2614 = vpack.c.bf16 %v2565, %v2565
      %v2615 = vpack.c.bf16 %v2566, %v2566
      %v2616 = vpack.c.bf16 %v2567, %v2567
      %v2617 = vpack.c.bf16 %v2568, %v2568
      %v2618 = vpack.c.bf16 %v2569, %v2569
      %v2619 = vpack.c.bf16 %v2570, %v2570
      %v2620 = vpack.c.bf16 %v2571, %v2571
      %v2621 = vpack.c.bf16 %v2572, %v2572
      %v2622 = vpack.c.bf16 %v2573, %v2573
      %v2623 = vpack.c.bf16 %v2574, %v2574
      %v2624 = vpack.c.bf16 %v2575, %v2575
      %v2625 = vpack.c.bf16 %v2576, %v2576
      %v2626 = vpack.c.bf16 %v2577, %v2577
      %v2627 = vpack.c.bf16 %v2578, %v2578
      %v2628 = vpack.c.bf16 %v2579, %v2579
      %v2629 = vpack.c.bf16 %v2580, %v2580
      %v2630 = vpack.c.bf16 %v2581, %v2581
      %v2631 = vpack.c.bf16 %v2582, %v2582
      %v2632 = vpack.c.bf16 %v2583, %v2583
      %v2633 = vpack.c.bf16 %v2584, %v2584
      %v2634 = vpack.c.bf16 %v2585, %v2585
      %v2635 = vpack.c.bf16 %v2586, %v2586
      %v2636 = vpack.c.bf16 %v2587, %v2587
      %v2686 = vunpack.c.l.b16 %v2588
      %v2687 = vunpack.c.l.b16 %v2589
      %v2688 = vunpack.c.l.b16 %v2590
      %v2689 = vunpack.c.l.b16 %v2591
      %v2690 = vunpack.c.l.b16 %v2592
      %v2691 = vunpack.c.l.b16 %v2593
      %v2692 = vunpack.c.l.b16 %v2594
      %v2693 = vunpack.c.l.b16 %v2595
      %v2694 = vunpack.c.l.b16 %v2596
      %v2695 = vunpack.c.l.b16 %v2597
      %v2696 = vunpack.c.l.b16 %v2598
      %v2697 = vunpack.c.l.b16 %v2599
      %v2698 = vunpack.c.l.b16 %v2600
      %v2699 = vunpack.c.l.b16 %v2601
      %v2700 = vunpack.c.l.b16 %v2602
      %v2701 = vunpack.c.l.b16 %v2603
      %v2702 = vunpack.c.l.b16 %v2604
      %v2703 = vunpack.c.l.b16 %v2605
      %v2704 = vunpack.c.l.b16 %v2606
      %v2705 = vunpack.c.l.b16 %v2607
      %v2706 = vunpack.c.l.b16 %v2608
      %v2707 = vunpack.c.l.b16 %v2609
      %v2708 = vunpack.c.l.b16 %v2610
      %v2709 = vunpack.c.l.b16 %v2611
      %v2710 = vunpack.c.l.b16 %v2612
      %v2711 = vunpack.c.l.b16 %v2613
      %v2712 = vunpack.c.l.b16 %v2614
      %v2713 = vunpack.c.l.b16 %v2615
      %v2714 = vunpack.c.l.b16 %v2616
      %v2715 = vunpack.c.l.b16 %v2617
      %v2716 = vunpack.c.l.b16 %v2618
      %v2717 = vunpack.c.l.b16 %v2619
      %v2718 = vunpack.c.l.b16 %v2620
      %v2719 = vunpack.c.l.b16 %v2621
      %v2720 = vunpack.c.l.b16 %v2622
      %v2721 = vunpack.c.l.b16 %v2623
      %v2722 = vunpack.c.l.b16 %v2624
      %v2723 = vunpack.c.l.b16 %v2625
      %v2724 = vunpack.c.l.b16 %v2626
      %v2725 = vunpack.c.l.b16 %v2627
      %v2726 = vunpack.c.l.b16 %v2628
      %v2727 = vunpack.c.l.b16 %v2629
      %v2728 = vunpack.c.l.b16 %v2630
      %v2729 = vunpack.c.l.b16 %v2631
      %v2730 = vunpack.c.l.b16 %v2632
      %v2731 = vunpack.c.l.b16 %v2633
      %v2732 = vunpack.c.l.b16 %v2634
      %v2733 = vunpack.c.l.b16 %v2635
      %v2734 = vunpack.c.l.b16 %v2636
      %v2735 = vpack.c.b16 %v2686, %v2686
      %v2736 = vpack.c.b16 %v2687, %v2687
      %v2737 = vpack.c.b16 %v2688, %v2688
      %v2738 = vpack.c.b16 %v2689, %v2689
      %v2739 = vpack.c.b16 %v2690, %v2690
      %v2740 = vpack.c.b16 %v2691, %v2691
      %v2741 = vpack.c.b16 %v2692, %v2692
      %v2742 = vpack.c.b16 %v2693, %v2693
      %v2743 = vpack.c.b16 %v2694, %v2694
      %v2744 = vpack.c.b16 %v2695, %v2695
      %v2745 = vpack.c.b16 %v2696, %v2696
      %v2746 = vpack.c.b16 %v2697, %v2697
      %v2747 = vpack.c.b16 %v2698, %v2698
      %v2748 = vpack.c.b16 %v2699, %v2699
      %v2749 = vpack.c.b16 %v2700, %v2700
      %v2750 = vpack.c.b16 %v2701, %v2701
      %v2751 = vpack.c.b16 %v2702, %v2702
      %v2752 = vpack.c.b16 %v2703, %v2703
      %v2753 = vpack.c.b16 %v2704, %v2704
      %v2754 = vpack.c.b16 %v2705, %v2705
      %v2755 = vpack.c.b16 %v2706, %v2706
      %v2756 = vpack.c.b16 %v2707, %v2707
      %v2757 = vpack.c.b16 %v2708, %v2708
      %v2758 = vpack.c.b16 %v2709, %v2709
      %v2759 = vpack.c.b16 %v2710, %v2710
      %v2760 = vpack.c.b16 %v2711, %v2711
      %v2761 = vpack.c.b16 %v2712, %v2712
      %v2762 = vpack.c.b16 %v2713, %v2713
      %v2763 = vpack.c.b16 %v2714, %v2714
      %v2764 = vpack.c.b16 %v2715, %v2715
      %v2765 = vpack.c.b16 %v2716, %v2716
      %v2766 = vpack.c.b16 %v2717, %v2717
      %v2767 = vpack.c.b16 %v2718, %v2718
      %v2768 = vpack.c.b16 %v2719, %v2719
      %v2769 = vpack.c.b16 %v2720, %v2720
      %v2770 = vpack.c.b16 %v2721, %v2721
      %v2771 = vpack.c.b16 %v2722, %v2722
      %v2772 = vpack.c.b16 %v2723, %v2723
      %v2773 = vpack.c.b16 %v2724, %v2724
      %v2774 = vpack.c.b16 %v2725, %v2725
      %v2775 = vpack.c.b16 %v2726, %v2726
      %v2776 = vpack.c.b16 %v2727, %v2727
      %v2777 = vpack.c.b16 %v2728, %v2728
      %v2778 = vpack.c.b16 %v2729, %v2729
      %v2779 = vpack.c.b16 %v2730, %v2730
      %v2780 = vpack.c.b16 %v2731, %v2731
      %v2781 = vpack.c.b16 %v2732, %v2732
      %v2782 = vpack.c.b16 %v2733, %v2733
      %v2783 = vpack.c.b16 %v2734, %v2734
      %v2784 = vunpack.c.l.b16 %v2735
      %v2785 = vunpack.c.l.b16 %v2736
      %v2786 = vunpack.c.l.b16 %v2737
      %v2787 = vunpack.c.l.b16 %v2738
      %v2788 = vunpack.c.l.b16 %v2739
      %v2789 = vunpack.c.l.b16 %v2740
      %v2790 = vunpack.c.l.b16 %v2741
      %v2791 = vunpack.c.l.b16 %v2742
      %v2792 = vunpack.c.l.b16 %v2743
      %v2793 = vunpack.c.l.b16 %v2744
      %v2794 = vunpack.c.l.b16 %v2745
      %v2795 = vunpack.c.l.b16 %v2746
      %v2796 = vunpack.c.l.b16 %v2747
      %v2797 = vunpack.c.l.b16 %v2748
      %v2798 = vunpack.c.l.b16 %v2749
      %v2799 = vunpack.c.l.b16 %v2750
      %v2800 = vunpack.c.l.b16 %v2751
      %v2801 = vunpack.c.l.b16 %v2752
      %v2802 = vunpack.c.l.b16 %v2753
      %v2803 = vunpack.c.l.b16 %v2754
      %v2804 = vunpack.c.l.b16 %v2755
      %v2805 = vunpack.c.l.b16 %v2756
      %v2806 = vunpack.c.l.b16 %v2757
      %v2807 = vunpack.c.l.b16 %v2758
      %v2808 = vunpack.c.l.b16 %v2759
      %v2809 = vunpack.c.l.b16 %v2760
      %v2810 = vunpack.c.l.b16 %v2761
      %v2811 = vunpack.c.l.b16 %v2762
      %v2812 = vunpack.c.l.b16 %v2763
      %v2813 = vunpack.c.l.b16 %v2764
      %v2814 = vunpack.c.l.b16 %v2765
      %v2815 = vunpack.c.l.b16 %v2766
      %v2816 = vunpack.c.l.b16 %v2767
      %v2817 = vunpack.c.l.b16 %v2768
      %v2818 = vunpack.c.l.b16 %v2769
      %v2819 = vunpack.c.l.b16 %v2770
      %v2820 = vunpack.c.l.b16 %v2771
      %v2821 = vunpack.c.l.b16 %v2772
      %v2822 = vunpack.c.l.b16 %v2773
      %v2823 = vunpack.c.l.b16 %v2774
      %v2824 = vunpack.c.l.b16 %v2775
      %v2825 = vunpack.c.l.b16 %v2776
      %v2826 = vunpack.c.l.b16 %v2777
      %v2827 = vunpack.c.l.b16 %v2778
      %v2828 = vunpack.c.l.b16 %v2779
      %v2829 = vunpack.c.l.b16 %v2780
      %v2830 = vunpack.c.l.b16 %v2781
      %v2831 = vunpack.c.l.b16 %v2782
      %v2832 = vunpack.c.l.b16 %v2783
      %v2833 = vrot.slane %v2785, 7
      %v2834 = vsel %vm1651, %v2833, %v2784
      %v2835 = vrot.slane %v2786, 6
      %v2836 = vsel %vm1654, %v2835, %v2834
      %v2837 = vrot.slane %v2787, 5
      %v2838 = vsel %vm1657, %v2837, %v2836
      %v2839 = vrot.slane %v2788, 4
      %v2840 = vsel %vm1660, %v2839, %v2838
      %v2841 = vrot.slane %v2789, 3
      %v2842 = vsel %vm1663, %v2841, %v2840
      %v2843 = vrot.slane %v2790, 2
      %v2844 = vsel %vm1666, %v2843, %v2842
      %v2845 = vrot.slane %v2792, 7
      %v2846 = vsel %vm1651, %v2845, %v2791
      %v2847 = vrot.slane %v2793, 6
      %v2848 = vsel %vm1654, %v2847, %v2846
      %v2849 = vrot.slane %v2794, 5
      %v2850 = vsel %vm1657, %v2849, %v2848
      %v2851 = vrot.slane %v2795, 4
      %v2852 = vsel %vm1660, %v2851, %v2850
      %v2853 = vrot.slane %v2796, 3
      %v2854 = vsel %vm1663, %v2853, %v2852
      %v2855 = vrot.slane %v2797, 2
      %v2856 = vsel %vm1666, %v2855, %v2854
      %v2857 = vrot.slane %v2799, 7
      %v2858 = vsel %vm1651, %v2857, %v2798
      %v2859 = vrot.slane %v2800, 6
      %v2860 = vsel %vm1654, %v2859, %v2858
      %v2861 = vrot.slane %v2801, 5
      %v2862 = vsel %vm1657, %v2861, %v2860
      %v2863 = vrot.slane %v2802, 4
      %v2864 = vsel %vm1660, %v2863, %v2862
      %v2865 = vrot.slane %v2803, 3
      %v2866 = vsel %vm1663, %v2865, %v2864
      %v2867 = vrot.slane %v2804, 2
      %v2868 = vsel %vm1666, %v2867, %v2866
      %v2869 = vrot.slane %v2806, 7
      %v2870 = vsel %vm1651, %v2869, %v2805
      %v2871 = vrot.slane %v2807, 6
      %v2872 = vsel %vm1654, %v2871, %v2870
      %v2873 = vrot.slane %v2808, 5
      %v2874 = vsel %vm1657, %v2873, %v2872
      %v2875 = vrot.slane %v2809, 4
      %v2876 = vsel %vm1660, %v2875, %v2874
      %v2877 = vrot.slane %v2810, 3
      %v2878 = vsel %vm1663, %v2877, %v2876
      %v2879 = vrot.slane %v2811, 2
      %v2880 = vsel %vm1666, %v2879, %v2878
      %v2881 = vrot.slane %v2813, 7
      %v2882 = vsel %vm1651, %v2881, %v2812
      %v2883 = vrot.slane %v2814, 6
      %v2884 = vsel %vm1654, %v2883, %v2882
      %v2885 = vrot.slane %v2815, 5
      %v2886 = vsel %vm1657, %v2885, %v2884
      %v2887 = vrot.slane %v2816, 4
      %v2888 = vsel %vm1660, %v2887, %v2886
      %v2889 = vrot.slane %v2817, 3
      %v2890 = vsel %vm1663, %v2889, %v2888
      %v2891 = vrot.slane %v2818, 2
      %v2892 = vsel %vm1666, %v2891, %v2890
      %v2893 = vrot.slane %v2820, 7
      %v2894 = vsel %vm1651, %v2893, %v2819
      %v2895 = vrot.slane %v2821, 6
      %v2896 = vsel %vm1654, %v2895, %v2894
      %v2897 = vrot.slane %v2822, 5
      %v2898 = vsel %vm1657, %v2897, %v2896
      %v2899 = vrot.slane %v2823, 4
      %v2900 = vsel %vm1660, %v2899, %v2898
      %v2901 = vrot.slane %v2824, 3
      %v2902 = vsel %vm1663, %v2901, %v2900
      %v2903 = vrot.slane %v2825, 2
      %v2904 = vsel %vm1666, %v2903, %v2902
      %v2905 = vrot.slane %v2827, 7
      %v2906 = vsel %vm1651, %v2905, %v2826
      %v2907 = vrot.slane %v2828, 6
      %v2908 = vsel %vm1654, %v2907, %v2906
      %v2909 = vrot.slane %v2829, 5
      %v2910 = vsel %vm1657, %v2909, %v2908
      %v2911 = vrot.slane %v2830, 4
      %v2912 = vsel %vm1660, %v2911, %v2910
      %v2913 = vrot.slane %v2831, 3
      %v2914 = vsel %vm1663, %v2913, %v2912
      %v2915 = vrot.slane %v2832, 2
      %v2916 = vsel %vm1666, %v2915, %v2914
      %v2917 = vpack.c.b16 %v2844, %v2844
      %v2918 = vpack.c.b16 %v2856, %v2856
      %v2919 = vpack.c.b16 %v2868, %v2868
      %v2920 = vpack.c.b16 %v2880, %v2880
      %v2921 = vpack.c.b16 %v2892, %v2892
      %v2922 = vpack.c.b16 %v2904, %v2904
      %v2923 = vpack.c.b16 %v2916, %v2916
      %vm2931 = vcmask 27648
      %vm2932 = vsmask.f32 3328
      %vm2933 = vmand %vm2931, %vm2932
      %v2934 = vld [vmem:[%s150] sm:$0xf]
      %v2935 = vsel %vm2933, %v2917, %v2934
      %2936 = vst [vmem:[%s150] sm:$0xf] %v2935
      %v2937 = vld [vmem:[%s150 + $0x4] sm:$0xf]
      %v2938 = vsel %vm2933, %v2918, %v2937
      %2939 = vst [vmem:[%s150 + $0x4] sm:$0xf] %v2938
      %v2940 = vld [vmem:[%s150 + $0x8] sm:$0xf]
      %v2941 = vsel %vm2933, %v2919, %v2940
      %2942 = vst [vmem:[%s150 + $0x8] sm:$0xf] %v2941
      %v2943 = vld [vmem:[%s150 + $0xc] sm:$0xf]
      %v2944 = vsel %vm2933, %v2920, %v2943
      %2945 = vst [vmem:[%s150 + $0xc] sm:$0xf] %v2944
      %v2946 = vld [vmem:[%s150 + $0x10] sm:$0xf]
      %v2947 = vsel %vm2933, %v2921, %v2946
      %2948 = vst [vmem:[%s150 + $0x10] sm:$0xf] %v2947
      %v2949 = vld [vmem:[%s150 + $0x14] sm:$0xf]
      %v2950 = vsel %vm2933, %v2922, %v2949
      %2951 = vst [vmem:[%s150 + $0x14] sm:$0xf] %v2950
      %v2952 = vld [vmem:[%s150 + $0x18] sm:$0xf]
      %v2953 = vsel %vm2933, %v2923, %v2952
      %2954 = vst [vmem:[%s150 + $0x18] sm:$0xf] %v2953
      %p2955 = scmp.lt.s32.totalorder %s39, 5
      %s2956 = scalar_select %p2955, %s39, 5
      %s2957 = smul.addr %s2956, 7
      %s2958 = smul.addr %s2957, 4
      %s2959 = scalar_lea.vmem %s6, %s2958
      // Predicated region
      $region25: #{tpu_custom_call.1} parent=23 // pred_check
        %p2960 = pneg %p85
      $region26: #{tpu_custom_call.1} parent=23 // pred_check_branch
        %2962 = sbr.rel (%p2960) target = $region28
      $region27: #{tpu_custom_call.1} parent=23 // pred_region
        _
      $region28: #{tpu_custom_call.1} parent=23 // pred_fallthru
        _
    $region24: #{tpu_custom_call.1} parent=5 // pred_fallthru
      _
    %p2963 = scmp.le.s32.totalorder 2, %s34
    // Predicated region
    $region29: #{tpu_custom_call.1} parent=5 // pred_check
      %p2964 = pneg %p2963
    $region30: #{tpu_custom_call.1} parent=5 // pred_check_branch
      %2966 = sbr.rel (%p2964) target = $region32
    $region31: #{tpu_custom_call.1} parent=5 // pred_region
      %s2967 = ssub.s32 %s34, 2
      // Predicated region
      $region33: #{tpu_custom_call.1} parent=31 // pred_check
        %p2968 = pneg %p91
      $region34: #{tpu_custom_call.1} parent=31 // pred_check_branch
        %2970 = sbr.rel (%p2968) target = $region36
      $region35: #{tpu_custom_call.1} parent=31 // pred_region
        %p2971 = scmp.lt.s32.totalorder %s40, 5
        %s2972 = scalar_select %p2971, %s40, 5
        %s2973 = smul.addr %s2972, 7
        %s2974 = smul.addr %s2973, 4
        %s2975 = scalar_lea.vmem %s6, %s2974
      $region36: #{tpu_custom_call.1} parent=31 // pred_fallthru
        _
    $region32: #{tpu_custom_call.1} parent=5 // pred_fallthru
      _
  $region6: #{tpu_custom_call.1} parent=0 // loop_footer
    %s38 = sadd.s32 1, %s34
  $region7: #{tpu_custom_call.1} parent=0 // loop_footer_branch
    %33 = sbr.rel target = $region3
  $region8: #{tpu_custom_call.1} parent=0 // loop_exit
    _

</llo_original>
